<compile_context>
chip_gen: v7x
topology: tpu7x:2x2x1
jax: 0.10.0
libtpu: 0.0.40
codegen_flags: <defaults>
</compile_context>

<pallas_src>
import functools

import jax
import jax.numpy as jnp
from jax.experimental import pallas as pl
from jax.experimental.pallas import tpu as pltpu


_VMEM = functools.partial(pl.BlockSpec, memory_space=pltpu.MemorySpace.VMEM)
_SMEM = functools.partial(pl.BlockSpec, memory_space=pltpu.MemorySpace.SMEM)


# --------------------------- fused conv3x3 kernel ---------------------------

def _fused_conv_kernel(x_ref, w_ref, b_ref, o_ref, xpad_ref, acc_ref, *, pool):
    """(optional 2x2 maxpool) -> zero-pad -> 3x3 conv -> bias -> ReLU, NHWC.

    x_ref    : (1, H, W, Cin) f32   activation for one batch element
    w_ref    : (9, Cin, Cout) bf16  3x3 weights, tap-major (resident across grid)
    b_ref    : (1, Cout)      f32
    o_ref    : (1, h*w, Cout) f32   flat, lane-dense output
    xpad_ref : VMEM (h+2, w+2, Cin) f32   zero-padded (pooled) activation
    acc_ref  : VMEM (h*w, Cout)     f32   MXU accumulator
    """
    x = x_ref[0]                                             # (H, W, Cin) f32
    if pool:
        H, W, C = x.shape
        h, w = H // 2, W // 2
        x = jnp.max(x.reshape(h, 2, W, C), axis=1)           # pool along H
        x = jnp.max(x.reshape(h, w, 2, C), axis=2)           # pool along W
    h, w, cin = x.shape

    # Zero-pad into VMEM scratch (halo of 1) -- im2col never touches HBM.
    xpad_ref[...] = jnp.zeros_like(xpad_ref)
    xpad_ref[1:1 + h, 1:1 + w, :] = x

    # 9 shifted taps accumulated on the MXU (bf16 operands, f32 accumulation).
    acc_ref[...] = jnp.zeros_like(acc_ref)
    for tap in range(9):
        dy, dx = divmod(tap, 3)
        win = xpad_ref[dy:dy + h, dx:dx + w, :]              # (h, w, cin), static slices
        lhs = win.reshape(h * w, cin).astype(jnp.bfloat16)
        acc_ref[...] += jnp.dot(lhs, w_ref[tap],
                                preferred_element_type=jnp.float32)

    out = jnp.maximum(acc_ref[...] + b_ref[...], 0.0)        # bias + ReLU in f32 (VPU)
    o_ref[0] = out.astype(o_ref.dtype)


def conv_block(x, w_bf16, bias, *, pool):
    """NHWC 3x3 / stride 1 / pad 1 conv + ReLU, optionally preceded by 2x2 maxpool."""
    B, H, W, Cin = x.shape
    Cout = w_bf16.shape[-1]
    h, w = (H // 2, W // 2) if pool else (H, W)

    kernel = functools.partial(_fused_conv_kernel, pool=pool)
    flops = 2 * B * h * w * 9 * Cin * Cout
    bytes_accessed = (x.size * x.dtype.itemsize + w_bf16.size * 2
                      + bias.size * 4 + B * h * w * Cout * 4)

    out = pl.pallas_call(
        kernel,
        out_shape=jax.ShapeDtypeStruct((B, h * w, Cout), jnp.float32),
        grid=(B,),
        in_specs=[
            pl.BlockSpec((1, H, W, Cin), lambda b: (b, 0, 0, 0)),
            pl.BlockSpec((9, Cin, Cout), lambda b: (0, 0, 0)),   # weights stay resident
            pl.BlockSpec((1, Cout), lambda b: (0, 0)),
        ],
        out_specs=pl.BlockSpec((1, h * w, Cout), lambda b: (b, 0, 0)),
        scratch_shapes=[
            pltpu.VMEM((h + 2, w + 2, Cin), jnp.float32),
            pltpu.VMEM((h * w, Cout), jnp.float32),
        ],
        compiler_params=pltpu.CompilerParams(
            dimension_semantics=("parallel",),        # v7x: batch split over 2 TCs
            vmem_limit_bytes=32 * 1024 * 1024,
        ),
        cost_estimate=pl.CostEstimate(flops=flops, transcendentals=0,
                                      bytes_accessed=bytes_accessed),
    )(x, w_bf16, bias)
    return out                                                # (B, h*w, Cout) f32


# ------------------------------- loss kernels --------------------------------

def _l1_mean_kernel(a_ref, b_ref, o_ref):
    # mean(|a - b|) over all elements (VGG content loss, L1, reduction='mean').
    d = jnp.abs(a_ref[...] - b_ref[...])
    o_ref[0, 0] = jnp.sum(d) / float(d.size)


def _style_stats_kernel(p_ref, s_ref, mean_ref, gram_ref):
    # Fused per-layer style statistics: each feature map is read from HBM once.
    #   mean stat : sum((mean_hw(p) - mean_hw(s))^2) / B
    #   gram stat : Gram(X) = X^T X / (C*HW) per batch, sum((Gp - Gs)^2) / B
    p = p_ref[...]                                            # (B, HW, C) f32
    s = s_ref[...]
    b, m, c = p.shape

    dm = jnp.mean(p, axis=1) - jnp.mean(s, axis=1)            # (B, C) lane-dense
    mean_ref[0, 0] = jnp.sum(dm * dm) / float(b)

    scale = 1.0 / float(c * m)
    gp = jnp.einsum('bmc,bmd->bcd', p, p,
                    preferred_element_type=jnp.float32) * scale
    gs = jnp.einsum('bmc,bmd->bcd', s, s,
                    preferred_element_type=jnp.float32) * scale
    dg = gp - gs
    gram_ref[0, 0] = jnp.sum(dg * dg) / float(b)


def _match_kernel(mx_ref, my_ref, mz_ref, viz_ref, o_ref):
    # loss[p,i,j] = sum_k |match[p,j,k] - match[p,i,k]|;  (loss*viz).sum()/viz.sum()
    def pair(m):
        return jnp.abs(m[:, None, :] - m[:, :, None])
    l = pair(mx_ref[...]) + pair(my_ref[...]) + pair(mz_ref[...])
    viz = viz_ref[...]
    denom = jnp.maximum(jnp.sum(viz), 1.0)        # guard all-False visibility (NaN)
    o_ref[0, 0] = jnp.sum(l * viz) / denom


def _scalar_call(kernel, *args):
    out = pl.pallas_call(
        kernel,
        out_shape=jax.ShapeDtypeStruct((1, 1), jnp.float32),
        in_specs=[_VMEM() for _ in args],
        out_specs=_SMEM(),
    )(*args)
    return out[0, 0]


def _style_stats_call(p, s):
    mean_o, gram_o = pl.pallas_call(
        _style_stats_kernel,
        out_shape=(jax.ShapeDtypeStruct((1, 1), jnp.float32),
                   jax.ShapeDtypeStruct((1, 1), jnp.float32)),
        in_specs=[_VMEM(), _VMEM()],
        out_specs=(_SMEM(), _SMEM()),
    )(p, s)
    return mean_o[0, 0], gram_o[0, 0]


# --------------------------- synthetic NormalizedVGG -------------------------

_IMAGENET_MEAN = jnp.array([0.485, 0.456, 0.406], jnp.float32).reshape(1, 1, 1, 3)
_IMAGENET_STD = jnp.array([0.229, 0.224, 0.225], jnp.float32).reshape(1, 1, 1, 3)


def make_vgg_params(key, channels=(3, 64, 128, 128)):
    # TODO(synk): real NormalizedVGG is a pretrained VGG19 (relu1_1..relu5_1); here it
    # is a reduced, deterministically-initialized 3-stage pyramid with lane-friendly widths.
    params = []
    for i in range(len(channels) - 1):
        cin, cout = channels[i], channels[i + 1]
        key, k = jax.random.split(key)
        wgt = jax.random.normal(k, (9, cin, cout), jnp.float32) * (2.0 / (cin * 9)) ** 0.5
        params.append((wgt.astype(jnp.bfloat16),                  # bf16 MXU operands
                       jnp.zeros((1, cout), jnp.float32)))
    return params


def vgg_features(x_nhwc, params):
    """x_nhwc: (B, H, W, 3). Returns per-layer flat features [(B, HW_l, C_l) f32]."""
    x = (x_nhwc - _IMAGENET_MEAN) / _IMAGENET_STD
    feats = []
    for i, (wgt, bias) in enumerate(params):
        pool = i > 0
        B, H, W, _ = x.shape
        h, w = (H // 2, W // 2) if pool else (H, W)
        flat = conv_block(x, wgt, bias, pool=pool)             # (B, h*w, Cout)
        feats.append(flat)
        x = flat.reshape(B, h, w, -1)                          # metadata-only reshape
    return feats


# ---------------------------------- losses -----------------------------------

def content_loss(pred_feats, content_feats, layers=(3,)):
    # VGGContentLoss(loss_type='l1', layers, norm=None, reduction='mean')
    loss = jnp.float32(0.0)
    for i in range(len(pred_feats)):
        if i + 1 in layers:
            p = pred_feats[i]
            c = content_feats[i]
            B, M, C = p.shape
            loss = loss + _scalar_call(_l1_mean_kernel,
                                       p.reshape(B * M, C), c.reshape(B * M, C))
    return loss


def style_loss(pred_feats, style_feats, layers=(1, 2, 3), stats=('mean', 'gram')):
    # VGGStyleLoss(loss_type='mse', layers, stats, reduction='sum')
    # TODO(synk): 'std' style statistic not implemented (not exercised by the config).
    loss = jnp.float32(0.0)
    for l in layers:
        mean_mse, gram_mse = _style_stats_call(pred_feats[l - 1], style_feats[l - 1])
        if 'mean' in stats:
            loss = loss + mean_mse
        if 'gram' in stats:
            loss = loss + gram_mse
    return loss


def matching_loss(match, viz_mtx):
    # MatchingLoss(loss_type='l1'): pairwise L1 over candidate matches
    mx = match[:, :, 0]
    my = match[:, :, 1]
    mz = match[:, :, 2]
    viz = viz_mtx.astype(jnp.float32)
    return _scalar_call(_match_kernel, mx, my, mz, viz)


class StylizationLoss:
    """JAX/Pallas port of lib/loss.py::StylizationLoss forward pass."""

    def __init__(self, cfg, key):
        self.terms = cfg['terms']
        self.weights = cfg['weights']
        self.cfg = cfg
        self.vgg_params = None
        if 'content' in self.terms or 'style' in self.terms:
            self.vgg_params = make_vgg_params(key)
        # TODO(synk): adain/adaattn content normalization not implemented (norm=None in cfg).
        assert self.cfg.get('content', {}).get('norm', None) is None

    def __call__(self, pred, content, style, match=None, viz_mtx=None):
        pred_feats = content_feats = style_feats = None
        if self.vgg_params is not None:
            B = pred.shape[0]
            # Batch pred / content / style through the VGG in ONE pass (3x fewer
            # pallas_calls, weights DMA'd once per layer).  NCHW -> NHWC once.
            x_all = jnp.concatenate([pred, content, style], axis=0)
            x_all = jnp.transpose(x_all, (0, 2, 3, 1))
            feats = vgg_features(x_all, self.vgg_params)       # torch.no_grad is a no-op here
            pred_feats = [f[:B] for f in feats]
            content_feats = [f[B:2 * B] for f in feats]
            style_feats = [f[2 * B:] for f in feats]

        loss_dict = {'total': jnp.float32(0.0)}
        for i, term in enumerate(self.terms):
            if term == 'content':
                loss = content_loss(pred_feats, content_feats,
                                    layers=tuple(self.cfg['content']['layers']))
            elif term == 'style':
                loss = style_loss(pred_feats, style_feats,
                                  layers=tuple(self.cfg['style']['layers']),
                                  stats=tuple(self.cfg['style']['stats']))
            elif term == 'match':
                assert match is not None, '[ERROR] matches do not exist'
                loss = matching_loss(match, viz_mtx)
            else:
                raise NotImplementedError(term)
            loss_dict[term] = loss
            loss_dict['total'] = loss_dict['total'] + self.weights[i] * loss
        return loss_dict


# ------------------------------------ main ------------------------------------

if __name__ == "__main__":
    cfg = {
        'terms': ['content', 'style', 'match'],
        'weights': [1.0, 10.0, 1.0],
        'content': {'loss_type': 'l1', 'layers': [3], 'norm': None, 'reduction': 'mean'},
        'style': {'loss_type': 'mse', 'layers': [1, 2, 3],
                  'stats': ['mean', 'gram'], 'reduction': 'sum'},
        'match': {'loss_type': 'l1'},
    }

    key = jax.random.PRNGKey(0)
    k_vgg, k_pred, k_cont, k_sty, k_match, k_viz = jax.random.split(key, 6)

    B, Ch, H, W = 2, 3, 16, 16      # NCHW images
    P, V = 4, 8                     # (points, views, 3) matches

    pred = jax.random.uniform(k_pred, (B, Ch, H, W), jnp.float32)
    content = jax.random.uniform(k_cont, (B, Ch, H, W), jnp.float32)
    style = jax.random.uniform(k_sty, (B, Ch, H, W), jnp.float32)
    match = jax.random.normal(k_match, (P, V, 3), jnp.float32)
    viz_mtx = jax.random.uniform(k_viz, (P, V, V)) > 0.3

    loss_fn = StylizationLoss(cfg, k_vgg)
    loss_dict = loss_fn(pred, content, style, match=match, viz_mtx=viz_mtx)
    jax.block_until_ready(loss_dict['total'])
    print("KERNEL_OK")
</pallas_src>

<mosaic_0001>
module attributes {stable_mosaic.version = 11 : i64} {
  func.func @_fused_conv_kernel(%arg0: i32, %arg1: memref<1x16x16x3xf32, #tpu.memory_space<vmem>>, %arg2: memref<9x3x64xbf16, #tpu.memory_space<vmem>>, %arg3: memref<1x64xf32, #tpu.memory_space<vmem>>, %arg4: memref<1x256x64xf32, #tpu.memory_space<vmem>>, %arg5: memref<18x18x3xf32, #tpu.memory_space<vmem>>, %arg6: memref<256x64xf32, #tpu.memory_space<vmem>>) attributes {dimension_semantics = [#tpu.dimension_semantics<parallel>], iteration_bounds = array<i64: 6>, scalar_prefetch = 0 : i64, scratch_operands = 2 : i64, tpu.core_type = #tpu.core_type<tc>, window_params = [{transform_indices = @transform_0, window_bounds = array<i64: 1, 16, 16, 3>}, {pipeline_mode = #tpu.pipeline_mode<synchronous>, transform_indices = @transform_1, window_bounds = array<i64: 9, 3, 64>}, {pipeline_mode = #tpu.pipeline_mode<synchronous>, transform_indices = @transform_2, window_bounds = array<i64: 1, 64>}, {transform_indices = @transform_3, window_bounds = array<i64: 1, 256, 64>}]} {
    %c0 = arith.constant 0 : index
    %c0_0 = arith.constant 0 : index
    %c0_1 = arith.constant 0 : index
    %c0_2 = arith.constant 0 : index
    %0 = vector.load %arg1[%c0, %c0_0, %c0_1, %c0_2] : memref<1x16x16x3xf32, #tpu.memory_space<vmem>>, vector<1x16x16x3xf32>
    %1 = vector.shape_cast %0 : vector<1x16x16x3xf32> to vector<16x16x3xf32>
    %cst = arith.constant 0.000000e+00 : f32
    %2 = vector.broadcast %cst : f32 to vector<18x18x3xf32>
    %c0_3 = arith.constant 0 : index
    %c0_4 = arith.constant 0 : index
    %c0_5 = arith.constant 0 : index
    %3 = vector.load %arg5[%c0_3, %c0_4, %c0_5] : memref<18x18x3xf32, #tpu.memory_space<vmem>>, vector<18x18x3xf32>
    tpu.vector_store %arg5[%c0_3, %c0_4, %c0_5], %2 {strides = array<i32>} : memref<18x18x3xf32, #tpu.memory_space<vmem>>, vector<18x18x3xf32>,
    %c1 = arith.constant 1 : index
    %c1_6 = arith.constant 1 : index
    %c0_7 = arith.constant 0 : index
    %4 = vector.load %arg5[%c1, %c1_6, %c0_7] : memref<18x18x3xf32, #tpu.memory_space<vmem>>, vector<16x16x3xf32>
    tpu.vector_store %arg5[%c1, %c1_6, %c0_7], %1 {strides = array<i32>} : memref<18x18x3xf32, #tpu.memory_space<vmem>>, vector<16x16x3xf32>,
    %cst_8 = arith.constant 0.000000e+00 : f32
    %5 = vector.broadcast %cst_8 : f32 to vector<256x64xf32>
    %c0_9 = arith.constant 0 : index
    %c0_10 = arith.constant 0 : index
    %6 = vector.load %arg6[%c0_9, %c0_10] : memref<256x64xf32, #tpu.memory_space<vmem>>, vector<256x64xf32>
    tpu.vector_store %arg6[%c0_9, %c0_10], %5 {strides = array<i32>} : memref<256x64xf32, #tpu.memory_space<vmem>>, vector<256x64xf32>,
    %c0_11 = arith.constant 0 : index
    %c0_12 = arith.constant 0 : index
    %c0_13 = arith.constant 0 : index
    %7 = vector.load %arg5[%c0_11, %c0_12, %c0_13] : memref<18x18x3xf32, #tpu.memory_space<vmem>>, vector<16x16x3xf32>
    %8 = vector.shape_cast %7 : vector<16x16x3xf32> to vector<256x3xf32>
    %9 = arith.truncf %8 : vector<256x3xf32> to vector<256x3xbf16>
    %c0_14 = arith.constant 0 : index
    %c0_15 = arith.constant 0 : index
    %10 = vector.load %arg6[%c0_14, %c0_15] : memref<256x64xf32, #tpu.memory_space<vmem>>, vector<256x64xf32>
    %c0_16 = arith.constant 0 : index
    %c0_17 = arith.constant 0 : index
    %c0_18 = arith.constant 0 : index
    %11 = vector.load %arg2[%c0_16, %c0_17, %c0_18] : memref<9x3x64xbf16, #tpu.memory_space<vmem>>, vector<1x3x64xbf16>
    %12 = vector.shape_cast %11 : vector<1x3x64xbf16> to vector<3x64xbf16>
    %cst_19 = arith.constant dense<0.000000e+00> : vector<256x64xf32>
    %13 = tpu.matmul %9, %12, %cst_19 {dimension_numbers = #tpu.dot_dimension_numbers<[1], [0], [0], [1], [0, 0, 1, 1], [], []>} : vector<256x3xbf16>, vector<3x64xbf16>, vector<256x64xf32> -> vector<256x64xf32>
    %14 = arith.addf %10, %13 : vector<256x64xf32>
    %c0_20 = arith.constant 0 : index
    %c0_21 = arith.constant 0 : index
    %15 = vector.load %arg6[%c0_20, %c0_21] : memref<256x64xf32, #tpu.memory_space<vmem>>, vector<256x64xf32>
    tpu.vector_store %arg6[%c0_20, %c0_21], %14 {strides = array<i32>} : memref<256x64xf32, #tpu.memory_space<vmem>>, vector<256x64xf32>,
    %c0_22 = arith.constant 0 : index
    %c1_23 = arith.constant 1 : index
    %c0_24 = arith.constant 0 : index
    %16 = vector.load %arg5[%c0_22, %c1_23, %c0_24] : memref<18x18x3xf32, #tpu.memory_space<vmem>>, vector<16x16x3xf32>
    %17 = vector.shape_cast %16 : vector<16x16x3xf32> to vector<256x3xf32>
    %18 = arith.truncf %17 : vector<256x3xf32> to vector<256x3xbf16>
    %c0_25 = arith.constant 0 : index
    %c0_26 = arith.constant 0 : index
    %19 = vector.load %arg6[%c0_25, %c0_26] : memref<256x64xf32, #tpu.memory_space<vmem>>, vector<256x64xf32>
    %c1_27 = arith.constant 1 : index
    %c0_28 = arith.constant 0 : index
    %c0_29 = arith.constant 0 : index
    %20 = vector.load %arg2[%c1_27, %c0_28, %c0_29] : memref<9x3x64xbf16, #tpu.memory_space<vmem>>, vector<1x3x64xbf16>
    %21 = vector.shape_cast %20 : vector<1x3x64xbf16> to vector<3x64xbf16>
    %cst_30 = arith.constant dense<0.000000e+00> : vector<256x64xf32>
    %22 = tpu.matmul %18, %21, %cst_30 {dimension_numbers = #tpu.dot_dimension_numbers<[1], [0], [0], [1], [0, 0, 1, 1], [], []>} : vector<256x3xbf16>, vector<3x64xbf16>, vector<256x64xf32> -> vector<256x64xf32>
    %23 = arith.addf %19, %22 : vector<256x64xf32>
    %c0_31 = arith.constant 0 : index
    %c0_32 = arith.constant 0 : index
    %24 = vector.load %arg6[%c0_31, %c0_32] : memref<256x64xf32, #tpu.memory_space<vmem>>, vector<256x64xf32>
    tpu.vector_store %arg6[%c0_31, %c0_32], %23 {strides = array<i32>} : memref<256x64xf32, #tpu.memory_space<vmem>>, vector<256x64xf32>,
    %c0_33 = arith.constant 0 : index
    %c2 = arith.constant 2 : index
    %c0_34 = arith.constant 0 : index
    %25 = vector.load %arg5[%c0_33, %c2, %c0_34] : memref<18x18x3xf32, #tpu.memory_space<vmem>>, vector<16x16x3xf32>
    %26 = vector.shape_cast %25 : vector<16x16x3xf32> to vector<256x3xf32>
    %27 = arith.truncf %26 : vector<256x3xf32> to vector<256x3xbf16>
    %c0_35 = arith.constant 0 : index
    %c0_36 = arith.constant 0 : index
    %28 = vector.load %arg6[%c0_35, %c0_36] : memref<256x64xf32, #tpu.memory_space<vmem>>, vector<256x64xf32>
    %c2_37 = arith.constant 2 : index
    %c0_38 = arith.constant 0 : index
    %c0_39 = arith.constant 0 : index
    %29 = vector.load %arg2[%c2_37, %c0_38, %c0_39] : memref<9x3x64xbf16, #tpu.memory_space<vmem>>, vector<1x3x64xbf16>
    %30 = vector.shape_cast %29 : vector<1x3x64xbf16> to vector<3x64xbf16>
    %cst_40 = arith.constant dense<0.000000e+00> : vector<256x64xf32>
    %31 = tpu.matmul %27, %30, %cst_40 {dimension_numbers = #tpu.dot_dimension_numbers<[1], [0], [0], [1], [0, 0, 1, 1], [], []>} : vector<256x3xbf16>, vector<3x64xbf16>, vector<256x64xf32> -> vector<256x64xf32>
    %32 = arith.addf %28, %31 : vector<256x64xf32>
    %c0_41 = arith.constant 0 : index
    %c0_42 = arith.constant 0 : index
    %33 = vector.load %arg6[%c0_41, %c0_42] : memref<256x64xf32, #tpu.memory_space<vmem>>, vector<256x64xf32>
    tpu.vector_store %arg6[%c0_41, %c0_42], %32 {strides = array<i32>} : memref<256x64xf32, #tpu.memory_space<vmem>>, vector<256x64xf32>,
    %c1_43 = arith.constant 1 : index
    %c0_44 = arith.constant 0 : index
    %c0_45 = arith.constant 0 : index
    %34 = vector.load %arg5[%c1_43, %c0_44, %c0_45] : memref<18x18x3xf32, #tpu.memory_space<vmem>>, vector<16x16x3xf32>
    %35 = vector.shape_cast %34 : vector<16x16x3xf32> to vector<256x3xf32>
    %36 = arith.truncf %35 : vector<256x3xf32> to vector<256x3xbf16>
    %c0_46 = arith.constant 0 : index
    %c0_47 = arith.constant 0 : index
    %37 = vector.load %arg6[%c0_46, %c0_47] : memref<256x64xf32, #tpu.memory_space<vmem>>, vector<256x64xf32>
    %c3 = arith.constant 3 : index
    %c0_48 = arith.constant 0 : index
    %c0_49 = arith.constant 0 : index
    %38 = vector.load %arg2[%c3, %c0_48, %c0_49] : memref<9x3x64xbf16, #tpu.memory_space<vmem>>, vector<1x3x64xbf16>
    %39 = vector.shape_cast %38 : vector<1x3x64xbf16> to vector<3x64xbf16>
    %cst_50 = arith.constant dense<0.000000e+00> : vector<256x64xf32>
    %40 = tpu.matmul %36, %39, %cst_50 {dimension_numbers = #tpu.dot_dimension_numbers<[1], [0], [0], [1], [0, 0, 1, 1], [], []>} : vector<256x3xbf16>, vector<3x64xbf16>, vector<256x64xf32> -> vector<256x64xf32>
    %41 = arith.addf %37, %40 : vector<256x64xf32>
    %c0_51 = arith.constant 0 : index
    %c0_52 = arith.constant 0 : index
    %42 = vector.load %arg6[%c0_51, %c0_52] : memref<256x64xf32, #tpu.memory_space<vmem>>, vector<256x64xf32>
    tpu.vector_store %arg6[%c0_51, %c0_52], %41 {strides = array<i32>} : memref<256x64xf32, #tpu.memory_space<vmem>>, vector<256x64xf32>,
    %c1_53 = arith.constant 1 : index
    %c1_54 = arith.constant 1 : index
    %c0_55 = arith.constant 0 : index
    %43 = vector.load %arg5[%c1_53, %c1_54, %c0_55] : memref<18x18x3xf32, #tpu.memory_space<vmem>>, vector<16x16x3xf32>
    %44 = vector.shape_cast %43 : vector<16x16x3xf32> to vector<256x3xf32>
    %45 = arith.truncf %44 : vector<256x3xf32> to vector<256x3xbf16>
    %c0_56 = arith.constant 0 : index
    %c0_57 = arith.constant 0 : index
    %46 = vector.load %arg6[%c0_56, %c0_57] : memref<256x64xf32, #tpu.memory_space<vmem>>, vector<256x64xf32>
    %c4 = arith.constant 4 : index
    %c0_58 = arith.constant 0 : index
    %c0_59 = arith.constant 0 : index
    %47 = vector.load %arg2[%c4, %c0_58, %c0_59] : memref<9x3x64xbf16, #tpu.memory_space<vmem>>, vector<1x3x64xbf16>
    %48 = vector.shape_cast %47 : vector<1x3x64xbf16> to vector<3x64xbf16>
    %cst_60 = arith.constant dense<0.000000e+00> : vector<256x64xf32>
    %49 = tpu.matmul %45, %48, %cst_60 {dimension_numbers = #tpu.dot_dimension_numbers<[1], [0], [0], [1], [0, 0, 1, 1], [], []>} : vector<256x3xbf16>, vector<3x64xbf16>, vector<256x64xf32> -> vector<256x64xf32>
    %50 = arith.addf %46, %49 : vector<256x64xf32>
    %c0_61 = arith.constant 0 : index
    %c0_62 = arith.constant 0 : index
    %51 = vector.load %arg6[%c0_61, %c0_62] : memref<256x64xf32, #tpu.memory_space<vmem>>, vector<256x64xf32>
    tpu.vector_store %arg6[%c0_61, %c0_62], %50 {strides = array<i32>} : memref<256x64xf32, #tpu.memory_space<vmem>>, vector<256x64xf32>,
    %c1_63 = arith.constant 1 : index
    %c2_64 = arith.constant 2 : index
    %c0_65 = arith.constant 0 : index
    %52 = vector.load %arg5[%c1_63, %c2_64, %c0_65] : memref<18x18x3xf32, #tpu.memory_space<vmem>>, vector<16x16x3xf32>
    %53 = vector.shape_cast %52 : vector<16x16x3xf32> to vector<256x3xf32>
    %54 = arith.truncf %53 : vector<256x3xf32> to vector<256x3xbf16>
    %c0_66 = arith.constant 0 : index
    %c0_67 = arith.constant 0 : index
    %55 = vector.load %arg6[%c0_66, %c0_67] : memref<256x64xf32, #tpu.memory_space<vmem>>, vector<256x64xf32>
    %c5 = arith.constant 5 : index
    %c0_68 = arith.constant 0 : index
    %c0_69 = arith.constant 0 : index
    %56 = vector.load %arg2[%c5, %c0_68, %c0_69] : memref<9x3x64xbf16, #tpu.memory_space<vmem>>, vector<1x3x64xbf16>
    %57 = vector.shape_cast %56 : vector<1x3x64xbf16> to vector<3x64xbf16>
    %cst_70 = arith.constant dense<0.000000e+00> : vector<256x64xf32>
    %58 = tpu.matmul %54, %57, %cst_70 {dimension_numbers = #tpu.dot_dimension_numbers<[1], [0], [0], [1], [0, 0, 1, 1], [], []>} : vector<256x3xbf16>, vector<3x64xbf16>, vector<256x64xf32> -> vector<256x64xf32>
    %59 = arith.addf %55, %58 : vector<256x64xf32>
    %c0_71 = arith.constant 0 : index
    %c0_72 = arith.constant 0 : index
    %60 = vector.load %arg6[%c0_71, %c0_72] : memref<256x64xf32, #tpu.memory_space<vmem>>, vector<256x64xf32>
    tpu.vector_store %arg6[%c0_71, %c0_72], %59 {strides = array<i32>} : memref<256x64xf32, #tpu.memory_space<vmem>>, vector<256x64xf32>,
    %c2_73 = arith.constant 2 : index
    %c0_74 = arith.constant 0 : index
    %c0_75 = arith.constant 0 : index
    %61 = vector.load %arg5[%c2_73, %c0_74, %c0_75] : memref<18x18x3xf32, #tpu.memory_space<vmem>>, vector<16x16x3xf32>
    %62 = vector.shape_cast %61 : vector<16x16x3xf32> to vector<256x3xf32>
    %63 = arith.truncf %62 : vector<256x3xf32> to vector<256x3xbf16>
    %c0_76 = arith.constant 0 : index
    %c0_77 = arith.constant 0 : index
    %64 = vector.load %arg6[%c0_76, %c0_77] : memref<256x64xf32, #tpu.memory_space<vmem>>, vector<256x64xf32>
    %c6 = arith.constant 6 : index
    %c0_78 = arith.constant 0 : index
    %c0_79 = arith.constant 0 : index
    %65 = vector.load %arg2[%c6, %c0_78, %c0_79] : memref<9x3x64xbf16, #tpu.memory_space<vmem>>, vector<1x3x64xbf16>
    %66 = vector.shape_cast %65 : vector<1x3x64xbf16> to vector<3x64xbf16>
    %cst_80 = arith.constant dense<0.000000e+00> : vector<256x64xf32>
    %67 = tpu.matmul %63, %66, %cst_80 {dimension_numbers = #tpu.dot_dimension_numbers<[1], [0], [0], [1], [0, 0, 1, 1], [], []>} : vector<256x3xbf16>, vector<3x64xbf16>, vector<256x64xf32> -> vector<256x64xf32>
    %68 = arith.addf %64, %67 : vector<256x64xf32>
    %c0_81 = arith.constant 0 : index
    %c0_82 = arith.constant 0 : index
    %69 = vector.load %arg6[%c0_81, %c0_82] : memref<256x64xf32, #tpu.memory_space<vmem>>, vector<256x64xf32>
    tpu.vector_store %arg6[%c0_81, %c0_82], %68 {strides = array<i32>} : memref<256x64xf32, #tpu.memory_space<vmem>>, vector<256x64xf32>,
    %c2_83 = arith.constant 2 : index
    %c1_84 = arith.constant 1 : index
    %c0_85 = arith.constant 0 : index
    %70 = vector.load %arg5[%c2_83, %c1_84, %c0_85] : memref<18x18x3xf32, #tpu.memory_space<vmem>>, vector<16x16x3xf32>
    %71 = vector.shape_cast %70 : vector<16x16x3xf32> to vector<256x3xf32>
    %72 = arith.truncf %71 : vector<256x3xf32> to vector<256x3xbf16>
    %c0_86 = arith.constant 0 : index
    %c0_87 = arith.constant 0 : index
    %73 = vector.load %arg6[%c0_86, %c0_87] : memref<256x64xf32, #tpu.memory_space<vmem>>, vector<256x64xf32>
    %c7 = arith.constant 7 : index
    %c0_88 = arith.constant 0 : index
    %c0_89 = arith.constant 0 : index
    %74 = vector.load %arg2[%c7, %c0_88, %c0_89] : memref<9x3x64xbf16, #tpu.memory_space<vmem>>, vector<1x3x64xbf16>
    %75 = vector.shape_cast %74 : vector<1x3x64xbf16> to vector<3x64xbf16>
    %cst_90 = arith.constant dense<0.000000e+00> : vector<256x64xf32>
    %76 = tpu.matmul %72, %75, %cst_90 {dimension_numbers = #tpu.dot_dimension_numbers<[1], [0], [0], [1], [0, 0, 1, 1], [], []>} : vector<256x3xbf16>, vector<3x64xbf16>, vector<256x64xf32> -> vector<256x64xf32>
    %77 = arith.addf %73, %76 : vector<256x64xf32>
    %c0_91 = arith.constant 0 : index
    %c0_92 = arith.constant 0 : index
    %78 = vector.load %arg6[%c0_91, %c0_92] : memref<256x64xf32, #tpu.memory_space<vmem>>, vector<256x64xf32>
    tpu.vector_store %arg6[%c0_91, %c0_92], %77 {strides = array<i32>} : memref<256x64xf32, #tpu.memory_space<vmem>>, vector<256x64xf32>,
    %c2_93 = arith.constant 2 : index
    %c2_94 = arith.constant 2 : index
    %c0_95 = arith.constant 0 : index
    %79 = vector.load %arg5[%c2_93, %c2_94, %c0_95] : memref<18x18x3xf32, #tpu.memory_space<vmem>>, vector<16x16x3xf32>
    %80 = vector.shape_cast %79 : vector<16x16x3xf32> to vector<256x3xf32>
    %81 = arith.truncf %80 : vector<256x3xf32> to vector<256x3xbf16>
    %c0_96 = arith.constant 0 : index
    %c0_97 = arith.constant 0 : index
    %82 = vector.load %arg6[%c0_96, %c0_97] : memref<256x64xf32, #tpu.memory_space<vmem>>, vector<256x64xf32>
    %c8 = arith.constant 8 : index
    %c0_98 = arith.constant 0 : index
    %c0_99 = arith.constant 0 : index
    %83 = vector.load %arg2[%c8, %c0_98, %c0_99] : memref<9x3x64xbf16, #tpu.memory_space<vmem>>, vector<1x3x64xbf16>
    %84 = vector.shape_cast %83 : vector<1x3x64xbf16> to vector<3x64xbf16>
    %cst_100 = arith.constant dense<0.000000e+00> : vector<256x64xf32>
    %85 = tpu.matmul %81, %84, %cst_100 {dimension_numbers = #tpu.dot_dimension_numbers<[1], [0], [0], [1], [0, 0, 1, 1], [], []>} : vector<256x3xbf16>, vector<3x64xbf16>, vector<256x64xf32> -> vector<256x64xf32>
    %86 = arith.addf %82, %85 : vector<256x64xf32>
    %c0_101 = arith.constant 0 : index
    %c0_102 = arith.constant 0 : index
    %87 = vector.load %arg6[%c0_101, %c0_102] : memref<256x64xf32, #tpu.memory_space<vmem>>, vector<256x64xf32>
    tpu.vector_store %arg6[%c0_101, %c0_102], %86 {strides = array<i32>} : memref<256x64xf32, #tpu.memory_space<vmem>>, vector<256x64xf32>,
    %c0_103 = arith.constant 0 : index
    %c0_104 = arith.constant 0 : index
    %88 = vector.load %arg6[%c0_103, %c0_104] : memref<256x64xf32, #tpu.memory_space<vmem>>, vector<256x64xf32>
    %c0_105 = arith.constant 0 : index
    %c0_106 = arith.constant 0 : index
    %89 = vector.load %arg3[%c0_105, %c0_106] : memref<1x64xf32, #tpu.memory_space<vmem>>, vector<1x64xf32>
    %90 = vector.broadcast %89 : vector<1x64xf32> to vector<256x64xf32>
    %91 = arith.addf %88, %90 : vector<256x64xf32>
    %cst_107 = arith.constant 0.000000e+00 : f32
    %92 = vector.broadcast %cst_107 : f32 to vector<256x64xf32>
    %93 = arith.maximumf %91, %92 : vector<256x64xf32>
    %c0_108 = arith.constant 0 : index
    %c0_109 = arith.constant 0 : index
    %c0_110 = arith.constant 0 : index
    %94 = vector.load %arg4[%c0_108, %c0_109, %c0_110] : memref<1x256x64xf32, #tpu.memory_space<vmem>>, vector<1x256x64xf32>
    %95 = vector.shape_cast %94 : vector<1x256x64xf32> to vector<256x64xf32>
    %96 = vector.shape_cast %93 : vector<256x64xf32> to vector<1x256x64xf32>
    tpu.vector_store %arg4[%c0_108, %c0_109, %c0_110], %96 {strides = array<i32>} : memref<1x256x64xf32, #tpu.memory_space<vmem>>, vector<1x256x64xf32>,
    return
  }
  func.func @transform_0(%arg0: i32) -> (i32, i32, i32, i32) {
    %c0_i32 = arith.constant 0 : i32
    %c0_i32_0 = arith.constant 0 : i32
    %c0_i32_1 = arith.constant 0 : i32
    %c0_i32_2 = arith.constant 0 : i32
    return %arg0, %c0_i32, %c0_i32_0, %c0_i32_1 : i32, i32, i32, i32
  }
  func.func @transform_1(%arg0: i32) -> (i32, i32, i32) {
    %c0_i32 = arith.constant 0 : i32
    %c0_i32_0 = arith.constant 0 : i32
    %c0_i32_1 = arith.constant 0 : i32
    %c0_i32_2 = arith.constant 0 : i32
    return %c0_i32, %c0_i32_0, %c0_i32_1 : i32, i32, i32
  }
  func.func @transform_2(%arg0: i32) -> (i32, i32) {
    %c0_i32 = arith.constant 0 : i32
    %c0_i32_0 = arith.constant 0 : i32
    %c0_i32_1 = arith.constant 0 : i32
    return %c0_i32, %c0_i32_0 : i32, i32
  }
  func.func @transform_3(%arg0: i32) -> (i32, i32, i32) {
    %c0_i32 = arith.constant 0 : i32
    %c0_i32_0 = arith.constant 0 : i32
    %c0_i32_1 = arith.constant 0 : i32
    return %arg0, %c0_i32, %c0_i32_0 : i32, i32, i32
  }
}

</mosaic_0001>

<llo_original>
// kernel: tpu_custom_call.1
$region0: #{tpu_custom_call.1}
  #allocation0 [shape = 'u32[]', space=smem, size = 0x4, offset = 0x4, fixed_abs, tag = 'smem constant byte address 0x4 - core index']
  #allocation1 [shape = 'u32[144,128]{1,0:T(1,128)}', space=vmem, size = 0x12000, scoped, tag = 'internal scratch']
  #allocation2 [shape = 'f32[18,18,3]{2,1,0:T(8,128)}', space=vmem, size = 0x36000, scoped, tag = 'scratch operand']
  #allocation3 [shape = 'f32[256,64]{1,0:T(8,128)}', space=vmem, size = 0x20000, scoped, tag = 'scratch operand']
  %s0 = inlined_call_operand.vmem [shape: f32[6,16,16,3], index: 0, kind: input, shape index: {}]
  %s1 = inlined_call_operand.vmem [shape: bf16[9,3,64], index: 1, kind: input, shape index: {}]
  %s2 = inlined_call_operand.vmem [shape: f32[1,64], index: 2, kind: input, shape index: {}]
  %s3 = inlined_call_operand.vmem [shape: f32[6,256,64], index: 3, kind: output, shape index: {}]
  %s4 = sld [smem:[#allocation0]]
  $region45: #{tpu_custom_call.1} parent=0
    _
  %s6 = ssub.s32 1, %s4
  %s7 = scalar_select 0, %s6, %s4
  loop: start=0, step=1, limit=8
  $region2: #{tpu_custom_call.1} parent=0 // loop_pre_header
    _
  $region3: #{tpu_custom_call.1} parent=0 // loop_header
    %s9 = sphi 0, %s13
    %p10 = scmp.ge.s32.totalorder %s9, 8
    %s19 = sphi 0, %s21
    %s22 = sphi 0, %s19
    %s23 = sphi 0, %s22
    %s39 = sphi 0, %s23
    %s43 = sphi 0, %s43
    %s45 = sphi 0, %s43
    %s46 = sphi 0, %s45
    %s60 = sphi 0, %s46
    %s64 = sphi 0, %s64
    %s66 = sphi 0, %s64
    %s67 = sphi 0, %s66
    %s81 = sphi 0, %s67
    %s87 = sphi 0, %s89
    %s90 = sphi 0, %s87
    %s91 = sphi 0, %s90
    %s107 = sphi 0, %s91
  $region4: #{tpu_custom_call.1} parent=0 // loop_header_branch
    %12 = sbr.rel (%p10) target = $region8
  $region5: #{tpu_custom_call.1} parent=0 // loop_body
    %s14 = ssub.s32 %s9, 1
    %s15 = ssub.s32 %s9, 2
    %s16 = sadd.s32 %s9, 1
    %s17 = ssub.s32 %s9, %s16
    %p18 = scmp.eq.s32.totalorder %s17, 0
    %s20 = sadd.s32 %s19, 1
    %s21 = scalar_select %p18, %s19, %s20
    %p24 = pneg %p18
    %p25 = scmp.eq.s32.totalorder %s9, 5
    %p26 = por %p24, %p25
    %p27 = scmp.ne.s32.totalorder %s19, %s22
    %p28 = scmp.eq.s32.totalorder %s9, 0
    %p29 = por %p27, %p28
    %p30 = scmp.ne.s32.totalorder %s19, %s22
    %p31 = scmp.eq.s32.totalorder %s14, 5
    %p32 = por %p30, %p31
    %p33 = scmp.ne.s32.totalorder %s22, %s23
    %p34 = scmp.eq.s32.totalorder %s14, 0
    %p35 = por %p33, %p34
    %p36 = scmp.ne.s32.totalorder %s22, %s23
    %p37 = scmp.eq.s32.totalorder %s15, 5
    %p38 = por %p36, %p37
    %p40 = scmp.ne.s32.totalorder %s23, %s39
    %p41 = scmp.eq.s32.totalorder %s15, 0
    %p42 = por %p40, %p41
    %s44 = sadd.s32 %s43, 1
    %p47 = scmp.eq.s32.totalorder %s9, 5
    %p48 = scmp.ne.s32.totalorder %s43, %s45
    %p49 = scmp.eq.s32.totalorder %s9, 0
    %p50 = por %p48, %p49
    %p51 = scmp.ne.s32.totalorder %s43, %s45
    %p52 = scmp.eq.s32.totalorder %s14, 5
    %p53 = por %p51, %p52
    %p54 = scmp.ne.s32.totalorder %s45, %s46
    %p55 = scmp.eq.s32.totalorder %s14, 0
    %p56 = por %p54, %p55
    %p57 = scmp.ne.s32.totalorder %s45, %s46
    %p58 = scmp.eq.s32.totalorder %s15, 5
    %p59 = por %p57, %p58
    %p61 = scmp.ne.s32.totalorder %s46, %s60
    %p62 = scmp.eq.s32.totalorder %s15, 0
    %p63 = por %p61, %p62
    %s65 = sadd.s32 %s64, 1
    %p68 = scmp.eq.s32.totalorder %s9, 5
    %p69 = scmp.ne.s32.totalorder %s64, %s66
    %p70 = scmp.eq.s32.totalorder %s9, 0
    %p71 = por %p69, %p70
    %p72 = scmp.ne.s32.totalorder %s64, %s66
    %p73 = scmp.eq.s32.totalorder %s14, 5
    %p74 = por %p72, %p73
    %p75 = scmp.ne.s32.totalorder %s66, %s67
    %p76 = scmp.eq.s32.totalorder %s14, 0
    %p77 = por %p75, %p76
    %p78 = scmp.ne.s32.totalorder %s66, %s67
    %p79 = scmp.eq.s32.totalorder %s15, 5
    %p80 = por %p78, %p79
    %p82 = scmp.ne.s32.totalorder %s67, %s81
    %p83 = scmp.eq.s32.totalorder %s15, 0
    %p84 = por %p82, %p83
    %s85 = ssub.s32 %s9, %s16
    %p86 = scmp.eq.s32.totalorder %s85, 0
    %s88 = sadd.s32 %s87, 1
    %s89 = scalar_select %p86, %s87, %s88
    %p92 = pneg %p86
    %p93 = scmp.eq.s32.totalorder %s9, 5
    %p94 = por %p92, %p93
    %p95 = scmp.ne.s32.totalorder %s87, %s90
    %p96 = scmp.eq.s32.totalorder %s9, 0
    %p97 = por %p95, %p96
    %p98 = scmp.ne.s32.totalorder %s87, %s90
    %p99 = scmp.eq.s32.totalorder %s14, 5
    %p100 = por %p98, %p99
    %p101 = scmp.ne.s32.totalorder %s90, %s91
    %p102 = scmp.eq.s32.totalorder %s14, 0
    %p103 = por %p101, %p102
    %p104 = scmp.ne.s32.totalorder %s90, %s91
    %p105 = scmp.eq.s32.totalorder %s15, 5
    %p106 = por %p104, %p105
    %p108 = scmp.ne.s32.totalorder %s91, %s107
    %p109 = scmp.eq.s32.totalorder %s15, 0
    %p110 = por %p108, %p109
    %p111 = scmp.le.s32.totalorder 1, %s9
    %p112 = scmp.lt.s32.totalorder %s9, 7
    %p113 = pnand %p111, %p112
    %p114 = pneg %p113
    // Predicated region
    $region9: #{tpu_custom_call.1} parent=5 // pred_check
      _
    $region10: #{tpu_custom_call.1} parent=5 // pred_check_branch
      %116 = sbr.rel (%p113) target = $region12
    $region11: #{tpu_custom_call.1} parent=5 // pred_region
      %s117 = ssub.s32 %s9, 1
      // Predicated region
      $region13: #{tpu_custom_call.1} parent=11 // pred_check
        %p118 = pneg %p56
      $region14: #{tpu_custom_call.1} parent=11 // pred_check_branch
        %120 = sbr.rel (%p118) target = $region16
      $region15: #{tpu_custom_call.1} parent=11 // pred_region
        _
      $region16: #{tpu_custom_call.1} parent=11 // pred_fallthru
        _
      // Predicated region
      $region17: #{tpu_custom_call.1} parent=11 // pred_check
        %p121 = pneg %p77
      $region18: #{tpu_custom_call.1} parent=11 // pred_check_branch
        %123 = sbr.rel (%p121) target = $region20
      $region19: #{tpu_custom_call.1} parent=11 // pred_region
        _
      $region20: #{tpu_custom_call.1} parent=11 // pred_fallthru
        _
    $region12: #{tpu_custom_call.1} parent=5 // pred_fallthru
      _
    %p124 = scmp.lt.s32.totalorder %s9, 6
    // Predicated region
    $region21: #{tpu_custom_call.1} parent=5 // pred_check
      %p125 = pneg %p124
    $region22: #{tpu_custom_call.1} parent=5 // pred_check_branch
      %127 = sbr.rel (%p125) target = $region24
    $region23: #{tpu_custom_call.1} parent=5 // pred_region
      // Predicated region
      $region25: #{tpu_custom_call.1} parent=23 // pred_check
        %p128 = pneg %p29
      $region26: #{tpu_custom_call.1} parent=23 // pred_check_branch
        %130 = sbr.rel (%p128) target = $region28
      $region27: #{tpu_custom_call.1} parent=23 // pred_region
        %p131 = scmp.lt.s32.totalorder %s9, 5
        %s132 = scalar_select %p131, %s9, 5
        %s133 = smul.addr %s132, 32
        %s134 = smul.addr %s133, 8
        %s135 = scalar_lea.vmem %s0, %s134
      $region28: #{tpu_custom_call.1} parent=23 // pred_fallthru
        _
    $region24: #{tpu_custom_call.1} parent=5 // pred_fallthru
      _
    %p136 = scmp.le.s32.totalorder 1, %s9
    %p137 = scmp.lt.s32.totalorder %s9, 7
    %p138 = pnand %p136, %p137
    %p139 = pneg %p138
    // Predicated region
    $region29: #{tpu_custom_call.1} parent=5 // pred_check
      _
    $region30: #{tpu_custom_call.1} parent=5 // pred_check_branch
      %141 = sbr.rel (%p138) target = $region32
    $region31: #{tpu_custom_call.1} parent=5 // pred_region
      %s142 = ssub.s32 %s9, 1
      %p143 = scmp.lt.s32.totalorder %s14, 5
      %s144 = scalar_select %p143, %s14, 5
      %s145 = smul.addr %s144, 32
      %s146 = smul.addr %s145, 8
      %s147 = scalar_lea.vmem %s0, %s146
      %p148 = pneg %p35
      %p149 = pneg %p32
      %p150 = pneg %p56
      %p151 = pneg %p53
      %p152 = pneg %p77
      %p153 = pneg %p74
      %p154 = pneg %p103
      %p155 = pneg %p100
      %p156 = scmp.lt.s32.totalorder %s14, 5
      %s157 = scalar_select %p156, %s14, 5
      %s158 = smul.addr %s157, 32
      %s159 = smul.addr %s158, 8
      %s160 = scalar_lea.vmem %s3, %s159
      %p161 = scmp.lt.s32.totalorder %s14, 5
      %s162 = scalar_select %p161, %s14, 5
      %s163 = smul.addr %s162, 32
      %s164 = smul.addr %s163, 8
      %s165 = scalar_lea.vmem %s0, %s164
      %p166 = scmp.lt.s32.totalorder %s14, 5
      %s167 = scalar_select %p166, %s14, 5
      %s168 = smul.addr %s167, 32
      %s169 = smul.addr %s168, 8
      %s170 = scalar_lea.vmem %s3, %s169
      %v172 = vld [vmem:[%s165] sm:$0xff]
      %v173 = vld [vmem:[%s165 + $0x8] sm:$0xff]
      %v174 = vld [vmem:[%s165 + $0x10] sm:$0xff]
      %v175 = vld [vmem:[%s165 + $0x18] sm:$0xff]
      %v176 = vld [vmem:[%s165 + $0x20] sm:$0xff]
      %v177 = vld [vmem:[%s165 + $0x28] sm:$0xff]
      %v178 = vld [vmem:[%s165 + $0x30] sm:$0xff]
      %v179 = vld [vmem:[%s165 + $0x38] sm:$0xff]
      %v180 = vld [vmem:[%s165 + $0x40] sm:$0xff]
      %v181 = vld [vmem:[%s165 + $0x48] sm:$0xff]
      %v182 = vld [vmem:[%s165 + $0x50] sm:$0xff]
      %v183 = vld [vmem:[%s165 + $0x58] sm:$0xff]
      %v184 = vld [vmem:[%s165 + $0x60] sm:$0xff]
      %v185 = vld [vmem:[%s165 + $0x68] sm:$0xff]
      %v186 = vld [vmem:[%s165 + $0x70] sm:$0xff]
      %v187 = vld [vmem:[%s165 + $0x78] sm:$0xff]
      %v188 = vld [vmem:[%s165 + $0x80] sm:$0xff]
      %v189 = vld [vmem:[%s165 + $0x88] sm:$0xff]
      %v190 = vld [vmem:[%s165 + $0x90] sm:$0xff]
      %v191 = vld [vmem:[%s165 + $0x98] sm:$0xff]
      %v192 = vld [vmem:[%s165 + $0xa0] sm:$0xff]
      %v193 = vld [vmem:[%s165 + $0xa8] sm:$0xff]
      %v194 = vld [vmem:[%s165 + $0xb0] sm:$0xff]
      %v195 = vld [vmem:[%s165 + $0xb8] sm:$0xff]
      %v196 = vld [vmem:[%s165 + $0xc0] sm:$0xff]
      %v197 = vld [vmem:[%s165 + $0xc8] sm:$0xff]
      %v198 = vld [vmem:[%s165 + $0xd0] sm:$0xff]
      %v199 = vld [vmem:[%s165 + $0xd8] sm:$0xff]
      %v200 = vld [vmem:[%s165 + $0xe0] sm:$0xff]
      %v201 = vld [vmem:[%s165 + $0xe8] sm:$0xff]
      %v202 = vld [vmem:[%s165 + $0xf0] sm:$0xff]
      %v203 = vld [vmem:[%s165 + $0xf8] sm:$0xff]
      %vm204 = vcmask 23552
      %205 = vst.msk [vmem:[#allocation2] sm:$0xff] %vm204, 0.0
      %206 = vst.msk [vmem:[#allocation2 + $0x8] sm:$0xff] %vm204, 0.0
      %vm207 = vcmask 17408
      %208 = vst.msk [vmem:[#allocation2 + $0x10] sm:$0x3] %vm207, 0.0
      %209 = vst.msk [vmem:[#allocation2 + $0x18] sm:$0xff] %vm204, 0.0
      %210 = vst.msk [vmem:[#allocation2 + $0x20] sm:$0xff] %vm204, 0.0
      %211 = vst.msk [vmem:[#allocation2 + $0x28] sm:$0x3] %vm207, 0.0
      %212 = vst.msk [vmem:[#allocation2 + $0x30] sm:$0xff] %vm204, 0.0
      %213 = vst.msk [vmem:[#allocation2 + $0x38] sm:$0xff] %vm204, 0.0
      %214 = vst.msk [vmem:[#allocation2 + $0x40] sm:$0x3] %vm207, 0.0
      %215 = vst.msk [vmem:[#allocation2 + $0x48] sm:$0xff] %vm204, 0.0
      %216 = vst.msk [vmem:[#allocation2 + $0x50] sm:$0xff] %vm204, 0.0
      %217 = vst.msk [vmem:[#allocation2 + $0x58] sm:$0x3] %vm207, 0.0
      %218 = vst.msk [vmem:[#allocation2 + $0x60] sm:$0xff] %vm204, 0.0
      %219 = vst.msk [vmem:[#allocation2 + $0x68] sm:$0xff] %vm204, 0.0
      %220 = vst.msk [vmem:[#allocation2 + $0x70] sm:$0x3] %vm207, 0.0
      %221 = vst.msk [vmem:[#allocation2 + $0x78] sm:$0xff] %vm204, 0.0
      %222 = vst.msk [vmem:[#allocation2 + $0x80] sm:$0xff] %vm204, 0.0
      %223 = vst.msk [vmem:[#allocation2 + $0x88] sm:$0x3] %vm207, 0.0
      %224 = vst.msk [vmem:[#allocation2 + $0x90] sm:$0xff] %vm204, 0.0
      %225 = vst.msk [vmem:[#allocation2 + $0x98] sm:$0xff] %vm204, 0.0
      %226 = vst.msk [vmem:[#allocation2 + $0xa0] sm:$0x3] %vm207, 0.0
      %227 = vst.msk [vmem:[#allocation2 + $0xa8] sm:$0xff] %vm204, 0.0
      %228 = vst.msk [vmem:[#allocation2 + $0xb0] sm:$0xff] %vm204, 0.0
      %229 = vst.msk [vmem:[#allocation2 + $0xb8] sm:$0x3] %vm207, 0.0
      %230 = vst.msk [vmem:[#allocation2 + $0xc0] sm:$0xff] %vm204, 0.0
      %231 = vst.msk [vmem:[#allocation2 + $0xc8] sm:$0xff] %vm204, 0.0
      %232 = vst.msk [vmem:[#allocation2 + $0xd0] sm:$0x3] %vm207, 0.0
      %233 = vst.msk [vmem:[#allocation2 + $0xd8] sm:$0xff] %vm204, 0.0
      %234 = vst.msk [vmem:[#allocation2 + $0xe0] sm:$0xff] %vm204, 0.0
      %235 = vst.msk [vmem:[#allocation2 + $0xe8] sm:$0x3] %vm207, 0.0
      %236 = vst.msk [vmem:[#allocation2 + $0xf0] sm:$0xff] %vm204, 0.0
      %237 = vst.msk [vmem:[#allocation2 + $0xf8] sm:$0xff] %vm204, 0.0
      %238 = vst.msk [vmem:[#allocation2 + $0x100] sm:$0x3] %vm207, 0.0
      %239 = vst.msk [vmem:[#allocation2 + $0x108] sm:$0xff] %vm204, 0.0
      %240 = vst.msk [vmem:[#allocation2 + $0x110] sm:$0xff] %vm204, 0.0
      %241 = vst.msk [vmem:[#allocation2 + $0x118] sm:$0x3] %vm207, 0.0
      %242 = vst.msk [vmem:[#allocation2 + $0x120] sm:$0xff] %vm204, 0.0
      %243 = vst.msk [vmem:[#allocation2 + $0x128] sm:$0xff] %vm204, 0.0
      %244 = vst.msk [vmem:[#allocation2 + $0x130] sm:$0x3] %vm207, 0.0
      %245 = vst.msk [vmem:[#allocation2 + $0x138] sm:$0xff] %vm204, 0.0
      %246 = vst.msk [vmem:[#allocation2 + $0x140] sm:$0xff] %vm204, 0.0
      %247 = vst.msk [vmem:[#allocation2 + $0x148] sm:$0x3] %vm207, 0.0
      %248 = vst.msk [vmem:[#allocation2 + $0x150] sm:$0xff] %vm204, 0.0
      %249 = vst.msk [vmem:[#allocation2 + $0x158] sm:$0xff] %vm204, 0.0
      %250 = vst.msk [vmem:[#allocation2 + $0x160] sm:$0x3] %vm207, 0.0
      %251 = vst.msk [vmem:[#allocation2 + $0x168] sm:$0xff] %vm204, 0.0
      %252 = vst.msk [vmem:[#allocation2 + $0x170] sm:$0xff] %vm204, 0.0
      %253 = vst.msk [vmem:[#allocation2 + $0x178] sm:$0x3] %vm207, 0.0
      %254 = vst.msk [vmem:[#allocation2 + $0x180] sm:$0xff] %vm204, 0.0
      %255 = vst.msk [vmem:[#allocation2 + $0x188] sm:$0xff] %vm204, 0.0
      %256 = vst.msk [vmem:[#allocation2 + $0x190] sm:$0x3] %vm207, 0.0
      %257 = vst.msk [vmem:[#allocation2 + $0x198] sm:$0xff] %vm204, 0.0
      %258 = vst.msk [vmem:[#allocation2 + $0x1a0] sm:$0xff] %vm204, 0.0
      %259 = vst.msk [vmem:[#allocation2 + $0x1a8] sm:$0x3] %vm207, 0.0
      %s260 = scalar_lea.vmem [#allocation2], 24
      %261 = vst.msk [vmem:[%s260 + $0x1] sm:$0xff] %vm204, %v172
      %262 = vst.msk [vmem:[%s260 + $0x9] sm:$0xff] %vm204, %v173
      %263 = vst.msk [vmem:[%s260 + $0x19] sm:$0xff] %vm204, %v174
      %264 = vst.msk [vmem:[%s260 + $0x21] sm:$0xff] %vm204, %v175
      %265 = vst.msk [vmem:[%s260 + $0x31] sm:$0xff] %vm204, %v176
      %266 = vst.msk [vmem:[%s260 + $0x39] sm:$0xff] %vm204, %v177
      %267 = vst.msk [vmem:[%s260 + $0x49] sm:$0xff] %vm204, %v178
      %268 = vst.msk [vmem:[%s260 + $0x51] sm:$0xff] %vm204, %v179
      %269 = vst.msk [vmem:[%s260 + $0x61] sm:$0xff] %vm204, %v180
      %270 = vst.msk [vmem:[%s260 + $0x69] sm:$0xff] %vm204, %v181
      %271 = vst.msk [vmem:[%s260 + $0x79] sm:$0xff] %vm204, %v182
      %272 = vst.msk [vmem:[%s260 + $0x81] sm:$0xff] %vm204, %v183
      %273 = vst.msk [vmem:[%s260 + $0x91] sm:$0xff] %vm204, %v184
      %274 = vst.msk [vmem:[%s260 + $0x99] sm:$0xff] %vm204, %v185
      %275 = vst.msk [vmem:[%s260 + $0xa9] sm:$0xff] %vm204, %v186
      %276 = vst.msk [vmem:[%s260 + $0xb1] sm:$0xff] %vm204, %v187
      %277 = vst.msk [vmem:[%s260 + $0xc1] sm:$0xff] %vm204, %v188
      %278 = vst.msk [vmem:[%s260 + $0xc9] sm:$0xff] %vm204, %v189
      %279 = vst.msk [vmem:[%s260 + $0xd9] sm:$0xff] %vm204, %v190
      %280 = vst.msk [vmem:[%s260 + $0xe1] sm:$0xff] %vm204, %v191
      %281 = vst.msk [vmem:[%s260 + $0xf1] sm:$0xff] %vm204, %v192
      %282 = vst.msk [vmem:[%s260 + $0xf9] sm:$0xff] %vm204, %v193
      %283 = vst.msk [vmem:[%s260 + $0x109] sm:$0xff] %vm204, %v194
      %284 = vst.msk [vmem:[%s260 + $0x111] sm:$0xff] %vm204, %v195
      %285 = vst.msk [vmem:[%s260 + $0x121] sm:$0xff] %vm204, %v196
      %286 = vst.msk [vmem:[%s260 + $0x129] sm:$0xff] %vm204, %v197
      %287 = vst.msk [vmem:[%s260 + $0x139] sm:$0xff] %vm204, %v198
      %288 = vst.msk [vmem:[%s260 + $0x141] sm:$0xff] %vm204, %v199
      %289 = vst.msk [vmem:[%s260 + $0x151] sm:$0xff] %vm204, %v200
      %290 = vst.msk [vmem:[%s260 + $0x159] sm:$0xff] %vm204, %v201
      %291 = vst.msk [vmem:[%s260 + $0x169] sm:$0xff] %vm204, %v202
      %292 = vst.msk [vmem:[%s260 + $0x171] sm:$0xff] %vm204, %v203
      %vm293 = vcmask 523264
      %294 = vst.msk [vmem:[#allocation3] sm:$0xff] %vm293, 0.0
      %295 = vst.msk [vmem:[#allocation3 + $0x8] sm:$0xff] %vm293, 0.0
      %296 = vst.msk [vmem:[#allocation3 + $0x10] sm:$0xff] %vm293, 0.0
      %297 = vst.msk [vmem:[#allocation3 + $0x18] sm:$0xff] %vm293, 0.0
      %298 = vst.msk [vmem:[#allocation3 + $0x20] sm:$0xff] %vm293, 0.0
      %299 = vst.msk [vmem:[#allocation3 + $0x28] sm:$0xff] %vm293, 0.0
      %300 = vst.msk [vmem:[#allocation3 + $0x30] sm:$0xff] %vm293, 0.0
      %301 = vst.msk [vmem:[#allocation3 + $0x38] sm:$0xff] %vm293, 0.0
      %302 = vst.msk [vmem:[#allocation3 + $0x40] sm:$0xff] %vm293, 0.0
      %303 = vst.msk [vmem:[#allocation3 + $0x48] sm:$0xff] %vm293, 0.0
      %304 = vst.msk [vmem:[#allocation3 + $0x50] sm:$0xff] %vm293, 0.0
      %305 = vst.msk [vmem:[#allocation3 + $0x58] sm:$0xff] %vm293, 0.0
      %306 = vst.msk [vmem:[#allocation3 + $0x60] sm:$0xff] %vm293, 0.0
      %307 = vst.msk [vmem:[#allocation3 + $0x68] sm:$0xff] %vm293, 0.0
      %308 = vst.msk [vmem:[#allocation3 + $0x70] sm:$0xff] %vm293, 0.0
      %309 = vst.msk [vmem:[#allocation3 + $0x78] sm:$0xff] %vm293, 0.0
      %310 = vst.msk [vmem:[#allocation3 + $0x80] sm:$0xff] %vm293, 0.0
      %311 = vst.msk [vmem:[#allocation3 + $0x88] sm:$0xff] %vm293, 0.0
      %312 = vst.msk [vmem:[#allocation3 + $0x90] sm:$0xff] %vm293, 0.0
      %313 = vst.msk [vmem:[#allocation3 + $0x98] sm:$0xff] %vm293, 0.0
      %314 = vst.msk [vmem:[#allocation3 + $0xa0] sm:$0xff] %vm293, 0.0
      %315 = vst.msk [vmem:[#allocation3 + $0xa8] sm:$0xff] %vm293, 0.0
      %316 = vst.msk [vmem:[#allocation3 + $0xb0] sm:$0xff] %vm293, 0.0
      %317 = vst.msk [vmem:[#allocation3 + $0xb8] sm:$0xff] %vm293, 0.0
      %318 = vst.msk [vmem:[#allocation3 + $0xc0] sm:$0xff] %vm293, 0.0
      %319 = vst.msk [vmem:[#allocation3 + $0xc8] sm:$0xff] %vm293, 0.0
      %320 = vst.msk [vmem:[#allocation3 + $0xd0] sm:$0xff] %vm293, 0.0
      %321 = vst.msk [vmem:[#allocation3 + $0xd8] sm:$0xff] %vm293, 0.0
      %322 = vst.msk [vmem:[#allocation3 + $0xe0] sm:$0xff] %vm293, 0.0
      %323 = vst.msk [vmem:[#allocation3 + $0xe8] sm:$0xff] %vm293, 0.0
      %324 = vst.msk [vmem:[#allocation3 + $0xf0] sm:$0xff] %vm293, 0.0
      %325 = vst.msk [vmem:[#allocation3 + $0xf8] sm:$0xff] %vm293, 0.0
      %v326 = vld [vmem:[#allocation2] sm:$0xff]
      %v327 = vld [vmem:[#allocation2 + $0x8] sm:$0xff]
      %v328 = vld [vmem:[#allocation2 + $0x18] sm:$0xff]
      %v329 = vld [vmem:[#allocation2 + $0x20] sm:$0xff]
      %v330 = vld [vmem:[#allocation2 + $0x30] sm:$0xff]
      %v331 = vld [vmem:[#allocation2 + $0x38] sm:$0xff]
      %v332 = vld [vmem:[#allocation2 + $0x48] sm:$0xff]
      %v333 = vld [vmem:[#allocation2 + $0x50] sm:$0xff]
      %v334 = vld [vmem:[#allocation2 + $0x60] sm:$0xff]
      %v335 = vld [vmem:[#allocation2 + $0x68] sm:$0xff]
      %v336 = vld [vmem:[#allocation2 + $0x78] sm:$0xff]
      %v337 = vld [vmem:[#allocation2 + $0x80] sm:$0xff]
      %v338 = vld [vmem:[#allocation2 + $0x90] sm:$0xff]
      %v339 = vld [vmem:[#allocation2 + $0x98] sm:$0xff]
      %v340 = vld [vmem:[#allocation2 + $0xa8] sm:$0xff]
      %v341 = vld [vmem:[#allocation2 + $0xb0] sm:$0xff]
      %v342 = vld [vmem:[#allocation2 + $0xc0] sm:$0xff]
      %v343 = vld [vmem:[#allocation2 + $0xc8] sm:$0xff]
      %v344 = vld [vmem:[#allocation2 + $0xd8] sm:$0xff]
      %v345 = vld [vmem:[#allocation2 + $0xe0] sm:$0xff]
      %v346 = vld [vmem:[#allocation2 + $0xf0] sm:$0xff]
      %v347 = vld [vmem:[#allocation2 + $0xf8] sm:$0xff]
      %v348 = vld [vmem:[#allocation2 + $0x108] sm:$0xff]
      %v349 = vld [vmem:[#allocation2 + $0x110] sm:$0xff]
      %v350 = vld [vmem:[#allocation2 + $0x120] sm:$0xff]
      %v351 = vld [vmem:[#allocation2 + $0x128] sm:$0xff]
      %v352 = vld [vmem:[#allocation2 + $0x138] sm:$0xff]
      %v353 = vld [vmem:[#allocation2 + $0x140] sm:$0xff]
      %v354 = vld [vmem:[#allocation2 + $0x150] sm:$0xff]
      %v355 = vld [vmem:[#allocation2 + $0x158] sm:$0xff]
      %v356 = vld [vmem:[#allocation2 + $0x168] sm:$0xff]
      %v357 = vld [vmem:[#allocation2 + $0x170] sm:$0xff]
      %v358 = vpack.c.bf16 %v327, %v326
      %v359 = vpack.c.bf16 %v329, %v328
      %v360 = vpack.c.bf16 %v331, %v330
      %v361 = vpack.c.bf16 %v333, %v332
      %v362 = vpack.c.bf16 %v335, %v334
      %v363 = vpack.c.bf16 %v337, %v336
      %v364 = vpack.c.bf16 %v339, %v338
      %v365 = vpack.c.bf16 %v341, %v340
      %v366 = vpack.c.bf16 %v343, %v342
      %v367 = vpack.c.bf16 %v345, %v344
      %v368 = vpack.c.bf16 %v347, %v346
      %v369 = vpack.c.bf16 %v349, %v348
      %v370 = vpack.c.bf16 %v351, %v350
      %v371 = vpack.c.bf16 %v353, %v352
      %v372 = vpack.c.bf16 %v355, %v354
      %v373 = vpack.c.bf16 %v357, %v356
      %v374 = vld [vmem:[#allocation3] sm:$0xff]
      %v375 = vld [vmem:[#allocation3 + $0x8] sm:$0xff]
      %v376 = vld [vmem:[#allocation3 + $0x10] sm:$0xff]
      %v377 = vld [vmem:[#allocation3 + $0x18] sm:$0xff]
      %v378 = vld [vmem:[#allocation3 + $0x20] sm:$0xff]
      %v379 = vld [vmem:[#allocation3 + $0x28] sm:$0xff]
      %v380 = vld [vmem:[#allocation3 + $0x30] sm:$0xff]
      %v381 = vld [vmem:[#allocation3 + $0x38] sm:$0xff]
      %v382 = vld [vmem:[#allocation3 + $0x40] sm:$0xff]
      %v383 = vld [vmem:[#allocation3 + $0x48] sm:$0xff]
      %v384 = vld [vmem:[#allocation3 + $0x50] sm:$0xff]
      %v385 = vld [vmem:[#allocation3 + $0x58] sm:$0xff]
      %v386 = vld [vmem:[#allocation3 + $0x60] sm:$0xff]
      %v387 = vld [vmem:[#allocation3 + $0x68] sm:$0xff]
      %v388 = vld [vmem:[#allocation3 + $0x70] sm:$0xff]
      %v389 = vld [vmem:[#allocation3 + $0x78] sm:$0xff]
      %v390 = vld [vmem:[#allocation3 + $0x80] sm:$0xff]
      %v391 = vld [vmem:[#allocation3 + $0x88] sm:$0xff]
      %v392 = vld [vmem:[#allocation3 + $0x90] sm:$0xff]
      %v393 = vld [vmem:[#allocation3 + $0x98] sm:$0xff]
      %v394 = vld [vmem:[#allocation3 + $0xa0] sm:$0xff]
      %v395 = vld [vmem:[#allocation3 + $0xa8] sm:$0xff]
      %v396 = vld [vmem:[#allocation3 + $0xb0] sm:$0xff]
      %v397 = vld [vmem:[#allocation3 + $0xb8] sm:$0xff]
      %v398 = vld [vmem:[#allocation3 + $0xc0] sm:$0xff]
      %v399 = vld [vmem:[#allocation3 + $0xc8] sm:$0xff]
      %v400 = vld [vmem:[#allocation3 + $0xd0] sm:$0xff]
      %v401 = vld [vmem:[#allocation3 + $0xd8] sm:$0xff]
      %v402 = vld [vmem:[#allocation3 + $0xe0] sm:$0xff]
      %v403 = vld [vmem:[#allocation3 + $0xe8] sm:$0xff]
      %v404 = vld [vmem:[#allocation3 + $0xf0] sm:$0xff]
      %v405 = vld [vmem:[#allocation3 + $0xf8] sm:$0xff]
      %v406 = vld [vmem:[%s1] sm:$0x3]
      %v408 = vsel %vm204, %v358, 0
      %v411 = vsel %vm204, %v359, 0
      %v414 = vsel %vm204, %v360, 0
      %v417 = vsel %vm204, %v361, 0
      %v420 = vsel %vm204, %v362, 0
      %v423 = vsel %vm204, %v363, 0
      %v426 = vsel %vm204, %v364, 0
      %v429 = vsel %vm204, %v365, 0
      %v432 = vsel %vm204, %v366, 0
      %v435 = vsel %vm204, %v367, 0
      %v438 = vsel %vm204, %v368, 0
      %v441 = vsel %vm204, %v369, 0
      %v444 = vsel %vm204, %v370, 0
      %v447 = vsel %vm204, %v371, 0
      %v450 = vsel %vm204, %v372, 0
      %v453 = vsel %vm204, %v373, 0
      %vm455 = vcmask 1040384
      %vm456 = vcmask 1041408
      %v457 = vsel %vm455, 4294967295, 65535
      %v458 = vsel %vm456, %v457, 0
      %v460 = vand.u32 %v406, %v458
      %462 = vmatprep.subr.bf16.mxu0 0
      %463 = vmatpush1.bf16.msra.mxu0 %v460
      %464 = vmatprep.subr.bf16.mxu0 0
      %465 = vmatpush1.bf16.msra.mxu0 0
      %466 = vmatprep.subr.bf16.mxu0 0
      %467 = vmatpush1.bf16.msra.mxu0 0
      %468 = vmatprep.subr.bf16.mxu0 0
      %469 = vmatpush1.bf16.msra.mxu0 0
      %470 = vmatprep.subr.bf16.mxu0 0
      %471 = vmatpush1.bf16.msra.mxu0 0
      %472 = vmatprep.subr.bf16.mxu0 0
      %473 = vmatpush1.bf16.msra.mxu0 0
      %474 = vmatprep.subr.bf16.mxu0 0
      %475 = vmatpush1.bf16.msra.mxu0 0
      %476 = vmatprep.subr.bf16.mxu0 0
      %477 = vmatpush1.bf16.msra.mxu0 0
      %478 = vmatprep.subr.bf16.mxu0 0
      %479 = vmatpush1.bf16.msra.mxu0 0
      %480 = vmatprep.subr.bf16.mxu0 0
      %481 = vmatpush1.bf16.msra.mxu0 0
      %482 = vmatprep.subr.bf16.mxu0 0
      %483 = vmatpush1.bf16.msra.mxu0 0
      %484 = vmatprep.subr.bf16.mxu0 0
      %485 = vmatpush1.bf16.msra.mxu0 0
      %486 = vmatprep.subr.bf16.mxu0 0
      %487 = vmatpush1.bf16.msra.mxu0 0
      %488 = vmatprep.subr.bf16.mxu0 0
      %489 = vmatpush1.bf16.msra.mxu0 0
      %490 = vmatprep.subr.bf16.mxu0 0
      %491 = vmatpush1.bf16.msra.mxu0 0
      %492 = vmatprep.subr.bf16.mxu0 0
      %493 = vmatpush1.bf16.msra.mxu0 0
      %494 = vmatprep.mubr.bf16.mxu0 0
      %495 = vmatmul.mubr.bf16.gmra.mrb[0].mxu0 %v408
      %v496 = vpop.f32.mrb[0].mxu0
      %v497 = vadd.f32 0.0, %v496
      %v498 = vpop.f32.mrb[0].mxu0
      %v499 = vpop.f32.mrb[0].mxu0
      %v500 = vadd.f32 0.0, %v499
      %v501 = vpop.f32.mrb[0].mxu0
      %502 = vmatprep.mubr.bf16.mxu0 0
      %503 = vmatmul.mubr.bf16.gmra.mrb[0].mxu0 %v411
      %v504 = vpop.f32.mrb[0].mxu0
      %v505 = vadd.f32 0.0, %v504
      %v506 = vpop.f32.mrb[0].mxu0
      %v507 = vpop.f32.mrb[0].mxu0
      %v508 = vadd.f32 0.0, %v507
      %v509 = vpop.f32.mrb[0].mxu0
      %510 = vmatprep.mubr.bf16.mxu0 0
      %511 = vmatmul.mubr.bf16.gmra.mrb[0].mxu0 %v414
      %v512 = vpop.f32.mrb[0].mxu0
      %v513 = vadd.f32 0.0, %v512
      %v514 = vpop.f32.mrb[0].mxu0
      %v515 = vpop.f32.mrb[0].mxu0
      %v516 = vadd.f32 0.0, %v515
      %v517 = vpop.f32.mrb[0].mxu0
      %518 = vmatprep.mubr.bf16.mxu0 0
      %519 = vmatmul.mubr.bf16.gmra.mrb[0].mxu0 %v417
      %v520 = vpop.f32.mrb[0].mxu0
      %v521 = vadd.f32 0.0, %v520
      %v522 = vpop.f32.mrb[0].mxu0
      %v523 = vpop.f32.mrb[0].mxu0
      %v524 = vadd.f32 0.0, %v523
      %v525 = vpop.f32.mrb[0].mxu0
      %526 = vmatprep.mubr.bf16.mxu0 0
      %527 = vmatmul.mubr.bf16.gmra.mrb[0].mxu0 %v420
      %v528 = vpop.f32.mrb[0].mxu0
      %v529 = vadd.f32 0.0, %v528
      %v530 = vpop.f32.mrb[0].mxu0
      %v531 = vpop.f32.mrb[0].mxu0
      %v532 = vadd.f32 0.0, %v531
      %v533 = vpop.f32.mrb[0].mxu0
      %534 = vmatprep.mubr.bf16.mxu0 0
      %535 = vmatmul.mubr.bf16.gmra.mrb[0].mxu0 %v423
      %v536 = vpop.f32.mrb[0].mxu0
      %v537 = vadd.f32 0.0, %v536
      %v538 = vpop.f32.mrb[0].mxu0
      %v539 = vpop.f32.mrb[0].mxu0
      %v540 = vadd.f32 0.0, %v539
      %v541 = vpop.f32.mrb[0].mxu0
      %542 = vmatprep.mubr.bf16.mxu0 0
      %543 = vmatmul.mubr.bf16.gmra.mrb[0].mxu0 %v426
      %v544 = vpop.f32.mrb[0].mxu0
      %v545 = vadd.f32 0.0, %v544
      %v546 = vpop.f32.mrb[0].mxu0
      %v547 = vpop.f32.mrb[0].mxu0
      %v548 = vadd.f32 0.0, %v547
      %v549 = vpop.f32.mrb[0].mxu0
      %550 = vmatprep.mubr.bf16.mxu0 0
      %551 = vmatmul.mubr.bf16.gmra.mrb[0].mxu0 %v429
      %v552 = vpop.f32.mrb[0].mxu0
      %v553 = vadd.f32 0.0, %v552
      %v554 = vpop.f32.mrb[0].mxu0
      %v555 = vpop.f32.mrb[0].mxu0
      %v556 = vadd.f32 0.0, %v555
      %v557 = vpop.f32.mrb[0].mxu0
      %558 = vmatprep.mubr.bf16.mxu0 0
      %559 = vmatmul.mubr.bf16.gmra.mrb[0].mxu0 %v432
      %v560 = vpop.f32.mrb[0].mxu0
      %v561 = vadd.f32 0.0, %v560
      %v562 = vpop.f32.mrb[0].mxu0
      %v563 = vpop.f32.mrb[0].mxu0
      %v564 = vadd.f32 0.0, %v563
      %v565 = vpop.f32.mrb[0].mxu0
      %566 = vmatprep.mubr.bf16.mxu0 0
      %567 = vmatmul.mubr.bf16.gmra.mrb[0].mxu0 %v435
      %v568 = vpop.f32.mrb[0].mxu0
      %v569 = vadd.f32 0.0, %v568
      %v570 = vpop.f32.mrb[0].mxu0
      %v571 = vpop.f32.mrb[0].mxu0
      %v572 = vadd.f32 0.0, %v571
      %v573 = vpop.f32.mrb[0].mxu0
      %574 = vmatprep.mubr.bf16.mxu0 0
      %575 = vmatmul.mubr.bf16.gmra.mrb[0].mxu0 %v438
      %v576 = vpop.f32.mrb[0].mxu0
      %v577 = vadd.f32 0.0, %v576
      %v578 = vpop.f32.mrb[0].mxu0
      %v579 = vpop.f32.mrb[0].mxu0
      %v580 = vadd.f32 0.0, %v579
      %v581 = vpop.f32.mrb[0].mxu0
      %582 = vmatprep.mubr.bf16.mxu0 0
      %583 = vmatmul.mubr.bf16.gmra.mrb[0].mxu0 %v441
      %v584 = vpop.f32.mrb[0].mxu0
      %v585 = vadd.f32 0.0, %v584
      %v586 = vpop.f32.mrb[0].mxu0
      %v587 = vpop.f32.mrb[0].mxu0
      %v588 = vadd.f32 0.0, %v587
      %v589 = vpop.f32.mrb[0].mxu0
      %590 = vmatprep.mubr.bf16.mxu0 0
      %591 = vmatmul.mubr.bf16.gmra.mrb[0].mxu0 %v444
      %v592 = vpop.f32.mrb[0].mxu0
      %v593 = vadd.f32 0.0, %v592
      %v594 = vpop.f32.mrb[0].mxu0
      %v595 = vpop.f32.mrb[0].mxu0
      %v596 = vadd.f32 0.0, %v595
      %v597 = vpop.f32.mrb[0].mxu0
      %598 = vmatprep.mubr.bf16.mxu0 0
      %599 = vmatmul.mubr.bf16.gmra.mrb[0].mxu0 %v447
      %v600 = vpop.f32.mrb[0].mxu0
      %v601 = vadd.f32 0.0, %v600
      %v602 = vpop.f32.mrb[0].mxu0
      %v603 = vpop.f32.mrb[0].mxu0
      %v604 = vadd.f32 0.0, %v603
      %v605 = vpop.f32.mrb[0].mxu0
      %606 = vmatprep.mubr.bf16.mxu0 0
      %607 = vmatmul.mubr.bf16.gmra.mrb[0].mxu0 %v450
      %v608 = vpop.f32.mrb[0].mxu0
      %v609 = vadd.f32 0.0, %v608
      %v610 = vpop.f32.mrb[0].mxu0
      %v611 = vpop.f32.mrb[0].mxu0
      %v612 = vadd.f32 0.0, %v611
      %v613 = vpop.f32.mrb[0].mxu0
      %614 = vmatprep.mubr.bf16.mxu0 0
      %615 = vmatmul.mubr.bf16.gmra.mrb[0].mxu0 %v453
      %v616 = vpop.f32.mrb[0].mxu0
      %v617 = vadd.f32 0.0, %v616
      %v618 = vpop.f32.mrb[0].mxu0
      %v619 = vpop.f32.mrb[0].mxu0
      %v620 = vadd.f32 0.0, %v619
      %v621 = vpop.f32.mrb[0].mxu0
      %622 = vdwg.mxu0
      %v623 = vadd.f32 %v374, %v497
      %v624 = vadd.f32 %v375, %v500
      %v625 = vadd.f32 %v376, %v505
      %v626 = vadd.f32 %v377, %v508
      %v627 = vadd.f32 %v378, %v513
      %v628 = vadd.f32 %v379, %v516
      %v629 = vadd.f32 %v380, %v521
      %v630 = vadd.f32 %v381, %v524
      %v631 = vadd.f32 %v382, %v529
      %v632 = vadd.f32 %v383, %v532
      %v633 = vadd.f32 %v384, %v537
      %v634 = vadd.f32 %v385, %v540
      %v635 = vadd.f32 %v386, %v545
      %v636 = vadd.f32 %v387, %v548
      %v637 = vadd.f32 %v388, %v553
      %v638 = vadd.f32 %v389, %v556
      %v639 = vadd.f32 %v390, %v561
      %v640 = vadd.f32 %v391, %v564
      %v641 = vadd.f32 %v392, %v569
      %v642 = vadd.f32 %v393, %v572
      %v643 = vadd.f32 %v394, %v577
      %v644 = vadd.f32 %v395, %v580
      %v645 = vadd.f32 %v396, %v585
      %v646 = vadd.f32 %v397, %v588
      %v647 = vadd.f32 %v398, %v593
      %v648 = vadd.f32 %v399, %v596
      %v649 = vadd.f32 %v400, %v601
      %v650 = vadd.f32 %v401, %v604
      %v651 = vadd.f32 %v402, %v609
      %v652 = vadd.f32 %v403, %v612
      %v653 = vadd.f32 %v404, %v617
      %v654 = vadd.f32 %v405, %v620
      %655 = vst.msk [vmem:[#allocation3] sm:$0xff] %vm293, %v623
      %656 = vst.msk [vmem:[#allocation3 + $0x8] sm:$0xff] %vm293, %v624
      %657 = vst.msk [vmem:[#allocation3 + $0x10] sm:$0xff] %vm293, %v625
      %658 = vst.msk [vmem:[#allocation3 + $0x18] sm:$0xff] %vm293, %v626
      %659 = vst.msk [vmem:[#allocation3 + $0x20] sm:$0xff] %vm293, %v627
      %660 = vst.msk [vmem:[#allocation3 + $0x28] sm:$0xff] %vm293, %v628
      %661 = vst.msk [vmem:[#allocation3 + $0x30] sm:$0xff] %vm293, %v629
      %662 = vst.msk [vmem:[#allocation3 + $0x38] sm:$0xff] %vm293, %v630
      %663 = vst.msk [vmem:[#allocation3 + $0x40] sm:$0xff] %vm293, %v631
      %664 = vst.msk [vmem:[#allocation3 + $0x48] sm:$0xff] %vm293, %v632
      %665 = vst.msk [vmem:[#allocation3 + $0x50] sm:$0xff] %vm293, %v633
      %666 = vst.msk [vmem:[#allocation3 + $0x58] sm:$0xff] %vm293, %v634
      %667 = vst.msk [vmem:[#allocation3 + $0x60] sm:$0xff] %vm293, %v635
      %668 = vst.msk [vmem:[#allocation3 + $0x68] sm:$0xff] %vm293, %v636
      %669 = vst.msk [vmem:[#allocation3 + $0x70] sm:$0xff] %vm293, %v637
      %670 = vst.msk [vmem:[#allocation3 + $0x78] sm:$0xff] %vm293, %v638
      %671 = vst.msk [vmem:[#allocation3 + $0x80] sm:$0xff] %vm293, %v639
      %672 = vst.msk [vmem:[#allocation3 + $0x88] sm:$0xff] %vm293, %v640
      %673 = vst.msk [vmem:[#allocation3 + $0x90] sm:$0xff] %vm293, %v641
      %674 = vst.msk [vmem:[#allocation3 + $0x98] sm:$0xff] %vm293, %v642
      %675 = vst.msk [vmem:[#allocation3 + $0xa0] sm:$0xff] %vm293, %v643
      %676 = vst.msk [vmem:[#allocation3 + $0xa8] sm:$0xff] %vm293, %v644
      %677 = vst.msk [vmem:[#allocation3 + $0xb0] sm:$0xff] %vm293, %v645
      %678 = vst.msk [vmem:[#allocation3 + $0xb8] sm:$0xff] %vm293, %v646
      %679 = vst.msk [vmem:[#allocation3 + $0xc0] sm:$0xff] %vm293, %v647
      %680 = vst.msk [vmem:[#allocation3 + $0xc8] sm:$0xff] %vm293, %v648
      %681 = vst.msk [vmem:[#allocation3 + $0xd0] sm:$0xff] %vm293, %v649
      %682 = vst.msk [vmem:[#allocation3 + $0xd8] sm:$0xff] %vm293, %v650
      %683 = vst.msk [vmem:[#allocation3 + $0xe0] sm:$0xff] %vm293, %v651
      %684 = vst.msk [vmem:[#allocation3 + $0xe8] sm:$0xff] %vm293, %v652
      %685 = vst.msk [vmem:[#allocation3 + $0xf0] sm:$0xff] %vm293, %v653
      %686 = vst.msk [vmem:[#allocation3 + $0xf8] sm:$0xff] %vm293, %v654
      %v687 = vld [vmem:[#allocation2 + $0x1] sm:$0xff]
      %v688 = vld [vmem:[#allocation2 + $0x9] sm:$0xff]
      %v689 = vld [vmem:[#allocation2 + $0x19] sm:$0xff]
      %v690 = vld [vmem:[#allocation2 + $0x21] sm:$0xff]
      %v691 = vld [vmem:[#allocation2 + $0x31] sm:$0xff]
      %v692 = vld [vmem:[#allocation2 + $0x39] sm:$0xff]
      %v693 = vld [vmem:[#allocation2 + $0x49] sm:$0xff]
      %v694 = vld [vmem:[#allocation2 + $0x51] sm:$0xff]
      %v695 = vld [vmem:[#allocation2 + $0x61] sm:$0xff]
      %v696 = vld [vmem:[#allocation2 + $0x69] sm:$0xff]
      %v697 = vld [vmem:[#allocation2 + $0x79] sm:$0xff]
      %v698 = vld [vmem:[#allocation2 + $0x81] sm:$0xff]
      %v699 = vld [vmem:[#allocation2 + $0x91] sm:$0xff]
      %v700 = vld [vmem:[#allocation2 + $0x99] sm:$0xff]
      %v701 = vld [vmem:[#allocation2 + $0xa9] sm:$0xff]
      %v702 = vld [vmem:[#allocation2 + $0xb1] sm:$0xff]
      %v703 = vld [vmem:[#allocation2 + $0xc1] sm:$0xff]
      %v704 = vld [vmem:[#allocation2 + $0xc9] sm:$0xff]
      %v705 = vld [vmem:[#allocation2 + $0xd9] sm:$0xff]
      %v706 = vld [vmem:[#allocation2 + $0xe1] sm:$0xff]
      %v707 = vld [vmem:[#allocation2 + $0xf1] sm:$0xff]
      %v708 = vld [vmem:[#allocation2 + $0xf9] sm:$0xff]
      %v709 = vld [vmem:[#allocation2 + $0x109] sm:$0xff]
      %v710 = vld [vmem:[#allocation2 + $0x111] sm:$0xff]
      %v711 = vld [vmem:[#allocation2 + $0x121] sm:$0xff]
      %v712 = vld [vmem:[#allocation2 + $0x129] sm:$0xff]
      %v713 = vld [vmem:[#allocation2 + $0x139] sm:$0xff]
      %v714 = vld [vmem:[#allocation2 + $0x141] sm:$0xff]
      %v715 = vld [vmem:[#allocation2 + $0x151] sm:$0xff]
      %v716 = vld [vmem:[#allocation2 + $0x159] sm:$0xff]
      %v717 = vld [vmem:[#allocation2 + $0x169] sm:$0xff]
      %v718 = vld [vmem:[#allocation2 + $0x171] sm:$0xff]
      %v719 = vpack.c.bf16 %v688, %v687
      %v720 = vpack.c.bf16 %v690, %v689
      %v721 = vpack.c.bf16 %v692, %v691
      %v722 = vpack.c.bf16 %v694, %v693
      %v723 = vpack.c.bf16 %v696, %v695
      %v724 = vpack.c.bf16 %v698, %v697
      %v725 = vpack.c.bf16 %v700, %v699
      %v726 = vpack.c.bf16 %v702, %v701
      %v727 = vpack.c.bf16 %v704, %v703
      %v728 = vpack.c.bf16 %v706, %v705
      %v729 = vpack.c.bf16 %v708, %v707
      %v730 = vpack.c.bf16 %v710, %v709
      %v731 = vpack.c.bf16 %v712, %v711
      %v732 = vpack.c.bf16 %v714, %v713
      %v733 = vpack.c.bf16 %v716, %v715
      %v734 = vpack.c.bf16 %v718, %v717
      %v735 = vld [vmem:[#allocation3] sm:$0xff]
      %v736 = vld [vmem:[#allocation3 + $0x8] sm:$0xff]
      %v737 = vld [vmem:[#allocation3 + $0x10] sm:$0xff]
      %v738 = vld [vmem:[#allocation3 + $0x18] sm:$0xff]
      %v739 = vld [vmem:[#allocation3 + $0x20] sm:$0xff]
      %v740 = vld [vmem:[#allocation3 + $0x28] sm:$0xff]
      %v741 = vld [vmem:[#allocation3 + $0x30] sm:$0xff]
      %v742 = vld [vmem:[#allocation3 + $0x38] sm:$0xff]
      %v743 = vld [vmem:[#allocation3 + $0x40] sm:$0xff]
      %v744 = vld [vmem:[#allocation3 + $0x48] sm:$0xff]
      %v745 = vld [vmem:[#allocation3 + $0x50] sm:$0xff]
      %v746 = vld [vmem:[#allocation3 + $0x58] sm:$0xff]
      %v747 = vld [vmem:[#allocation3 + $0x60] sm:$0xff]
      %v748 = vld [vmem:[#allocation3 + $0x68] sm:$0xff]
      %v749 = vld [vmem:[#allocation3 + $0x70] sm:$0xff]
      %v750 = vld [vmem:[#allocation3 + $0x78] sm:$0xff]
      %v751 = vld [vmem:[#allocation3 + $0x80] sm:$0xff]
      %v752 = vld [vmem:[#allocation3 + $0x88] sm:$0xff]
      %v753 = vld [vmem:[#allocation3 + $0x90] sm:$0xff]
      %v754 = vld [vmem:[#allocation3 + $0x98] sm:$0xff]
      %v755 = vld [vmem:[#allocation3 + $0xa0] sm:$0xff]
      %v756 = vld [vmem:[#allocation3 + $0xa8] sm:$0xff]
      %v757 = vld [vmem:[#allocation3 + $0xb0] sm:$0xff]
      %v758 = vld [vmem:[#allocation3 + $0xb8] sm:$0xff]
      %v759 = vld [vmem:[#allocation3 + $0xc0] sm:$0xff]
      %v760 = vld [vmem:[#allocation3 + $0xc8] sm:$0xff]
      %v761 = vld [vmem:[#allocation3 + $0xd0] sm:$0xff]
      %v762 = vld [vmem:[#allocation3 + $0xd8] sm:$0xff]
      %v763 = vld [vmem:[#allocation3 + $0xe0] sm:$0xff]
      %v764 = vld [vmem:[#allocation3 + $0xe8] sm:$0xff]
      %v765 = vld [vmem:[#allocation3 + $0xf0] sm:$0xff]
      %v766 = vld [vmem:[#allocation3 + $0xf8] sm:$0xff]
      %s767 = scalar_lea.vmem %s1, 2
      %v768 = vld [vmem:[%s767] sm:$0x3]
      %v770 = vsel %vm204, %v719, 0
      %v773 = vsel %vm204, %v720, 0
      %v776 = vsel %vm204, %v721, 0
      %v779 = vsel %vm204, %v722, 0
      %v782 = vsel %vm204, %v723, 0
      %v785 = vsel %vm204, %v724, 0
      %v788 = vsel %vm204, %v725, 0
      %v791 = vsel %vm204, %v726, 0
      %v794 = vsel %vm204, %v727, 0
      %v797 = vsel %vm204, %v728, 0
      %v800 = vsel %vm204, %v729, 0
      %v803 = vsel %vm204, %v730, 0
      %v806 = vsel %vm204, %v731, 0
      %v809 = vsel %vm204, %v732, 0
      %v812 = vsel %vm204, %v733, 0
      %v815 = vsel %vm204, %v734, 0
      %v818 = vand.u32 %v768, %v458
      %820 = vmatprep.subr.bf16.mxu0 0
      %821 = vmatpush1.bf16.msra.mxu0 %v818
      %822 = vmatprep.subr.bf16.mxu0 0
      %823 = vmatpush1.bf16.msra.mxu0 0
      %824 = vmatprep.subr.bf16.mxu0 0
      %825 = vmatpush1.bf16.msra.mxu0 0
      %826 = vmatprep.subr.bf16.mxu0 0
      %827 = vmatpush1.bf16.msra.mxu0 0
      %828 = vmatprep.subr.bf16.mxu0 0
      %829 = vmatpush1.bf16.msra.mxu0 0
      %830 = vmatprep.subr.bf16.mxu0 0
      %831 = vmatpush1.bf16.msra.mxu0 0
      %832 = vmatprep.subr.bf16.mxu0 0
      %833 = vmatpush1.bf16.msra.mxu0 0
      %834 = vmatprep.subr.bf16.mxu0 0
      %835 = vmatpush1.bf16.msra.mxu0 0
      %836 = vmatprep.subr.bf16.mxu0 0
      %837 = vmatpush1.bf16.msra.mxu0 0
      %838 = vmatprep.subr.bf16.mxu0 0
      %839 = vmatpush1.bf16.msra.mxu0 0
      %840 = vmatprep.subr.bf16.mxu0 0
      %841 = vmatpush1.bf16.msra.mxu0 0
      %842 = vmatprep.subr.bf16.mxu0 0
      %843 = vmatpush1.bf16.msra.mxu0 0
      %844 = vmatprep.subr.bf16.mxu0 0
      %845 = vmatpush1.bf16.msra.mxu0 0
      %846 = vmatprep.subr.bf16.mxu0 0
      %847 = vmatpush1.bf16.msra.mxu0 0
      %848 = vmatprep.subr.bf16.mxu0 0
      %849 = vmatpush1.bf16.msra.mxu0 0
      %850 = vmatprep.subr.bf16.mxu0 0
      %851 = vmatpush1.bf16.msra.mxu0 0
      %852 = vmatprep.mubr.bf16.mxu0 0
      %853 = vmatmul.mubr.bf16.gmra.mrb[0].mxu0 %v770
      %v854 = vpop.f32.mrb[0].mxu0
      %v855 = vadd.f32 0.0, %v854
      %v856 = vpop.f32.mrb[0].mxu0
      %v857 = vpop.f32.mrb[0].mxu0
      %v858 = vadd.f32 0.0, %v857
      %v859 = vpop.f32.mrb[0].mxu0
      %860 = vmatprep.mubr.bf16.mxu0 0
      %861 = vmatmul.mubr.bf16.gmra.mrb[0].mxu0 %v773
      %v862 = vpop.f32.mrb[0].mxu0
      %v863 = vadd.f32 0.0, %v862
      %v864 = vpop.f32.mrb[0].mxu0
      %v865 = vpop.f32.mrb[0].mxu0
      %v866 = vadd.f32 0.0, %v865
      %v867 = vpop.f32.mrb[0].mxu0
      %868 = vmatprep.mubr.bf16.mxu0 0
      %869 = vmatmul.mubr.bf16.gmra.mrb[0].mxu0 %v776
      %v870 = vpop.f32.mrb[0].mxu0
      %v871 = vadd.f32 0.0, %v870
      %v872 = vpop.f32.mrb[0].mxu0
      %v873 = vpop.f32.mrb[0].mxu0
      %v874 = vadd.f32 0.0, %v873
      %v875 = vpop.f32.mrb[0].mxu0
      %876 = vmatprep.mubr.bf16.mxu0 0
      %877 = vmatmul.mubr.bf16.gmra.mrb[0].mxu0 %v779
      %v878 = vpop.f32.mrb[0].mxu0
      %v879 = vadd.f32 0.0, %v878
      %v880 = vpop.f32.mrb[0].mxu0
      %v881 = vpop.f32.mrb[0].mxu0
      %v882 = vadd.f32 0.0, %v881
      %v883 = vpop.f32.mrb[0].mxu0
      %884 = vmatprep.mubr.bf16.mxu0 0
      %885 = vmatmul.mubr.bf16.gmra.mrb[0].mxu0 %v782
      %v886 = vpop.f32.mrb[0].mxu0
      %v887 = vadd.f32 0.0, %v886
      %v888 = vpop.f32.mrb[0].mxu0
      %v889 = vpop.f32.mrb[0].mxu0
      %v890 = vadd.f32 0.0, %v889
      %v891 = vpop.f32.mrb[0].mxu0
      %892 = vmatprep.mubr.bf16.mxu0 0
      %893 = vmatmul.mubr.bf16.gmra.mrb[0].mxu0 %v785
      %v894 = vpop.f32.mrb[0].mxu0
      %v895 = vadd.f32 0.0, %v894
      %v896 = vpop.f32.mrb[0].mxu0
      %v897 = vpop.f32.mrb[0].mxu0
      %v898 = vadd.f32 0.0, %v897
      %v899 = vpop.f32.mrb[0].mxu0
      %900 = vmatprep.mubr.bf16.mxu0 0
      %901 = vmatmul.mubr.bf16.gmra.mrb[0].mxu0 %v788
      %v902 = vpop.f32.mrb[0].mxu0
      %v903 = vadd.f32 0.0, %v902
      %v904 = vpop.f32.mrb[0].mxu0
      %v905 = vpop.f32.mrb[0].mxu0
      %v906 = vadd.f32 0.0, %v905
      %v907 = vpop.f32.mrb[0].mxu0
      %908 = vmatprep.mubr.bf16.mxu0 0
      %909 = vmatmul.mubr.bf16.gmra.mrb[0].mxu0 %v791
      %v910 = vpop.f32.mrb[0].mxu0
      %v911 = vadd.f32 0.0, %v910
      %v912 = vpop.f32.mrb[0].mxu0
      %v913 = vpop.f32.mrb[0].mxu0
      %v914 = vadd.f32 0.0, %v913
      %v915 = vpop.f32.mrb[0].mxu0
      %916 = vmatprep.mubr.bf16.mxu0 0
      %917 = vmatmul.mubr.bf16.gmra.mrb[0].mxu0 %v794
      %v918 = vpop.f32.mrb[0].mxu0
      %v919 = vadd.f32 0.0, %v918
      %v920 = vpop.f32.mrb[0].mxu0
      %v921 = vpop.f32.mrb[0].mxu0
      %v922 = vadd.f32 0.0, %v921
      %v923 = vpop.f32.mrb[0].mxu0
      %924 = vmatprep.mubr.bf16.mxu0 0
      %925 = vmatmul.mubr.bf16.gmra.mrb[0].mxu0 %v797
      %v926 = vpop.f32.mrb[0].mxu0
      %v927 = vadd.f32 0.0, %v926
      %v928 = vpop.f32.mrb[0].mxu0
      %v929 = vpop.f32.mrb[0].mxu0
      %v930 = vadd.f32 0.0, %v929
      %v931 = vpop.f32.mrb[0].mxu0
      %932 = vmatprep.mubr.bf16.mxu0 0
      %933 = vmatmul.mubr.bf16.gmra.mrb[0].mxu0 %v800
      %v934 = vpop.f32.mrb[0].mxu0
      %v935 = vadd.f32 0.0, %v934
      %v936 = vpop.f32.mrb[0].mxu0
      %v937 = vpop.f32.mrb[0].mxu0
      %v938 = vadd.f32 0.0, %v937
      %v939 = vpop.f32.mrb[0].mxu0
      %940 = vmatprep.mubr.bf16.mxu0 0
      %941 = vmatmul.mubr.bf16.gmra.mrb[0].mxu0 %v803
      %v942 = vpop.f32.mrb[0].mxu0
      %v943 = vadd.f32 0.0, %v942
      %v944 = vpop.f32.mrb[0].mxu0
      %v945 = vpop.f32.mrb[0].mxu0
      %v946 = vadd.f32 0.0, %v945
      %v947 = vpop.f32.mrb[0].mxu0
      %948 = vmatprep.mubr.bf16.mxu0 0
      %949 = vmatmul.mubr.bf16.gmra.mrb[0].mxu0 %v806
      %v950 = vpop.f32.mrb[0].mxu0
      %v951 = vadd.f32 0.0, %v950
      %v952 = vpop.f32.mrb[0].mxu0
      %v953 = vpop.f32.mrb[0].mxu0
      %v954 = vadd.f32 0.0, %v953
      %v955 = vpop.f32.mrb[0].mxu0
      %956 = vmatprep.mubr.bf16.mxu0 0
      %957 = vmatmul.mubr.bf16.gmra.mrb[0].mxu0 %v809
      %v958 = vpop.f32.mrb[0].mxu0
      %v959 = vadd.f32 0.0, %v958
      %v960 = vpop.f32.mrb[0].mxu0
      %v961 = vpop.f32.mrb[0].mxu0
      %v962 = vadd.f32 0.0, %v961
      %v963 = vpop.f32.mrb[0].mxu0
      %964 = vmatprep.mubr.bf16.mxu0 0
      %965 = vmatmul.mubr.bf16.gmra.mrb[0].mxu0 %v812
      %v966 = vpop.f32.mrb[0].mxu0
      %v967 = vadd.f32 0.0, %v966
      %v968 = vpop.f32.mrb[0].mxu0
      %v969 = vpop.f32.mrb[0].mxu0
      %v970 = vadd.f32 0.0, %v969
      %v971 = vpop.f32.mrb[0].mxu0
      %972 = vmatprep.mubr.bf16.mxu0 0
      %973 = vmatmul.mubr.bf16.gmra.mrb[0].mxu0 %v815
      %v974 = vpop.f32.mrb[0].mxu0
      %v975 = vadd.f32 0.0, %v974
      %v976 = vpop.f32.mrb[0].mxu0
      %v977 = vpop.f32.mrb[0].mxu0
      %v978 = vadd.f32 0.0, %v977
      %v979 = vpop.f32.mrb[0].mxu0
      %980 = vdwg.mxu0
      %v981 = vadd.f32 %v735, %v855
      %v982 = vadd.f32 %v736, %v858
      %v983 = vadd.f32 %v737, %v863
      %v984 = vadd.f32 %v738, %v866
      %v985 = vadd.f32 %v739, %v871
      %v986 = vadd.f32 %v740, %v874
      %v987 = vadd.f32 %v741, %v879
      %v988 = vadd.f32 %v742, %v882
      %v989 = vadd.f32 %v743, %v887
      %v990 = vadd.f32 %v744, %v890
      %v991 = vadd.f32 %v745, %v895
      %v992 = vadd.f32 %v746, %v898
      %v993 = vadd.f32 %v747, %v903
      %v994 = vadd.f32 %v748, %v906
      %v995 = vadd.f32 %v749, %v911
      %v996 = vadd.f32 %v750, %v914
      %v997 = vadd.f32 %v751, %v919
      %v998 = vadd.f32 %v752, %v922
      %v999 = vadd.f32 %v753, %v927
      %v1000 = vadd.f32 %v754, %v930
      %v1001 = vadd.f32 %v755, %v935
      %v1002 = vadd.f32 %v756, %v938
      %v1003 = vadd.f32 %v757, %v943
      %v1004 = vadd.f32 %v758, %v946
      %v1005 = vadd.f32 %v759, %v951
      %v1006 = vadd.f32 %v760, %v954
      %v1007 = vadd.f32 %v761, %v959
      %v1008 = vadd.f32 %v762, %v962
      %v1009 = vadd.f32 %v763, %v967
      %v1010 = vadd.f32 %v764, %v970
      %v1011 = vadd.f32 %v765, %v975
      %v1012 = vadd.f32 %v766, %v978
      %1013 = vst.msk [vmem:[#allocation3] sm:$0xff] %vm293, %v981
      %1014 = vst.msk [vmem:[#allocation3 + $0x8] sm:$0xff] %vm293, %v982
      %1015 = vst.msk [vmem:[#allocation3 + $0x10] sm:$0xff] %vm293, %v983
      %1016 = vst.msk [vmem:[#allocation3 + $0x18] sm:$0xff] %vm293, %v984
      %1017 = vst.msk [vmem:[#allocation3 + $0x20] sm:$0xff] %vm293, %v985
      %1018 = vst.msk [vmem:[#allocation3 + $0x28] sm:$0xff] %vm293, %v986
      %1019 = vst.msk [vmem:[#allocation3 + $0x30] sm:$0xff] %vm293, %v987
      %1020 = vst.msk [vmem:[#allocation3 + $0x38] sm:$0xff] %vm293, %v988
      %1021 = vst.msk [vmem:[#allocation3 + $0x40] sm:$0xff] %vm293, %v989
      %1022 = vst.msk [vmem:[#allocation3 + $0x48] sm:$0xff] %vm293, %v990
      %1023 = vst.msk [vmem:[#allocation3 + $0x50] sm:$0xff] %vm293, %v991
      %1024 = vst.msk [vmem:[#allocation3 + $0x58] sm:$0xff] %vm293, %v992
      %1025 = vst.msk [vmem:[#allocation3 + $0x60] sm:$0xff] %vm293, %v993
      %1026 = vst.msk [vmem:[#allocation3 + $0x68] sm:$0xff] %vm293, %v994
      %1027 = vst.msk [vmem:[#allocation3 + $0x70] sm:$0xff] %vm293, %v995
      %1028 = vst.msk [vmem:[#allocation3 + $0x78] sm:$0xff] %vm293, %v996
      %1029 = vst.msk [vmem:[#allocation3 + $0x80] sm:$0xff] %vm293, %v997
      %1030 = vst.msk [vmem:[#allocation3 + $0x88] sm:$0xff] %vm293, %v998
      %1031 = vst.msk [vmem:[#allocation3 + $0x90] sm:$0xff] %vm293, %v999
      %1032 = vst.msk [vmem:[#allocation3 + $0x98] sm:$0xff] %vm293, %v1000
      %1033 = vst.msk [vmem:[#allocation3 + $0xa0] sm:$0xff] %vm293, %v1001
      %1034 = vst.msk [vmem:[#allocation3 + $0xa8] sm:$0xff] %vm293, %v1002
      %1035 = vst.msk [vmem:[#allocation3 + $0xb0] sm:$0xff] %vm293, %v1003
      %1036 = vst.msk [vmem:[#allocation3 + $0xb8] sm:$0xff] %vm293, %v1004
      %1037 = vst.msk [vmem:[#allocation3 + $0xc0] sm:$0xff] %vm293, %v1005
      %1038 = vst.msk [vmem:[#allocation3 + $0xc8] sm:$0xff] %vm293, %v1006
      %1039 = vst.msk [vmem:[#allocation3 + $0xd0] sm:$0xff] %vm293, %v1007
      %1040 = vst.msk [vmem:[#allocation3 + $0xd8] sm:$0xff] %vm293, %v1008
      %1041 = vst.msk [vmem:[#allocation3 + $0xe0] sm:$0xff] %vm293, %v1009
      %1042 = vst.msk [vmem:[#allocation3 + $0xe8] sm:$0xff] %vm293, %v1010
      %1043 = vst.msk [vmem:[#allocation3 + $0xf0] sm:$0xff] %vm293, %v1011
      %1044 = vst.msk [vmem:[#allocation3 + $0xf8] sm:$0xff] %vm293, %v1012
      %v1045 = vld [vmem:[#allocation2 + $0x2] sm:$0xff]
      %v1046 = vld [vmem:[#allocation2 + $0xa] sm:$0xff]
      %v1047 = vld [vmem:[#allocation2 + $0x1a] sm:$0xff]
      %v1048 = vld [vmem:[#allocation2 + $0x22] sm:$0xff]
      %v1049 = vld [vmem:[#allocation2 + $0x32] sm:$0xff]
      %v1050 = vld [vmem:[#allocation2 + $0x3a] sm:$0xff]
      %v1051 = vld [vmem:[#allocation2 + $0x4a] sm:$0xff]
      %v1052 = vld [vmem:[#allocation2 + $0x52] sm:$0xff]
      %v1053 = vld [vmem:[#allocation2 + $0x62] sm:$0xff]
      %v1054 = vld [vmem:[#allocation2 + $0x6a] sm:$0xff]
      %v1055 = vld [vmem:[#allocation2 + $0x7a] sm:$0xff]
      %v1056 = vld [vmem:[#allocation2 + $0x82] sm:$0xff]
      %v1057 = vld [vmem:[#allocation2 + $0x92] sm:$0xff]
      %v1058 = vld [vmem:[#allocation2 + $0x9a] sm:$0xff]
      %v1059 = vld [vmem:[#allocation2 + $0xaa] sm:$0xff]
      %v1060 = vld [vmem:[#allocation2 + $0xb2] sm:$0xff]
      %v1061 = vld [vmem:[#allocation2 + $0xc2] sm:$0xff]
      %v1062 = vld [vmem:[#allocation2 + $0xca] sm:$0xff]
      %v1063 = vld [vmem:[#allocation2 + $0xda] sm:$0xff]
      %v1064 = vld [vmem:[#allocation2 + $0xe2] sm:$0xff]
      %v1065 = vld [vmem:[#allocation2 + $0xf2] sm:$0xff]
      %v1066 = vld [vmem:[#allocation2 + $0xfa] sm:$0xff]
      %v1067 = vld [vmem:[#allocation2 + $0x10a] sm:$0xff]
      %v1068 = vld [vmem:[#allocation2 + $0x112] sm:$0xff]
      %v1069 = vld [vmem:[#allocation2 + $0x122] sm:$0xff]
      %v1070 = vld [vmem:[#allocation2 + $0x12a] sm:$0xff]
      %v1071 = vld [vmem:[#allocation2 + $0x13a] sm:$0xff]
      %v1072 = vld [vmem:[#allocation2 + $0x142] sm:$0xff]
      %v1073 = vld [vmem:[#allocation2 + $0x152] sm:$0xff]
      %v1074 = vld [vmem:[#allocation2 + $0x15a] sm:$0xff]
      %v1075 = vld [vmem:[#allocation2 + $0x16a] sm:$0xff]
      %v1076 = vld [vmem:[#allocation2 + $0x172] sm:$0xff]
      %v1077 = vpack.c.bf16 %v1046, %v1045
      %v1078 = vpack.c.bf16 %v1048, %v1047
      %v1079 = vpack.c.bf16 %v1050, %v1049
      %v1080 = vpack.c.bf16 %v1052, %v1051
      %v1081 = vpack.c.bf16 %v1054, %v1053
      %v1082 = vpack.c.bf16 %v1056, %v1055
      %v1083 = vpack.c.bf16 %v1058, %v1057
      %v1084 = vpack.c.bf16 %v1060, %v1059
      %v1085 = vpack.c.bf16 %v1062, %v1061
      %v1086 = vpack.c.bf16 %v1064, %v1063
      %v1087 = vpack.c.bf16 %v1066, %v1065
      %v1088 = vpack.c.bf16 %v1068, %v1067
      %v1089 = vpack.c.bf16 %v1070, %v1069
      %v1090 = vpack.c.bf16 %v1072, %v1071
      %v1091 = vpack.c.bf16 %v1074, %v1073
      %v1092 = vpack.c.bf16 %v1076, %v1075
      %v1093 = vld [vmem:[#allocation3] sm:$0xff]
      %v1094 = vld [vmem:[#allocation3 + $0x8] sm:$0xff]
      %v1095 = vld [vmem:[#allocation3 + $0x10] sm:$0xff]
      %v1096 = vld [vmem:[#allocation3 + $0x18] sm:$0xff]
      %v1097 = vld [vmem:[#allocation3 + $0x20] sm:$0xff]
      %v1098 = vld [vmem:[#allocation3 + $0x28] sm:$0xff]
      %v1099 = vld [vmem:[#allocation3 + $0x30] sm:$0xff]
      %v1100 = vld [vmem:[#allocation3 + $0x38] sm:$0xff]
      %v1101 = vld [vmem:[#allocation3 + $0x40] sm:$0xff]
      %v1102 = vld [vmem:[#allocation3 + $0x48] sm:$0xff]
      %v1103 = vld [vmem:[#allocation3 + $0x50] sm:$0xff]
      %v1104 = vld [vmem:[#allocation3 + $0x58] sm:$0xff]
      %v1105 = vld [vmem:[#allocation3 + $0x60] sm:$0xff]
      %v1106 = vld [vmem:[#allocation3 + $0x68] sm:$0xff]
      %v1107 = vld [vmem:[#allocation3 + $0x70] sm:$0xff]
      %v1108 = vld [vmem:[#allocation3 + $0x78] sm:$0xff]
      %v1109 = vld [vmem:[#allocation3 + $0x80] sm:$0xff]
      %v1110 = vld [vmem:[#allocation3 + $0x88] sm:$0xff]
      %v1111 = vld [vmem:[#allocation3 + $0x90] sm:$0xff]
      %v1112 = vld [vmem:[#allocation3 + $0x98] sm:$0xff]
      %v1113 = vld [vmem:[#allocation3 + $0xa0] sm:$0xff]
      %v1114 = vld [vmem:[#allocation3 + $0xa8] sm:$0xff]
      %v1115 = vld [vmem:[#allocation3 + $0xb0] sm:$0xff]
      %v1116 = vld [vmem:[#allocation3 + $0xb8] sm:$0xff]
      %v1117 = vld [vmem:[#allocation3 + $0xc0] sm:$0xff]
      %v1118 = vld [vmem:[#allocation3 + $0xc8] sm:$0xff]
      %v1119 = vld [vmem:[#allocation3 + $0xd0] sm:$0xff]
      %v1120 = vld [vmem:[#allocation3 + $0xd8] sm:$0xff]
      %v1121 = vld [vmem:[#allocation3 + $0xe0] sm:$0xff]
      %v1122 = vld [vmem:[#allocation3 + $0xe8] sm:$0xff]
      %v1123 = vld [vmem:[#allocation3 + $0xf0] sm:$0xff]
      %v1124 = vld [vmem:[#allocation3 + $0xf8] sm:$0xff]
      %s1125 = scalar_lea.vmem %s1, 4
      %v1126 = vld [vmem:[%s1125] sm:$0x3]
      %v1128 = vsel %vm204, %v1077, 0
      %v1131 = vsel %vm204, %v1078, 0
      %v1134 = vsel %vm204, %v1079, 0
      %v1137 = vsel %vm204, %v1080, 0
      %v1140 = vsel %vm204, %v1081, 0
      %v1143 = vsel %vm204, %v1082, 0
      %v1146 = vsel %vm204, %v1083, 0
      %v1149 = vsel %vm204, %v1084, 0
      %v1152 = vsel %vm204, %v1085, 0
      %v1155 = vsel %vm204, %v1086, 0
      %v1158 = vsel %vm204, %v1087, 0
      %v1161 = vsel %vm204, %v1088, 0
      %v1164 = vsel %vm204, %v1089, 0
      %v1167 = vsel %vm204, %v1090, 0
      %v1170 = vsel %vm204, %v1091, 0
      %v1173 = vsel %vm204, %v1092, 0
      %v1176 = vand.u32 %v1126, %v458
      %1178 = vmatprep.subr.bf16.mxu0 0
      %1179 = vmatpush1.bf16.msra.mxu0 %v1176
      %1180 = vmatprep.subr.bf16.mxu0 0
      %1181 = vmatpush1.bf16.msra.mxu0 0
      %1182 = vmatprep.subr.bf16.mxu0 0
      %1183 = vmatpush1.bf16.msra.mxu0 0
      %1184 = vmatprep.subr.bf16.mxu0 0
      %1185 = vmatpush1.bf16.msra.mxu0 0
      %1186 = vmatprep.subr.bf16.mxu0 0
      %1187 = vmatpush1.bf16.msra.mxu0 0
      %1188 = vmatprep.subr.bf16.mxu0 0
      %1189 = vmatpush1.bf16.msra.mxu0 0
      %1190 = vmatprep.subr.bf16.mxu0 0
      %1191 = vmatpush1.bf16.msra.mxu0 0
      %1192 = vmatprep.subr.bf16.mxu0 0
      %1193 = vmatpush1.bf16.msra.mxu0 0
      %1194 = vmatprep.subr.bf16.mxu0 0
      %1195 = vmatpush1.bf16.msra.mxu0 0
      %1196 = vmatprep.subr.bf16.mxu0 0
      %1197 = vmatpush1.bf16.msra.mxu0 0
      %1198 = vmatprep.subr.bf16.mxu0 0
      %1199 = vmatpush1.bf16.msra.mxu0 0
      %1200 = vmatprep.subr.bf16.mxu0 0
      %1201 = vmatpush1.bf16.msra.mxu0 0
      %1202 = vmatprep.subr.bf16.mxu0 0
      %1203 = vmatpush1.bf16.msra.mxu0 0
      %1204 = vmatprep.subr.bf16.mxu0 0
      %1205 = vmatpush1.bf16.msra.mxu0 0
      %1206 = vmatprep.subr.bf16.mxu0 0
      %1207 = vmatpush1.bf16.msra.mxu0 0
      %1208 = vmatprep.subr.bf16.mxu0 0
      %1209 = vmatpush1.bf16.msra.mxu0 0
      %1210 = vmatprep.mubr.bf16.mxu0 0
      %1211 = vmatmul.mubr.bf16.gmra.mrb[0].mxu0 %v1128
      %v1212 = vpop.f32.mrb[0].mxu0
      %v1213 = vadd.f32 0.0, %v1212
      %v1214 = vpop.f32.mrb[0].mxu0
      %v1215 = vpop.f32.mrb[0].mxu0
      %v1216 = vadd.f32 0.0, %v1215
      %v1217 = vpop.f32.mrb[0].mxu0
      %1218 = vmatprep.mubr.bf16.mxu0 0
      %1219 = vmatmul.mubr.bf16.gmra.mrb[0].mxu0 %v1131
      %v1220 = vpop.f32.mrb[0].mxu0
      %v1221 = vadd.f32 0.0, %v1220
      %v1222 = vpop.f32.mrb[0].mxu0
      %v1223 = vpop.f32.mrb[0].mxu0
      %v1224 = vadd.f32 0.0, %v1223
      %v1225 = vpop.f32.mrb[0].mxu0
      %1226 = vmatprep.mubr.bf16.mxu0 0
      %1227 = vmatmul.mubr.bf16.gmra.mrb[0].mxu0 %v1134
      %v1228 = vpop.f32.mrb[0].mxu0
      %v1229 = vadd.f32 0.0, %v1228
      %v1230 = vpop.f32.mrb[0].mxu0
      %v1231 = vpop.f32.mrb[0].mxu0
      %v1232 = vadd.f32 0.0, %v1231
      %v1233 = vpop.f32.mrb[0].mxu0
      %1234 = vmatprep.mubr.bf16.mxu0 0
      %1235 = vmatmul.mubr.bf16.gmra.mrb[0].mxu0 %v1137
      %v1236 = vpop.f32.mrb[0].mxu0
      %v1237 = vadd.f32 0.0, %v1236
      %v1238 = vpop.f32.mrb[0].mxu0
      %v1239 = vpop.f32.mrb[0].mxu0
      %v1240 = vadd.f32 0.0, %v1239
      %v1241 = vpop.f32.mrb[0].mxu0
      %1242 = vmatprep.mubr.bf16.mxu0 0
      %1243 = vmatmul.mubr.bf16.gmra.mrb[0].mxu0 %v1140
      %v1244 = vpop.f32.mrb[0].mxu0
      %v1245 = vadd.f32 0.0, %v1244
      %v1246 = vpop.f32.mrb[0].mxu0
      %v1247 = vpop.f32.mrb[0].mxu0
      %v1248 = vadd.f32 0.0, %v1247
      %v1249 = vpop.f32.mrb[0].mxu0
      %1250 = vmatprep.mubr.bf16.mxu0 0
      %1251 = vmatmul.mubr.bf16.gmra.mrb[0].mxu0 %v1143
      %v1252 = vpop.f32.mrb[0].mxu0
      %v1253 = vadd.f32 0.0, %v1252
      %v1254 = vpop.f32.mrb[0].mxu0
      %v1255 = vpop.f32.mrb[0].mxu0
      %v1256 = vadd.f32 0.0, %v1255
      %v1257 = vpop.f32.mrb[0].mxu0
      %1258 = vmatprep.mubr.bf16.mxu0 0
      %1259 = vmatmul.mubr.bf16.gmra.mrb[0].mxu0 %v1146
      %v1260 = vpop.f32.mrb[0].mxu0
      %v1261 = vadd.f32 0.0, %v1260
      %v1262 = vpop.f32.mrb[0].mxu0
      %v1263 = vpop.f32.mrb[0].mxu0
      %v1264 = vadd.f32 0.0, %v1263
      %v1265 = vpop.f32.mrb[0].mxu0
      %1266 = vmatprep.mubr.bf16.mxu0 0
      %1267 = vmatmul.mubr.bf16.gmra.mrb[0].mxu0 %v1149
      %v1268 = vpop.f32.mrb[0].mxu0
      %v1269 = vadd.f32 0.0, %v1268
      %v1270 = vpop.f32.mrb[0].mxu0
      %v1271 = vpop.f32.mrb[0].mxu0
      %v1272 = vadd.f32 0.0, %v1271
      %v1273 = vpop.f32.mrb[0].mxu0
      %1274 = vmatprep.mubr.bf16.mxu0 0
      %1275 = vmatmul.mubr.bf16.gmra.mrb[0].mxu0 %v1152
      %v1276 = vpop.f32.mrb[0].mxu0
      %v1277 = vadd.f32 0.0, %v1276
      %v1278 = vpop.f32.mrb[0].mxu0
      %v1279 = vpop.f32.mrb[0].mxu0
      %v1280 = vadd.f32 0.0, %v1279
      %v1281 = vpop.f32.mrb[0].mxu0
      %1282 = vmatprep.mubr.bf16.mxu0 0
      %1283 = vmatmul.mubr.bf16.gmra.mrb[0].mxu0 %v1155
      %v1284 = vpop.f32.mrb[0].mxu0
      %v1285 = vadd.f32 0.0, %v1284
      %v1286 = vpop.f32.mrb[0].mxu0
      %v1287 = vpop.f32.mrb[0].mxu0
      %v1288 = vadd.f32 0.0, %v1287
      %v1289 = vpop.f32.mrb[0].mxu0
      %1290 = vmatprep.mubr.bf16.mxu0 0
      %1291 = vmatmul.mubr.bf16.gmra.mrb[0].mxu0 %v1158
      %v1292 = vpop.f32.mrb[0].mxu0
      %v1293 = vadd.f32 0.0, %v1292
      %v1294 = vpop.f32.mrb[0].mxu0
      %v1295 = vpop.f32.mrb[0].mxu0
      %v1296 = vadd.f32 0.0, %v1295
      %v1297 = vpop.f32.mrb[0].mxu0
      %1298 = vmatprep.mubr.bf16.mxu0 0
      %1299 = vmatmul.mubr.bf16.gmra.mrb[0].mxu0 %v1161
      %v1300 = vpop.f32.mrb[0].mxu0
      %v1301 = vadd.f32 0.0, %v1300
      %v1302 = vpop.f32.mrb[0].mxu0
      %v1303 = vpop.f32.mrb[0].mxu0
      %v1304 = vadd.f32 0.0, %v1303
      %v1305 = vpop.f32.mrb[0].mxu0
      %1306 = vmatprep.mubr.bf16.mxu0 0
      %1307 = vmatmul.mubr.bf16.gmra.mrb[0].mxu0 %v1164
      %v1308 = vpop.f32.mrb[0].mxu0
      %v1309 = vadd.f32 0.0, %v1308
      %v1310 = vpop.f32.mrb[0].mxu0
      %v1311 = vpop.f32.mrb[0].mxu0
      %v1312 = vadd.f32 0.0, %v1311
      %v1313 = vpop.f32.mrb[0].mxu0
      %1314 = vmatprep.mubr.bf16.mxu0 0
      %1315 = vmatmul.mubr.bf16.gmra.mrb[0].mxu0 %v1167
      %v1316 = vpop.f32.mrb[0].mxu0
      %v1317 = vadd.f32 0.0, %v1316
      %v1318 = vpop.f32.mrb[0].mxu0
      %v1319 = vpop.f32.mrb[0].mxu0
      %v1320 = vadd.f32 0.0, %v1319
      %v1321 = vpop.f32.mrb[0].mxu0
      %1322 = vmatprep.mubr.bf16.mxu0 0
      %1323 = vmatmul.mubr.bf16.gmra.mrb[0].mxu0 %v1170
      %v1324 = vpop.f32.mrb[0].mxu0
      %v1325 = vadd.f32 0.0, %v1324
      %v1326 = vpop.f32.mrb[0].mxu0
      %v1327 = vpop.f32.mrb[0].mxu0
      %v1328 = vadd.f32 0.0, %v1327
      %v1329 = vpop.f32.mrb[0].mxu0
      %1330 = vmatprep.mubr.bf16.mxu0 0
      %1331 = vmatmul.mubr.bf16.gmra.mrb[0].mxu0 %v1173
      %v1332 = vpop.f32.mrb[0].mxu0
      %v1333 = vadd.f32 0.0, %v1332
      %v1334 = vpop.f32.mrb[0].mxu0
      %v1335 = vpop.f32.mrb[0].mxu0
      %v1336 = vadd.f32 0.0, %v1335
      %v1337 = vpop.f32.mrb[0].mxu0
      %1338 = vdwg.mxu0
      %v1339 = vadd.f32 %v1093, %v1213
      %v1340 = vadd.f32 %v1094, %v1216
      %v1341 = vadd.f32 %v1095, %v1221
      %v1342 = vadd.f32 %v1096, %v1224
      %v1343 = vadd.f32 %v1097, %v1229
      %v1344 = vadd.f32 %v1098, %v1232
      %v1345 = vadd.f32 %v1099, %v1237
      %v1346 = vadd.f32 %v1100, %v1240
      %v1347 = vadd.f32 %v1101, %v1245
      %v1348 = vadd.f32 %v1102, %v1248
      %v1349 = vadd.f32 %v1103, %v1253
      %v1350 = vadd.f32 %v1104, %v1256
      %v1351 = vadd.f32 %v1105, %v1261
      %v1352 = vadd.f32 %v1106, %v1264
      %v1353 = vadd.f32 %v1107, %v1269
      %v1354 = vadd.f32 %v1108, %v1272
      %v1355 = vadd.f32 %v1109, %v1277
      %v1356 = vadd.f32 %v1110, %v1280
      %v1357 = vadd.f32 %v1111, %v1285
      %v1358 = vadd.f32 %v1112, %v1288
      %v1359 = vadd.f32 %v1113, %v1293
      %v1360 = vadd.f32 %v1114, %v1296
      %v1361 = vadd.f32 %v1115, %v1301
      %v1362 = vadd.f32 %v1116, %v1304
      %v1363 = vadd.f32 %v1117, %v1309
      %v1364 = vadd.f32 %v1118, %v1312
      %v1365 = vadd.f32 %v1119, %v1317
      %v1366 = vadd.f32 %v1120, %v1320
      %v1367 = vadd.f32 %v1121, %v1325
      %v1368 = vadd.f32 %v1122, %v1328
      %v1369 = vadd.f32 %v1123, %v1333
      %v1370 = vadd.f32 %v1124, %v1336
      %1371 = vst.msk [vmem:[#allocation3] sm:$0xff] %vm293, %v1339
      %1372 = vst.msk [vmem:[#allocation3 + $0x8] sm:$0xff] %vm293, %v1340
      %1373 = vst.msk [vmem:[#allocation3 + $0x10] sm:$0xff] %vm293, %v1341
      %1374 = vst.msk [vmem:[#allocation3 + $0x18] sm:$0xff] %vm293, %v1342
      %1375 = vst.msk [vmem:[#allocation3 + $0x20] sm:$0xff] %vm293, %v1343
      %1376 = vst.msk [vmem:[#allocation3 + $0x28] sm:$0xff] %vm293, %v1344
      %1377 = vst.msk [vmem:[#allocation3 + $0x30] sm:$0xff] %vm293, %v1345
      %1378 = vst.msk [vmem:[#allocation3 + $0x38] sm:$0xff] %vm293, %v1346
      %1379 = vst.msk [vmem:[#allocation3 + $0x40] sm:$0xff] %vm293, %v1347
      %1380 = vst.msk [vmem:[#allocation3 + $0x48] sm:$0xff] %vm293, %v1348
      %1381 = vst.msk [vmem:[#allocation3 + $0x50] sm:$0xff] %vm293, %v1349
      %1382 = vst.msk [vmem:[#allocation3 + $0x58] sm:$0xff] %vm293, %v1350
      %1383 = vst.msk [vmem:[#allocation3 + $0x60] sm:$0xff] %vm293, %v1351
      %1384 = vst.msk [vmem:[#allocation3 + $0x68] sm:$0xff] %vm293, %v1352
      %1385 = vst.msk [vmem:[#allocation3 + $0x70] sm:$0xff] %vm293, %v1353
      %1386 = vst.msk [vmem:[#allocation3 + $0x78] sm:$0xff] %vm293, %v1354
      %1387 = vst.msk [vmem:[#allocation3 + $0x80] sm:$0xff] %vm293, %v1355
      %1388 = vst.msk [vmem:[#allocation3 + $0x88] sm:$0xff] %vm293, %v1356
      %1389 = vst.msk [vmem:[#allocation3 + $0x90] sm:$0xff] %vm293, %v1357
      %1390 = vst.msk [vmem:[#allocation3 + $0x98] sm:$0xff] %vm293, %v1358
      %1391 = vst.msk [vmem:[#allocation3 + $0xa0] sm:$0xff] %vm293, %v1359
      %1392 = vst.msk [vmem:[#allocation3 + $0xa8] sm:$0xff] %vm293, %v1360
      %1393 = vst.msk [vmem:[#allocation3 + $0xb0] sm:$0xff] %vm293, %v1361
      %1394 = vst.msk [vmem:[#allocation3 + $0xb8] sm:$0xff] %vm293, %v1362
      %1395 = vst.msk [vmem:[#allocation3 + $0xc0] sm:$0xff] %vm293, %v1363
      %1396 = vst.msk [vmem:[#allocation3 + $0xc8] sm:$0xff] %vm293, %v1364
      %1397 = vst.msk [vmem:[#allocation3 + $0xd0] sm:$0xff] %vm293, %v1365
      %1398 = vst.msk [vmem:[#allocation3 + $0xd8] sm:$0xff] %vm293, %v1366
      %1399 = vst.msk [vmem:[#allocation3 + $0xe0] sm:$0xff] %vm293, %v1367
      %1400 = vst.msk [vmem:[#allocation3 + $0xe8] sm:$0xff] %vm293, %v1368
      %1401 = vst.msk [vmem:[#allocation3 + $0xf0] sm:$0xff] %vm293, %v1369
      %1402 = vst.msk [vmem:[#allocation3 + $0xf8] sm:$0xff] %vm293, %v1370
      %v1403 = vld [vmem:[%s260] sm:$0xff]
      %v1404 = vld [vmem:[%s260 + $0x8] sm:$0xff]
      %v1405 = vld [vmem:[%s260 + $0x18] sm:$0xff]
      %v1406 = vld [vmem:[%s260 + $0x20] sm:$0xff]
      %v1407 = vld [vmem:[%s260 + $0x30] sm:$0xff]
      %v1408 = vld [vmem:[%s260 + $0x38] sm:$0xff]
      %v1409 = vld [vmem:[%s260 + $0x48] sm:$0xff]
      %v1410 = vld [vmem:[%s260 + $0x50] sm:$0xff]
      %v1411 = vld [vmem:[%s260 + $0x60] sm:$0xff]
      %v1412 = vld [vmem:[%s260 + $0x68] sm:$0xff]
      %v1413 = vld [vmem:[%s260 + $0x78] sm:$0xff]
      %v1414 = vld [vmem:[%s260 + $0x80] sm:$0xff]
      %v1415 = vld [vmem:[%s260 + $0x90] sm:$0xff]
      %v1416 = vld [vmem:[%s260 + $0x98] sm:$0xff]
      %v1417 = vld [vmem:[%s260 + $0xa8] sm:$0xff]
      %v1418 = vld [vmem:[%s260 + $0xb0] sm:$0xff]
      %v1419 = vld [vmem:[%s260 + $0xc0] sm:$0xff]
      %v1420 = vld [vmem:[%s260 + $0xc8] sm:$0xff]
      %v1421 = vld [vmem:[%s260 + $0xd8] sm:$0xff]
      %v1422 = vld [vmem:[%s260 + $0xe0] sm:$0xff]
      %v1423 = vld [vmem:[%s260 + $0xf0] sm:$0xff]
      %v1424 = vld [vmem:[%s260 + $0xf8] sm:$0xff]
      %v1425 = vld [vmem:[%s260 + $0x108] sm:$0xff]
      %v1426 = vld [vmem:[%s260 + $0x110] sm:$0xff]
      %v1427 = vld [vmem:[%s260 + $0x120] sm:$0xff]
      %v1428 = vld [vmem:[%s260 + $0x128] sm:$0xff]
      %v1429 = vld [vmem:[%s260 + $0x138] sm:$0xff]
      %v1430 = vld [vmem:[%s260 + $0x140] sm:$0xff]
      %v1431 = vld [vmem:[%s260 + $0x150] sm:$0xff]
      %v1432 = vld [vmem:[%s260 + $0x158] sm:$0xff]
      %v1433 = vld [vmem:[%s260 + $0x168] sm:$0xff]
      %v1434 = vld [vmem:[%s260 + $0x170] sm:$0xff]
      %v1435 = vpack.c.bf16 %v1404, %v1403
      %v1436 = vpack.c.bf16 %v1406, %v1405
      %v1437 = vpack.c.bf16 %v1408, %v1407
      %v1438 = vpack.c.bf16 %v1410, %v1409
      %v1439 = vpack.c.bf16 %v1412, %v1411
      %v1440 = vpack.c.bf16 %v1414, %v1413
      %v1441 = vpack.c.bf16 %v1416, %v1415
      %v1442 = vpack.c.bf16 %v1418, %v1417
      %v1443 = vpack.c.bf16 %v1420, %v1419
      %v1444 = vpack.c.bf16 %v1422, %v1421
      %v1445 = vpack.c.bf16 %v1424, %v1423
      %v1446 = vpack.c.bf16 %v1426, %v1425
      %v1447 = vpack.c.bf16 %v1428, %v1427
      %v1448 = vpack.c.bf16 %v1430, %v1429
      %v1449 = vpack.c.bf16 %v1432, %v1431
      %v1450 = vpack.c.bf16 %v1434, %v1433
      %v1451 = vld [vmem:[#allocation3] sm:$0xff]
      %v1452 = vld [vmem:[#allocation3 + $0x8] sm:$0xff]
      %v1453 = vld [vmem:[#allocation3 + $0x10] sm:$0xff]
      %v1454 = vld [vmem:[#allocation3 + $0x18] sm:$0xff]
      %v1455 = vld [vmem:[#allocation3 + $0x20] sm:$0xff]
      %v1456 = vld [vmem:[#allocation3 + $0x28] sm:$0xff]
      %v1457 = vld [vmem:[#allocation3 + $0x30] sm:$0xff]
      %v1458 = vld [vmem:[#allocation3 + $0x38] sm:$0xff]
      %v1459 = vld [vmem:[#allocation3 + $0x40] sm:$0xff]
      %v1460 = vld [vmem:[#allocation3 + $0x48] sm:$0xff]
      %v1461 = vld [vmem:[#allocation3 + $0x50] sm:$0xff]
      %v1462 = vld [vmem:[#allocation3 + $0x58] sm:$0xff]
      %v1463 = vld [vmem:[#allocation3 + $0x60] sm:$0xff]
      %v1464 = vld [vmem:[#allocation3 + $0x68] sm:$0xff]
      %v1465 = vld [vmem:[#allocation3 + $0x70] sm:$0xff]
      %v1466 = vld [vmem:[#allocation3 + $0x78] sm:$0xff]
      %v1467 = vld [vmem:[#allocation3 + $0x80] sm:$0xff]
      %v1468 = vld [vmem:[#allocation3 + $0x88] sm:$0xff]
      %v1469 = vld [vmem:[#allocation3 + $0x90] sm:$0xff]
      %v1470 = vld [vmem:[#allocation3 + $0x98] sm:$0xff]
      %v1471 = vld [vmem:[#allocation3 + $0xa0] sm:$0xff]
      %v1472 = vld [vmem:[#allocation3 + $0xa8] sm:$0xff]
      %v1473 = vld [vmem:[#allocation3 + $0xb0] sm:$0xff]
      %v1474 = vld [vmem:[#allocation3 + $0xb8] sm:$0xff]
      %v1475 = vld [vmem:[#allocation3 + $0xc0] sm:$0xff]
      %v1476 = vld [vmem:[#allocation3 + $0xc8] sm:$0xff]
      %v1477 = vld [vmem:[#allocation3 + $0xd0] sm:$0xff]
      %v1478 = vld [vmem:[#allocation3 + $0xd8] sm:$0xff]
      %v1479 = vld [vmem:[#allocation3 + $0xe0] sm:$0xff]
      %v1480 = vld [vmem:[#allocation3 + $0xe8] sm:$0xff]
      %v1481 = vld [vmem:[#allocation3 + $0xf0] sm:$0xff]
      %v1482 = vld [vmem:[#allocation3 + $0xf8] sm:$0xff]
      %s1483 = scalar_lea.vmem %s1, 6
      %v1484 = vld [vmem:[%s1483] sm:$0x3]
      %v1486 = vsel %vm204, %v1435, 0
      %v1489 = vsel %vm204, %v1436, 0
      %v1492 = vsel %vm204, %v1437, 0
      %v1495 = vsel %vm204, %v1438, 0
      %v1498 = vsel %vm204, %v1439, 0
      %v1501 = vsel %vm204, %v1440, 0
      %v1504 = vsel %vm204, %v1441, 0
      %v1507 = vsel %vm204, %v1442, 0
      %v1510 = vsel %vm204, %v1443, 0
      %v1513 = vsel %vm204, %v1444, 0
      %v1516 = vsel %vm204, %v1445, 0
      %v1519 = vsel %vm204, %v1446, 0
      %v1522 = vsel %vm204, %v1447, 0
      %v1525 = vsel %vm204, %v1448, 0
      %v1528 = vsel %vm204, %v1449, 0
      %v1531 = vsel %vm204, %v1450, 0
      %v1534 = vand.u32 %v1484, %v458
      %1536 = vmatprep.subr.bf16.mxu0 0
      %1537 = vmatpush1.bf16.msra.mxu0 %v1534
      %1538 = vmatprep.subr.bf16.mxu0 0
      %1539 = vmatpush1.bf16.msra.mxu0 0
      %1540 = vmatprep.subr.bf16.mxu0 0
      %1541 = vmatpush1.bf16.msra.mxu0 0
      %1542 = vmatprep.subr.bf16.mxu0 0
      %1543 = vmatpush1.bf16.msra.mxu0 0
      %1544 = vmatprep.subr.bf16.mxu0 0
      %1545 = vmatpush1.bf16.msra.mxu0 0
      %1546 = vmatprep.subr.bf16.mxu0 0
      %1547 = vmatpush1.bf16.msra.mxu0 0
      %1548 = vmatprep.subr.bf16.mxu0 0
      %1549 = vmatpush1.bf16.msra.mxu0 0
      %1550 = vmatprep.subr.bf16.mxu0 0
      %1551 = vmatpush1.bf16.msra.mxu0 0
      %1552 = vmatprep.subr.bf16.mxu0 0
      %1553 = vmatpush1.bf16.msra.mxu0 0
      %1554 = vmatprep.subr.bf16.mxu0 0
      %1555 = vmatpush1.bf16.msra.mxu0 0
      %1556 = vmatprep.subr.bf16.mxu0 0
      %1557 = vmatpush1.bf16.msra.mxu0 0
      %1558 = vmatprep.subr.bf16.mxu0 0
      %1559 = vmatpush1.bf16.msra.mxu0 0
      %1560 = vmatprep.subr.bf16.mxu0 0
      %1561 = vmatpush1.bf16.msra.mxu0 0
      %1562 = vmatprep.subr.bf16.mxu0 0
      %1563 = vmatpush1.bf16.msra.mxu0 0
      %1564 = vmatprep.subr.bf16.mxu0 0
      %1565 = vmatpush1.bf16.msra.mxu0 0
      %1566 = vmatprep.subr.bf16.mxu0 0
      %1567 = vmatpush1.bf16.msra.mxu0 0
      %1568 = vmatprep.mubr.bf16.mxu0 0
      %1569 = vmatmul.mubr.bf16.gmra.mrb[0].mxu0 %v1486
      %v1570 = vpop.f32.mrb[0].mxu0
      %v1571 = vadd.f32 0.0, %v1570
      %v1572 = vpop.f32.mrb[0].mxu0
      %v1573 = vpop.f32.mrb[0].mxu0
      %v1574 = vadd.f32 0.0, %v1573
      %v1575 = vpop.f32.mrb[0].mxu0
      %1576 = vmatprep.mubr.bf16.mxu0 0
      %1577 = vmatmul.mubr.bf16.gmra.mrb[0].mxu0 %v1489
      %v1578 = vpop.f32.mrb[0].mxu0
      %v1579 = vadd.f32 0.0, %v1578
      %v1580 = vpop.f32.mrb[0].mxu0
      %v1581 = vpop.f32.mrb[0].mxu0
      %v1582 = vadd.f32 0.0, %v1581
      %v1583 = vpop.f32.mrb[0].mxu0
      %1584 = vmatprep.mubr.bf16.mxu0 0
      %1585 = vmatmul.mubr.bf16.gmra.mrb[0].mxu0 %v1492
      %v1586 = vpop.f32.mrb[0].mxu0
      %v1587 = vadd.f32 0.0, %v1586
      %v1588 = vpop.f32.mrb[0].mxu0
      %v1589 = vpop.f32.mrb[0].mxu0
      %v1590 = vadd.f32 0.0, %v1589
      %v1591 = vpop.f32.mrb[0].mxu0
      %1592 = vmatprep.mubr.bf16.mxu0 0
      %1593 = vmatmul.mubr.bf16.gmra.mrb[0].mxu0 %v1495
      %v1594 = vpop.f32.mrb[0].mxu0
      %v1595 = vadd.f32 0.0, %v1594
      %v1596 = vpop.f32.mrb[0].mxu0
      %v1597 = vpop.f32.mrb[0].mxu0
      %v1598 = vadd.f32 0.0, %v1597
      %v1599 = vpop.f32.mrb[0].mxu0
      %1600 = vmatprep.mubr.bf16.mxu0 0
      %1601 = vmatmul.mubr.bf16.gmra.mrb[0].mxu0 %v1498
      %v1602 = vpop.f32.mrb[0].mxu0
      %v1603 = vadd.f32 0.0, %v1602
      %v1604 = vpop.f32.mrb[0].mxu0
      %v1605 = vpop.f32.mrb[0].mxu0
      %v1606 = vadd.f32 0.0, %v1605
      %v1607 = vpop.f32.mrb[0].mxu0
      %1608 = vmatprep.mubr.bf16.mxu0 0
      %1609 = vmatmul.mubr.bf16.gmra.mrb[0].mxu0 %v1501
      %v1610 = vpop.f32.mrb[0].mxu0
      %v1611 = vadd.f32 0.0, %v1610
      %v1612 = vpop.f32.mrb[0].mxu0
      %v1613 = vpop.f32.mrb[0].mxu0
      %v1614 = vadd.f32 0.0, %v1613
      %v1615 = vpop.f32.mrb[0].mxu0
      %1616 = vmatprep.mubr.bf16.mxu0 0
      %1617 = vmatmul.mubr.bf16.gmra.mrb[0].mxu0 %v1504
      %v1618 = vpop.f32.mrb[0].mxu0
      %v1619 = vadd.f32 0.0, %v1618
      %v1620 = vpop.f32.mrb[0].mxu0
      %v1621 = vpop.f32.mrb[0].mxu0
      %v1622 = vadd.f32 0.0, %v1621
      %v1623 = vpop.f32.mrb[0].mxu0
      %1624 = vmatprep.mubr.bf16.mxu0 0
      %1625 = vmatmul.mubr.bf16.gmra.mrb[0].mxu0 %v1507
      %v1626 = vpop.f32.mrb[0].mxu0
      %v1627 = vadd.f32 0.0, %v1626
      %v1628 = vpop.f32.mrb[0].mxu0
      %v1629 = vpop.f32.mrb[0].mxu0
      %v1630 = vadd.f32 0.0, %v1629
      %v1631 = vpop.f32.mrb[0].mxu0
      %1632 = vmatprep.mubr.bf16.mxu0 0
      %1633 = vmatmul.mubr.bf16.gmra.mrb[0].mxu0 %v1510
      %v1634 = vpop.f32.mrb[0].mxu0
      %v1635 = vadd.f32 0.0, %v1634
      %v1636 = vpop.f32.mrb[0].mxu0
      %v1637 = vpop.f32.mrb[0].mxu0
      %v1638 = vadd.f32 0.0, %v1637
      %v1639 = vpop.f32.mrb[0].mxu0
      %1640 = vmatprep.mubr.bf16.mxu0 0
      %1641 = vmatmul.mubr.bf16.gmra.mrb[0].mxu0 %v1513
      %v1642 = vpop.f32.mrb[0].mxu0
      %v1643 = vadd.f32 0.0, %v1642
      %v1644 = vpop.f32.mrb[0].mxu0
      %v1645 = vpop.f32.mrb[0].mxu0
      %v1646 = vadd.f32 0.0, %v1645
      %v1647 = vpop.f32.mrb[0].mxu0
      %1648 = vmatprep.mubr.bf16.mxu0 0
      %1649 = vmatmul.mubr.bf16.gmra.mrb[0].mxu0 %v1516
      %v1650 = vpop.f32.mrb[0].mxu0
      %v1651 = vadd.f32 0.0, %v1650
      %v1652 = vpop.f32.mrb[0].mxu0
      %v1653 = vpop.f32.mrb[0].mxu0
      %v1654 = vadd.f32 0.0, %v1653
      %v1655 = vpop.f32.mrb[0].mxu0
      %1656 = vmatprep.mubr.bf16.mxu0 0
      %1657 = vmatmul.mubr.bf16.gmra.mrb[0].mxu0 %v1519
      %v1658 = vpop.f32.mrb[0].mxu0
      %v1659 = vadd.f32 0.0, %v1658
      %v1660 = vpop.f32.mrb[0].mxu0
      %v1661 = vpop.f32.mrb[0].mxu0
      %v1662 = vadd.f32 0.0, %v1661
      %v1663 = vpop.f32.mrb[0].mxu0
      %1664 = vmatprep.mubr.bf16.mxu0 0
      %1665 = vmatmul.mubr.bf16.gmra.mrb[0].mxu0 %v1522
      %v1666 = vpop.f32.mrb[0].mxu0
      %v1667 = vadd.f32 0.0, %v1666
      %v1668 = vpop.f32.mrb[0].mxu0
      %v1669 = vpop.f32.mrb[0].mxu0
      %v1670 = vadd.f32 0.0, %v1669
      %v1671 = vpop.f32.mrb[0].mxu0
      %1672 = vmatprep.mubr.bf16.mxu0 0
      %1673 = vmatmul.mubr.bf16.gmra.mrb[0].mxu0 %v1525
      %v1674 = vpop.f32.mrb[0].mxu0
      %v1675 = vadd.f32 0.0, %v1674
      %v1676 = vpop.f32.mrb[0].mxu0
      %v1677 = vpop.f32.mrb[0].mxu0
      %v1678 = vadd.f32 0.0, %v1677
      %v1679 = vpop.f32.mrb[0].mxu0
      %1680 = vmatprep.mubr.bf16.mxu0 0
      %1681 = vmatmul.mubr.bf16.gmra.mrb[0].mxu0 %v1528
      %v1682 = vpop.f32.mrb[0].mxu0
      %v1683 = vadd.f32 0.0, %v1682
      %v1684 = vpop.f32.mrb[0].mxu0
      %v1685 = vpop.f32.mrb[0].mxu0
      %v1686 = vadd.f32 0.0, %v1685
      %v1687 = vpop.f32.mrb[0].mxu0
      %1688 = vmatprep.mubr.bf16.mxu0 0
      %1689 = vmatmul.mubr.bf16.gmra.mrb[0].mxu0 %v1531
      %v1690 = vpop.f32.mrb[0].mxu0
      %v1691 = vadd.f32 0.0, %v1690
      %v1692 = vpop.f32.mrb[0].mxu0
      %v1693 = vpop.f32.mrb[0].mxu0
      %v1694 = vadd.f32 0.0, %v1693
      %v1695 = vpop.f32.mrb[0].mxu0
      %1696 = vdwg.mxu0
      %v1697 = vadd.f32 %v1451, %v1571
      %v1698 = vadd.f32 %v1452, %v1574
      %v1699 = vadd.f32 %v1453, %v1579
      %v1700 = vadd.f32 %v1454, %v1582
      %v1701 = vadd.f32 %v1455, %v1587
      %v1702 = vadd.f32 %v1456, %v1590
      %v1703 = vadd.f32 %v1457, %v1595
      %v1704 = vadd.f32 %v1458, %v1598
      %v1705 = vadd.f32 %v1459, %v1603
      %v1706 = vadd.f32 %v1460, %v1606
      %v1707 = vadd.f32 %v1461, %v1611
      %v1708 = vadd.f32 %v1462, %v1614
      %v1709 = vadd.f32 %v1463, %v1619
      %v1710 = vadd.f32 %v1464, %v1622
      %v1711 = vadd.f32 %v1465, %v1627
      %v1712 = vadd.f32 %v1466, %v1630
      %v1713 = vadd.f32 %v1467, %v1635
      %v1714 = vadd.f32 %v1468, %v1638
      %v1715 = vadd.f32 %v1469, %v1643
      %v1716 = vadd.f32 %v1470, %v1646
      %v1717 = vadd.f32 %v1471, %v1651
      %v1718 = vadd.f32 %v1472, %v1654
      %v1719 = vadd.f32 %v1473, %v1659
      %v1720 = vadd.f32 %v1474, %v1662
      %v1721 = vadd.f32 %v1475, %v1667
      %v1722 = vadd.f32 %v1476, %v1670
      %v1723 = vadd.f32 %v1477, %v1675
      %v1724 = vadd.f32 %v1478, %v1678
      %v1725 = vadd.f32 %v1479, %v1683
      %v1726 = vadd.f32 %v1480, %v1686
      %v1727 = vadd.f32 %v1481, %v1691
      %v1728 = vadd.f32 %v1482, %v1694
      %1729 = vst.msk [vmem:[#allocation3] sm:$0xff] %vm293, %v1697
      %1730 = vst.msk [vmem:[#allocation3 + $0x8] sm:$0xff] %vm293, %v1698
      %1731 = vst.msk [vmem:[#allocation3 + $0x10] sm:$0xff] %vm293, %v1699
      %1732 = vst.msk [vmem:[#allocation3 + $0x18] sm:$0xff] %vm293, %v1700
      %1733 = vst.msk [vmem:[#allocation3 + $0x20] sm:$0xff] %vm293, %v1701
      %1734 = vst.msk [vmem:[#allocation3 + $0x28] sm:$0xff] %vm293, %v1702
      %1735 = vst.msk [vmem:[#allocation3 + $0x30] sm:$0xff] %vm293, %v1703
      %1736 = vst.msk [vmem:[#allocation3 + $0x38] sm:$0xff] %vm293, %v1704
      %1737 = vst.msk [vmem:[#allocation3 + $0x40] sm:$0xff] %vm293, %v1705
      %1738 = vst.msk [vmem:[#allocation3 + $0x48] sm:$0xff] %vm293, %v1706
      %1739 = vst.msk [vmem:[#allocation3 + $0x50] sm:$0xff] %vm293, %v1707
      %1740 = vst.msk [vmem:[#allocation3 + $0x58] sm:$0xff] %vm293, %v1708
      %1741 = vst.msk [vmem:[#allocation3 + $0x60] sm:$0xff] %vm293, %v1709
      %1742 = vst.msk [vmem:[#allocation3 + $0x68] sm:$0xff] %vm293, %v1710
      %1743 = vst.msk [vmem:[#allocation3 + $0x70] sm:$0xff] %vm293, %v1711
      %1744 = vst.msk [vmem:[#allocation3 + $0x78] sm:$0xff] %vm293, %v1712
      %1745 = vst.msk [vmem:[#allocation3 + $0x80] sm:$0xff] %vm293, %v1713
      %1746 = vst.msk [vmem:[#allocation3 + $0x88] sm:$0xff] %vm293, %v1714
      %1747 = vst.msk [vmem:[#allocation3 + $0x90] sm:$0xff] %vm293, %v1715
      %1748 = vst.msk [vmem:[#allocation3 + $0x98] sm:$0xff] %vm293, %v1716
      %1749 = vst.msk [vmem:[#allocation3 + $0xa0] sm:$0xff] %vm293, %v1717
      %1750 = vst.msk [vmem:[#allocation3 + $0xa8] sm:$0xff] %vm293, %v1718
      %1751 = vst.msk [vmem:[#allocation3 + $0xb0] sm:$0xff] %vm293, %v1719
      %1752 = vst.msk [vmem:[#allocation3 + $0xb8] sm:$0xff] %vm293, %v1720
      %1753 = vst.msk [vmem:[#allocation3 + $0xc0] sm:$0xff] %vm293, %v1721
      %1754 = vst.msk [vmem:[#allocation3 + $0xc8] sm:$0xff] %vm293, %v1722
      %1755 = vst.msk [vmem:[#allocation3 + $0xd0] sm:$0xff] %vm293, %v1723
      %1756 = vst.msk [vmem:[#allocation3 + $0xd8] sm:$0xff] %vm293, %v1724
      %1757 = vst.msk [vmem:[#allocation3 + $0xe0] sm:$0xff] %vm293, %v1725
      %1758 = vst.msk [vmem:[#allocation3 + $0xe8] sm:$0xff] %vm293, %v1726
      %1759 = vst.msk [vmem:[#allocation3 + $0xf0] sm:$0xff] %vm293, %v1727
      %1760 = vst.msk [vmem:[#allocation3 + $0xf8] sm:$0xff] %vm293, %v1728
      %v1761 = vld [vmem:[%s260 + $0x1] sm:$0xff]
      %v1762 = vld [vmem:[%s260 + $0x9] sm:$0xff]
      %v1763 = vld [vmem:[%s260 + $0x19] sm:$0xff]
      %v1764 = vld [vmem:[%s260 + $0x21] sm:$0xff]
      %v1765 = vld [vmem:[%s260 + $0x31] sm:$0xff]
      %v1766 = vld [vmem:[%s260 + $0x39] sm:$0xff]
      %v1767 = vld [vmem:[%s260 + $0x49] sm:$0xff]
      %v1768 = vld [vmem:[%s260 + $0x51] sm:$0xff]
      %v1769 = vld [vmem:[%s260 + $0x61] sm:$0xff]
      %v1770 = vld [vmem:[%s260 + $0x69] sm:$0xff]
      %v1771 = vld [vmem:[%s260 + $0x79] sm:$0xff]
      %v1772 = vld [vmem:[%s260 + $0x81] sm:$0xff]
      %v1773 = vld [vmem:[%s260 + $0x91] sm:$0xff]
      %v1774 = vld [vmem:[%s260 + $0x99] sm:$0xff]
      %v1775 = vld [vmem:[%s260 + $0xa9] sm:$0xff]
      %v1776 = vld [vmem:[%s260 + $0xb1] sm:$0xff]
      %v1777 = vld [vmem:[%s260 + $0xc1] sm:$0xff]
      %v1778 = vld [vmem:[%s260 + $0xc9] sm:$0xff]
      %v1779 = vld [vmem:[%s260 + $0xd9] sm:$0xff]
      %v1780 = vld [vmem:[%s260 + $0xe1] sm:$0xff]
      %v1781 = vld [vmem:[%s260 + $0xf1] sm:$0xff]
      %v1782 = vld [vmem:[%s260 + $0xf9] sm:$0xff]
      %v1783 = vld [vmem:[%s260 + $0x109] sm:$0xff]
      %v1784 = vld [vmem:[%s260 + $0x111] sm:$0xff]
      %v1785 = vld [vmem:[%s260 + $0x121] sm:$0xff]
      %v1786 = vld [vmem:[%s260 + $0x129] sm:$0xff]
      %v1787 = vld [vmem:[%s260 + $0x139] sm:$0xff]
      %v1788 = vld [vmem:[%s260 + $0x141] sm:$0xff]
      %v1789 = vld [vmem:[%s260 + $0x151] sm:$0xff]
      %v1790 = vld [vmem:[%s260 + $0x159] sm:$0xff]
      %v1791 = vld [vmem:[%s260 + $0x169] sm:$0xff]
      %v1792 = vld [vmem:[%s260 + $0x171] sm:$0xff]
      %v1793 = vpack.c.bf16 %v1762, %v1761
      %v1794 = vpack.c.bf16 %v1764, %v1763
      %v1795 = vpack.c.bf16 %v1766, %v1765
      %v1796 = vpack.c.bf16 %v1768, %v1767
      %v1797 = vpack.c.bf16 %v1770, %v1769
      %v1798 = vpack.c.bf16 %v1772, %v1771
      %v1799 = vpack.c.bf16 %v1774, %v1773
      %v1800 = vpack.c.bf16 %v1776, %v1775
      %v1801 = vpack.c.bf16 %v1778, %v1777
      %v1802 = vpack.c.bf16 %v1780, %v1779
      %v1803 = vpack.c.bf16 %v1782, %v1781
      %v1804 = vpack.c.bf16 %v1784, %v1783
      %v1805 = vpack.c.bf16 %v1786, %v1785
      %v1806 = vpack.c.bf16 %v1788, %v1787
      %v1807 = vpack.c.bf16 %v1790, %v1789
      %v1808 = vpack.c.bf16 %v1792, %v1791
      %v1809 = vld [vmem:[#allocation3] sm:$0xff]
      %v1810 = vld [vmem:[#allocation3 + $0x8] sm:$0xff]
      %v1811 = vld [vmem:[#allocation3 + $0x10] sm:$0xff]
      %v1812 = vld [vmem:[#allocation3 + $0x18] sm:$0xff]
      %v1813 = vld [vmem:[#allocation3 + $0x20] sm:$0xff]
      %v1814 = vld [vmem:[#allocation3 + $0x28] sm:$0xff]
      %v1815 = vld [vmem:[#allocation3 + $0x30] sm:$0xff]
      %v1816 = vld [vmem:[#allocation3 + $0x38] sm:$0xff]
      %v1817 = vld [vmem:[#allocation3 + $0x40] sm:$0xff]
      %v1818 = vld [vmem:[#allocation3 + $0x48] sm:$0xff]
      %v1819 = vld [vmem:[#allocation3 + $0x50] sm:$0xff]
      %v1820 = vld [vmem:[#allocation3 + $0x58] sm:$0xff]
      %v1821 = vld [vmem:[#allocation3 + $0x60] sm:$0xff]
      %v1822 = vld [vmem:[#allocation3 + $0x68] sm:$0xff]
      %v1823 = vld [vmem:[#allocation3 + $0x70] sm:$0xff]
      %v1824 = vld [vmem:[#allocation3 + $0x78] sm:$0xff]
      %v1825 = vld [vmem:[#allocation3 + $0x80] sm:$0xff]
      %v1826 = vld [vmem:[#allocation3 + $0x88] sm:$0xff]
      %v1827 = vld [vmem:[#allocation3 + $0x90] sm:$0xff]
      %v1828 = vld [vmem:[#allocation3 + $0x98] sm:$0xff]
      %v1829 = vld [vmem:[#allocation3 + $0xa0] sm:$0xff]
      %v1830 = vld [vmem:[#allocation3 + $0xa8] sm:$0xff]
      %v1831 = vld [vmem:[#allocation3 + $0xb0] sm:$0xff]
      %v1832 = vld [vmem:[#allocation3 + $0xb8] sm:$0xff]
      %v1833 = vld [vmem:[#allocation3 + $0xc0] sm:$0xff]
      %v1834 = vld [vmem:[#allocation3 + $0xc8] sm:$0xff]
      %v1835 = vld [vmem:[#allocation3 + $0xd0] sm:$0xff]
      %v1836 = vld [vmem:[#allocation3 + $0xd8] sm:$0xff]
      %v1837 = vld [vmem:[#allocation3 + $0xe0] sm:$0xff]
      %v1838 = vld [vmem:[#allocation3 + $0xe8] sm:$0xff]
      %v1839 = vld [vmem:[#allocation3 + $0xf0] sm:$0xff]
      %v1840 = vld [vmem:[#allocation3 + $0xf8] sm:$0xff]
      %s1841 = scalar_lea.vmem %s1, 8
      %v1842 = vld [vmem:[%s1841] sm:$0x3]
      %v1844 = vsel %vm204, %v1793, 0
      %v1847 = vsel %vm204, %v1794, 0
      %v1850 = vsel %vm204, %v1795, 0
      %v1853 = vsel %vm204, %v1796, 0
      %v1856 = vsel %vm204, %v1797, 0
      %v1859 = vsel %vm204, %v1798, 0
      %v1862 = vsel %vm204, %v1799, 0
      %v1865 = vsel %vm204, %v1800, 0
      %v1868 = vsel %vm204, %v1801, 0
      %v1871 = vsel %vm204, %v1802, 0
      %v1874 = vsel %vm204, %v1803, 0
      %v1877 = vsel %vm204, %v1804, 0
      %v1880 = vsel %vm204, %v1805, 0
      %v1883 = vsel %vm204, %v1806, 0
      %v1886 = vsel %vm204, %v1807, 0
      %v1889 = vsel %vm204, %v1808, 0
      %v1892 = vand.u32 %v1842, %v458
      %1894 = vmatprep.subr.bf16.mxu0 0
      %1895 = vmatpush1.bf16.msra.mxu0 %v1892
      %1896 = vmatprep.subr.bf16.mxu0 0
      %1897 = vmatpush1.bf16.msra.mxu0 0
      %1898 = vmatprep.subr.bf16.mxu0 0
      %1899 = vmatpush1.bf16.msra.mxu0 0
      %1900 = vmatprep.subr.bf16.mxu0 0
      %1901 = vmatpush1.bf16.msra.mxu0 0
      %1902 = vmatprep.subr.bf16.mxu0 0
      %1903 = vmatpush1.bf16.msra.mxu0 0
      %1904 = vmatprep.subr.bf16.mxu0 0
      %1905 = vmatpush1.bf16.msra.mxu0 0
      %1906 = vmatprep.subr.bf16.mxu0 0
      %1907 = vmatpush1.bf16.msra.mxu0 0
      %1908 = vmatprep.subr.bf16.mxu0 0
      %1909 = vmatpush1.bf16.msra.mxu0 0
      %1910 = vmatprep.subr.bf16.mxu0 0
      %1911 = vmatpush1.bf16.msra.mxu0 0
      %1912 = vmatprep.subr.bf16.mxu0 0
      %1913 = vmatpush1.bf16.msra.mxu0 0
      %1914 = vmatprep.subr.bf16.mxu0 0
      %1915 = vmatpush1.bf16.msra.mxu0 0
      %1916 = vmatprep.subr.bf16.mxu0 0
      %1917 = vmatpush1.bf16.msra.mxu0 0
      %1918 = vmatprep.subr.bf16.mxu0 0
      %1919 = vmatpush1.bf16.msra.mxu0 0
      %1920 = vmatprep.subr.bf16.mxu0 0
      %1921 = vmatpush1.bf16.msra.mxu0 0
      %1922 = vmatprep.subr.bf16.mxu0 0
      %1923 = vmatpush1.bf16.msra.mxu0 0
      %1924 = vmatprep.subr.bf16.mxu0 0
      %1925 = vmatpush1.bf16.msra.mxu0 0
      %1926 = vmatprep.mubr.bf16.mxu0 0
      %1927 = vmatmul.mubr.bf16.gmra.mrb[0].mxu0 %v1844
      %v1928 = vpop.f32.mrb[0].mxu0
      %v1929 = vadd.f32 0.0, %v1928
      %v1930 = vpop.f32.mrb[0].mxu0
      %v1931 = vpop.f32.mrb[0].mxu0
      %v1932 = vadd.f32 0.0, %v1931
      %v1933 = vpop.f32.mrb[0].mxu0
      %1934 = vmatprep.mubr.bf16.mxu0 0
      %1935 = vmatmul.mubr.bf16.gmra.mrb[0].mxu0 %v1847
      %v1936 = vpop.f32.mrb[0].mxu0
      %v1937 = vadd.f32 0.0, %v1936
      %v1938 = vpop.f32.mrb[0].mxu0
      %v1939 = vpop.f32.mrb[0].mxu0
      %v1940 = vadd.f32 0.0, %v1939
      %v1941 = vpop.f32.mrb[0].mxu0
      %1942 = vmatprep.mubr.bf16.mxu0 0
      %1943 = vmatmul.mubr.bf16.gmra.mrb[0].mxu0 %v1850
      %v1944 = vpop.f32.mrb[0].mxu0
      %v1945 = vadd.f32 0.0, %v1944
      %v1946 = vpop.f32.mrb[0].mxu0
      %v1947 = vpop.f32.mrb[0].mxu0
      %v1948 = vadd.f32 0.0, %v1947
      %v1949 = vpop.f32.mrb[0].mxu0
      %1950 = vmatprep.mubr.bf16.mxu0 0
      %1951 = vmatmul.mubr.bf16.gmra.mrb[0].mxu0 %v1853
      %v1952 = vpop.f32.mrb[0].mxu0
      %v1953 = vadd.f32 0.0, %v1952
      %v1954 = vpop.f32.mrb[0].mxu0
      %v1955 = vpop.f32.mrb[0].mxu0
      %v1956 = vadd.f32 0.0, %v1955
      %v1957 = vpop.f32.mrb[0].mxu0
      %1958 = vmatprep.mubr.bf16.mxu0 0
      %1959 = vmatmul.mubr.bf16.gmra.mrb[0].mxu0 %v1856
      %v1960 = vpop.f32.mrb[0].mxu0
      %v1961 = vadd.f32 0.0, %v1960
      %v1962 = vpop.f32.mrb[0].mxu0
      %v1963 = vpop.f32.mrb[0].mxu0
      %v1964 = vadd.f32 0.0, %v1963
      %v1965 = vpop.f32.mrb[0].mxu0
      %1966 = vmatprep.mubr.bf16.mxu0 0
      %1967 = vmatmul.mubr.bf16.gmra.mrb[0].mxu0 %v1859
      %v1968 = vpop.f32.mrb[0].mxu0
      %v1969 = vadd.f32 0.0, %v1968
      %v1970 = vpop.f32.mrb[0].mxu0
      %v1971 = vpop.f32.mrb[0].mxu0
      %v1972 = vadd.f32 0.0, %v1971
      %v1973 = vpop.f32.mrb[0].mxu0
      %1974 = vmatprep.mubr.bf16.mxu0 0
      %1975 = vmatmul.mubr.bf16.gmra.mrb[0].mxu0 %v1862
      %v1976 = vpop.f32.mrb[0].mxu0
      %v1977 = vadd.f32 0.0, %v1976
      %v1978 = vpop.f32.mrb[0].mxu0
      %v1979 = vpop.f32.mrb[0].mxu0
      %v1980 = vadd.f32 0.0, %v1979
      %v1981 = vpop.f32.mrb[0].mxu0
      %1982 = vmatprep.mubr.bf16.mxu0 0
      %1983 = vmatmul.mubr.bf16.gmra.mrb[0].mxu0 %v1865
      %v1984 = vpop.f32.mrb[0].mxu0
      %v1985 = vadd.f32 0.0, %v1984
      %v1986 = vpop.f32.mrb[0].mxu0
      %v1987 = vpop.f32.mrb[0].mxu0
      %v1988 = vadd.f32 0.0, %v1987
      %v1989 = vpop.f32.mrb[0].mxu0
      %1990 = vmatprep.mubr.bf16.mxu0 0
      %1991 = vmatmul.mubr.bf16.gmra.mrb[0].mxu0 %v1868
      %v1992 = vpop.f32.mrb[0].mxu0
      %v1993 = vadd.f32 0.0, %v1992
      %v1994 = vpop.f32.mrb[0].mxu0
      %v1995 = vpop.f32.mrb[0].mxu0
      %v1996 = vadd.f32 0.0, %v1995
      %v1997 = vpop.f32.mrb[0].mxu0
      %1998 = vmatprep.mubr.bf16.mxu0 0
      %1999 = vmatmul.mubr.bf16.gmra.mrb[0].mxu0 %v1871
      %v2000 = vpop.f32.mrb[0].mxu0
      %v2001 = vadd.f32 0.0, %v2000
      %v2002 = vpop.f32.mrb[0].mxu0
      %v2003 = vpop.f32.mrb[0].mxu0
      %v2004 = vadd.f32 0.0, %v2003
      %v2005 = vpop.f32.mrb[0].mxu0
      %2006 = vmatprep.mubr.bf16.mxu0 0
      %2007 = vmatmul.mubr.bf16.gmra.mrb[0].mxu0 %v1874
      %v2008 = vpop.f32.mrb[0].mxu0
      %v2009 = vadd.f32 0.0, %v2008
      %v2010 = vpop.f32.mrb[0].mxu0
      %v2011 = vpop.f32.mrb[0].mxu0
      %v2012 = vadd.f32 0.0, %v2011
      %v2013 = vpop.f32.mrb[0].mxu0
      %2014 = vmatprep.mubr.bf16.mxu0 0
      %2015 = vmatmul.mubr.bf16.gmra.mrb[0].mxu0 %v1877
      %v2016 = vpop.f32.mrb[0].mxu0
      %v2017 = vadd.f32 0.0, %v2016
      %v2018 = vpop.f32.mrb[0].mxu0
      %v2019 = vpop.f32.mrb[0].mxu0
      %v2020 = vadd.f32 0.0, %v2019
      %v2021 = vpop.f32.mrb[0].mxu0
      %2022 = vmatprep.mubr.bf16.mxu0 0
      %2023 = vmatmul.mubr.bf16.gmra.mrb[0].mxu0 %v1880
      %v2024 = vpop.f32.mrb[0].mxu0
      %v2025 = vadd.f32 0.0, %v2024
      %v2026 = vpop.f32.mrb[0].mxu0
      %v2027 = vpop.f32.mrb[0].mxu0
      %v2028 = vadd.f32 0.0, %v2027
      %v2029 = vpop.f32.mrb[0].mxu0
      %2030 = vmatprep.mubr.bf16.mxu0 0
      %2031 = vmatmul.mubr.bf16.gmra.mrb[0].mxu0 %v1883
      %v2032 = vpop.f32.mrb[0].mxu0
      %v2033 = vadd.f32 0.0, %v2032
      %v2034 = vpop.f32.mrb[0].mxu0
      %v2035 = vpop.f32.mrb[0].mxu0
      %v2036 = vadd.f32 0.0, %v2035
      %v2037 = vpop.f32.mrb[0].mxu0
      %2038 = vmatprep.mubr.bf16.mxu0 0
      %2039 = vmatmul.mubr.bf16.gmra.mrb[0].mxu0 %v1886
      %v2040 = vpop.f32.mrb[0].mxu0
      %v2041 = vadd.f32 0.0, %v2040
      %v2042 = vpop.f32.mrb[0].mxu0
      %v2043 = vpop.f32.mrb[0].mxu0
      %v2044 = vadd.f32 0.0, %v2043
      %v2045 = vpop.f32.mrb[0].mxu0
      %2046 = vmatprep.mubr.bf16.mxu0 0
      %2047 = vmatmul.mubr.bf16.gmra.mrb[0].mxu0 %v1889
      %v2048 = vpop.f32.mrb[0].mxu0
      %v2049 = vadd.f32 0.0, %v2048
      %v2050 = vpop.f32.mrb[0].mxu0
      %v2051 = vpop.f32.mrb[0].mxu0
      %v2052 = vadd.f32 0.0, %v2051
      %v2053 = vpop.f32.mrb[0].mxu0
      %2054 = vdwg.mxu0
      %v2055 = vadd.f32 %v1809, %v1929
      %v2056 = vadd.f32 %v1810, %v1932
      %v2057 = vadd.f32 %v1811, %v1937
      %v2058 = vadd.f32 %v1812, %v1940
      %v2059 = vadd.f32 %v1813, %v1945
      %v2060 = vadd.f32 %v1814, %v1948
      %v2061 = vadd.f32 %v1815, %v1953
      %v2062 = vadd.f32 %v1816, %v1956
      %v2063 = vadd.f32 %v1817, %v1961
      %v2064 = vadd.f32 %v1818, %v1964
      %v2065 = vadd.f32 %v1819, %v1969
      %v2066 = vadd.f32 %v1820, %v1972
      %v2067 = vadd.f32 %v1821, %v1977
      %v2068 = vadd.f32 %v1822, %v1980
      %v2069 = vadd.f32 %v1823, %v1985
      %v2070 = vadd.f32 %v1824, %v1988
      %v2071 = vadd.f32 %v1825, %v1993
      %v2072 = vadd.f32 %v1826, %v1996
      %v2073 = vadd.f32 %v1827, %v2001
      %v2074 = vadd.f32 %v1828, %v2004
      %v2075 = vadd.f32 %v1829, %v2009
      %v2076 = vadd.f32 %v1830, %v2012
      %v2077 = vadd.f32 %v1831, %v2017
      %v2078 = vadd.f32 %v1832, %v2020
      %v2079 = vadd.f32 %v1833, %v2025
      %v2080 = vadd.f32 %v1834, %v2028
      %v2081 = vadd.f32 %v1835, %v2033
      %v2082 = vadd.f32 %v1836, %v2036
      %v2083 = vadd.f32 %v1837, %v2041
      %v2084 = vadd.f32 %v1838, %v2044
      %v2085 = vadd.f32 %v1839, %v2049
      %v2086 = vadd.f32 %v1840, %v2052
      %2087 = vst.msk [vmem:[#allocation3] sm:$0xff] %vm293, %v2055
      %2088 = vst.msk [vmem:[#allocation3 + $0x8] sm:$0xff] %vm293, %v2056
      %2089 = vst.msk [vmem:[#allocation3 + $0x10] sm:$0xff] %vm293, %v2057
      %2090 = vst.msk [vmem:[#allocation3 + $0x18] sm:$0xff] %vm293, %v2058
      %2091 = vst.msk [vmem:[#allocation3 + $0x20] sm:$0xff] %vm293, %v2059
      %2092 = vst.msk [vmem:[#allocation3 + $0x28] sm:$0xff] %vm293, %v2060
      %2093 = vst.msk [vmem:[#allocation3 + $0x30] sm:$0xff] %vm293, %v2061
      %2094 = vst.msk [vmem:[#allocation3 + $0x38] sm:$0xff] %vm293, %v2062
      %2095 = vst.msk [vmem:[#allocation3 + $0x40] sm:$0xff] %vm293, %v2063
      %2096 = vst.msk [vmem:[#allocation3 + $0x48] sm:$0xff] %vm293, %v2064
      %2097 = vst.msk [vmem:[#allocation3 + $0x50] sm:$0xff] %vm293, %v2065
      %2098 = vst.msk [vmem:[#allocation3 + $0x58] sm:$0xff] %vm293, %v2066
      %2099 = vst.msk [vmem:[#allocation3 + $0x60] sm:$0xff] %vm293, %v2067
      %2100 = vst.msk [vmem:[#allocation3 + $0x68] sm:$0xff] %vm293, %v2068
      %2101 = vst.msk [vmem:[#allocation3 + $0x70] sm:$0xff] %vm293, %v2069
      %2102 = vst.msk [vmem:[#allocation3 + $0x78] sm:$0xff] %vm293, %v2070
      %2103 = vst.msk [vmem:[#allocation3 + $0x80] sm:$0xff] %vm293, %v2071
      %2104 = vst.msk [vmem:[#allocation3 + $0x88] sm:$0xff] %vm293, %v2072
      %2105 = vst.msk [vmem:[#allocation3 + $0x90] sm:$0xff] %vm293, %v2073
      %2106 = vst.msk [vmem:[#allocation3 + $0x98] sm:$0xff] %vm293, %v2074
      %2107 = vst.msk [vmem:[#allocation3 + $0xa0] sm:$0xff] %vm293, %v2075
      %2108 = vst.msk [vmem:[#allocation3 + $0xa8] sm:$0xff] %vm293, %v2076
      %2109 = vst.msk [vmem:[#allocation3 + $0xb0] sm:$0xff] %vm293, %v2077
      %2110 = vst.msk [vmem:[#allocation3 + $0xb8] sm:$0xff] %vm293, %v2078
      %2111 = vst.msk [vmem:[#allocation3 + $0xc0] sm:$0xff] %vm293, %v2079
      %2112 = vst.msk [vmem:[#allocation3 + $0xc8] sm:$0xff] %vm293, %v2080
      %2113 = vst.msk [vmem:[#allocation3 + $0xd0] sm:$0xff] %vm293, %v2081
      %2114 = vst.msk [vmem:[#allocation3 + $0xd8] sm:$0xff] %vm293, %v2082
      %2115 = vst.msk [vmem:[#allocation3 + $0xe0] sm:$0xff] %vm293, %v2083
      %2116 = vst.msk [vmem:[#allocation3 + $0xe8] sm:$0xff] %vm293, %v2084
      %2117 = vst.msk [vmem:[#allocation3 + $0xf0] sm:$0xff] %vm293, %v2085
      %2118 = vst.msk [vmem:[#allocation3 + $0xf8] sm:$0xff] %vm293, %v2086
      %v2119 = vld [vmem:[%s260 + $0x2] sm:$0xff]
      %v2120 = vld [vmem:[%s260 + $0xa] sm:$0xff]
      %v2121 = vld [vmem:[%s260 + $0x1a] sm:$0xff]
      %v2122 = vld [vmem:[%s260 + $0x22] sm:$0xff]
      %v2123 = vld [vmem:[%s260 + $0x32] sm:$0xff]
      %v2124 = vld [vmem:[%s260 + $0x3a] sm:$0xff]
      %v2125 = vld [vmem:[%s260 + $0x4a] sm:$0xff]
      %v2126 = vld [vmem:[%s260 + $0x52] sm:$0xff]
      %v2127 = vld [vmem:[%s260 + $0x62] sm:$0xff]
      %v2128 = vld [vmem:[%s260 + $0x6a] sm:$0xff]
      %v2129 = vld [vmem:[%s260 + $0x7a] sm:$0xff]
      %v2130 = vld [vmem:[%s260 + $0x82] sm:$0xff]
      %v2131 = vld [vmem:[%s260 + $0x92] sm:$0xff]
      %v2132 = vld [vmem:[%s260 + $0x9a] sm:$0xff]
      %v2133 = vld [vmem:[%s260 + $0xaa] sm:$0xff]
      %v2134 = vld [vmem:[%s260 + $0xb2] sm:$0xff]
      %v2135 = vld [vmem:[%s260 + $0xc2] sm:$0xff]
      %v2136 = vld [vmem:[%s260 + $0xca] sm:$0xff]
      %v2137 = vld [vmem:[%s260 + $0xda] sm:$0xff]
      %v2138 = vld [vmem:[%s260 + $0xe2] sm:$0xff]
      %v2139 = vld [vmem:[%s260 + $0xf2] sm:$0xff]
      %v2140 = vld [vmem:[%s260 + $0xfa] sm:$0xff]
      %v2141 = vld [vmem:[%s260 + $0x10a] sm:$0xff]
      %v2142 = vld [vmem:[%s260 + $0x112] sm:$0xff]
      %v2143 = vld [vmem:[%s260 + $0x122] sm:$0xff]
      %v2144 = vld [vmem:[%s260 + $0x12a] sm:$0xff]
      %v2145 = vld [vmem:[%s260 + $0x13a] sm:$0xff]
      %v2146 = vld [vmem:[%s260 + $0x142] sm:$0xff]
      %v2147 = vld [vmem:[%s260 + $0x152] sm:$0xff]
      %v2148 = vld [vmem:[%s260 + $0x15a] sm:$0xff]
      %v2149 = vld [vmem:[%s260 + $0x16a] sm:$0xff]
      %v2150 = vld [vmem:[%s260 + $0x172] sm:$0xff]
      %v2151 = vpack.c.bf16 %v2120, %v2119
      %v2152 = vpack.c.bf16 %v2122, %v2121
      %v2153 = vpack.c.bf16 %v2124, %v2123
      %v2154 = vpack.c.bf16 %v2126, %v2125
      %v2155 = vpack.c.bf16 %v2128, %v2127
      %v2156 = vpack.c.bf16 %v2130, %v2129
      %v2157 = vpack.c.bf16 %v2132, %v2131
      %v2158 = vpack.c.bf16 %v2134, %v2133
      %v2159 = vpack.c.bf16 %v2136, %v2135
      %v2160 = vpack.c.bf16 %v2138, %v2137
      %v2161 = vpack.c.bf16 %v2140, %v2139
      %v2162 = vpack.c.bf16 %v2142, %v2141
      %v2163 = vpack.c.bf16 %v2144, %v2143
      %v2164 = vpack.c.bf16 %v2146, %v2145
      %v2165 = vpack.c.bf16 %v2148, %v2147
      %v2166 = vpack.c.bf16 %v2150, %v2149
      %v2167 = vld [vmem:[#allocation3] sm:$0xff]
      %v2168 = vld [vmem:[#allocation3 + $0x8] sm:$0xff]
      %v2169 = vld [vmem:[#allocation3 + $0x10] sm:$0xff]
      %v2170 = vld [vmem:[#allocation3 + $0x18] sm:$0xff]
      %v2171 = vld [vmem:[#allocation3 + $0x20] sm:$0xff]
      %v2172 = vld [vmem:[#allocation3 + $0x28] sm:$0xff]
      %v2173 = vld [vmem:[#allocation3 + $0x30] sm:$0xff]
      %v2174 = vld [vmem:[#allocation3 + $0x38] sm:$0xff]
      %v2175 = vld [vmem:[#allocation3 + $0x40] sm:$0xff]
      %v2176 = vld [vmem:[#allocation3 + $0x48] sm:$0xff]
      %v2177 = vld [vmem:[#allocation3 + $0x50] sm:$0xff]
      %v2178 = vld [vmem:[#allocation3 + $0x58] sm:$0xff]
      %v2179 = vld [vmem:[#allocation3 + $0x60] sm:$0xff]
      %v2180 = vld [vmem:[#allocation3 + $0x68] sm:$0xff]
      %v2181 = vld [vmem:[#allocation3 + $0x70] sm:$0xff]
      %v2182 = vld [vmem:[#allocation3 + $0x78] sm:$0xff]
      %v2183 = vld [vmem:[#allocation3 + $0x80] sm:$0xff]
      %v2184 = vld [vmem:[#allocation3 + $0x88] sm:$0xff]
      %v2185 = vld [vmem:[#allocation3 + $0x90] sm:$0xff]
      %v2186 = vld [vmem:[#allocation3 + $0x98] sm:$0xff]
      %v2187 = vld [vmem:[#allocation3 + $0xa0] sm:$0xff]
      %v2188 = vld [vmem:[#allocation3 + $0xa8] sm:$0xff]
      %v2189 = vld [vmem:[#allocation3 + $0xb0] sm:$0xff]
      %v2190 = vld [vmem:[#allocation3 + $0xb8] sm:$0xff]
      %v2191 = vld [vmem:[#allocation3 + $0xc0] sm:$0xff]
      %v2192 = vld [vmem:[#allocation3 + $0xc8] sm:$0xff]
      %v2193 = vld [vmem:[#allocation3 + $0xd0] sm:$0xff]
      %v2194 = vld [vmem:[#allocation3 + $0xd8] sm:$0xff]
      %v2195 = vld [vmem:[#allocation3 + $0xe0] sm:$0xff]
      %v2196 = vld [vmem:[#allocation3 + $0xe8] sm:$0xff]
      %v2197 = vld [vmem:[#allocation3 + $0xf0] sm:$0xff]
      %v2198 = vld [vmem:[#allocation3 + $0xf8] sm:$0xff]
      %s2199 = scalar_lea.vmem %s1, 10
      %v2200 = vld [vmem:[%s2199] sm:$0x3]
      %v2202 = vsel %vm204, %v2151, 0
      %v2205 = vsel %vm204, %v2152, 0
      %v2208 = vsel %vm204, %v2153, 0
      %v2211 = vsel %vm204, %v2154, 0
      %v2214 = vsel %vm204, %v2155, 0
      %v2217 = vsel %vm204, %v2156, 0
      %v2220 = vsel %vm204, %v2157, 0
      %v2223 = vsel %vm204, %v2158, 0
      %v2226 = vsel %vm204, %v2159, 0
      %v2229 = vsel %vm204, %v2160, 0
      %v2232 = vsel %vm204, %v2161, 0
      %v2235 = vsel %vm204, %v2162, 0
      %v2238 = vsel %vm204, %v2163, 0
      %v2241 = vsel %vm204, %v2164, 0
      %v2244 = vsel %vm204, %v2165, 0
      %v2247 = vsel %vm204, %v2166, 0
      %v2250 = vand.u32 %v2200, %v458
      %2252 = vmatprep.subr.bf16.mxu0 0
      %2253 = vmatpush1.bf16.msra.mxu0 %v2250
      %2254 = vmatprep.subr.bf16.mxu0 0
      %2255 = vmatpush1.bf16.msra.mxu0 0
      %2256 = vmatprep.subr.bf16.mxu0 0
      %2257 = vmatpush1.bf16.msra.mxu0 0
      %2258 = vmatprep.subr.bf16.mxu0 0
      %2259 = vmatpush1.bf16.msra.mxu0 0
      %2260 = vmatprep.subr.bf16.mxu0 0
      %2261 = vmatpush1.bf16.msra.mxu0 0
      %2262 = vmatprep.subr.bf16.mxu0 0
      %2263 = vmatpush1.bf16.msra.mxu0 0
      %2264 = vmatprep.subr.bf16.mxu0 0
      %2265 = vmatpush1.bf16.msra.mxu0 0
      %2266 = vmatprep.subr.bf16.mxu0 0
      %2267 = vmatpush1.bf16.msra.mxu0 0
      %2268 = vmatprep.subr.bf16.mxu0 0
      %2269 = vmatpush1.bf16.msra.mxu0 0
      %2270 = vmatprep.subr.bf16.mxu0 0
      %2271 = vmatpush1.bf16.msra.mxu0 0
      %2272 = vmatprep.subr.bf16.mxu0 0
      %2273 = vmatpush1.bf16.msra.mxu0 0
      %2274 = vmatprep.subr.bf16.mxu0 0
      %2275 = vmatpush1.bf16.msra.mxu0 0
      %2276 = vmatprep.subr.bf16.mxu0 0
      %2277 = vmatpush1.bf16.msra.mxu0 0
      %2278 = vmatprep.subr.bf16.mxu0 0
      %2279 = vmatpush1.bf16.msra.mxu0 0
      %2280 = vmatprep.subr.bf16.mxu0 0
      %2281 = vmatpush1.bf16.msra.mxu0 0
      %2282 = vmatprep.subr.bf16.mxu0 0
      %2283 = vmatpush1.bf16.msra.mxu0 0
      %2284 = vmatprep.mubr.bf16.mxu0 0
      %2285 = vmatmul.mubr.bf16.gmra.mrb[0].mxu0 %v2202
      %v2286 = vpop.f32.mrb[0].mxu0
      %v2287 = vadd.f32 0.0, %v2286
      %v2288 = vpop.f32.mrb[0].mxu0
      %v2289 = vpop.f32.mrb[0].mxu0
      %v2290 = vadd.f32 0.0, %v2289
      %v2291 = vpop.f32.mrb[0].mxu0
      %2292 = vmatprep.mubr.bf16.mxu0 0
      %2293 = vmatmul.mubr.bf16.gmra.mrb[0].mxu0 %v2205
      %v2294 = vpop.f32.mrb[0].mxu0
      %v2295 = vadd.f32 0.0, %v2294
      %v2296 = vpop.f32.mrb[0].mxu0
      %v2297 = vpop.f32.mrb[0].mxu0
      %v2298 = vadd.f32 0.0, %v2297
      %v2299 = vpop.f32.mrb[0].mxu0
      %2300 = vmatprep.mubr.bf16.mxu0 0
      %2301 = vmatmul.mubr.bf16.gmra.mrb[0].mxu0 %v2208
      %v2302 = vpop.f32.mrb[0].mxu0
      %v2303 = vadd.f32 0.0, %v2302
      %v2304 = vpop.f32.mrb[0].mxu0
      %v2305 = vpop.f32.mrb[0].mxu0
      %v2306 = vadd.f32 0.0, %v2305
      %v2307 = vpop.f32.mrb[0].mxu0
      %2308 = vmatprep.mubr.bf16.mxu0 0
      %2309 = vmatmul.mubr.bf16.gmra.mrb[0].mxu0 %v2211
      %v2310 = vpop.f32.mrb[0].mxu0
      %v2311 = vadd.f32 0.0, %v2310
      %v2312 = vpop.f32.mrb[0].mxu0
      %v2313 = vpop.f32.mrb[0].mxu0
      %v2314 = vadd.f32 0.0, %v2313
      %v2315 = vpop.f32.mrb[0].mxu0
      %2316 = vmatprep.mubr.bf16.mxu0 0
      %2317 = vmatmul.mubr.bf16.gmra.mrb[0].mxu0 %v2214
      %v2318 = vpop.f32.mrb[0].mxu0
      %v2319 = vadd.f32 0.0, %v2318
      %v2320 = vpop.f32.mrb[0].mxu0
      %v2321 = vpop.f32.mrb[0].mxu0
      %v2322 = vadd.f32 0.0, %v2321
      %v2323 = vpop.f32.mrb[0].mxu0
      %2324 = vmatprep.mubr.bf16.mxu0 0
      %2325 = vmatmul.mubr.bf16.gmra.mrb[0].mxu0 %v2217
      %v2326 = vpop.f32.mrb[0].mxu0
      %v2327 = vadd.f32 0.0, %v2326
      %v2328 = vpop.f32.mrb[0].mxu0
      %v2329 = vpop.f32.mrb[0].mxu0
      %v2330 = vadd.f32 0.0, %v2329
      %v2331 = vpop.f32.mrb[0].mxu0
      %2332 = vmatprep.mubr.bf16.mxu0 0
      %2333 = vmatmul.mubr.bf16.gmra.mrb[0].mxu0 %v2220
      %v2334 = vpop.f32.mrb[0].mxu0
      %v2335 = vadd.f32 0.0, %v2334
      %v2336 = vpop.f32.mrb[0].mxu0
      %v2337 = vpop.f32.mrb[0].mxu0
      %v2338 = vadd.f32 0.0, %v2337
      %v2339 = vpop.f32.mrb[0].mxu0
      %2340 = vmatprep.mubr.bf16.mxu0 0
      %2341 = vmatmul.mubr.bf16.gmra.mrb[0].mxu0 %v2223
      %v2342 = vpop.f32.mrb[0].mxu0
      %v2343 = vadd.f32 0.0, %v2342
      %v2344 = vpop.f32.mrb[0].mxu0
      %v2345 = vpop.f32.mrb[0].mxu0
      %v2346 = vadd.f32 0.0, %v2345
      %v2347 = vpop.f32.mrb[0].mxu0
      %2348 = vmatprep.mubr.bf16.mxu0 0
      %2349 = vmatmul.mubr.bf16.gmra.mrb[0].mxu0 %v2226
      %v2350 = vpop.f32.mrb[0].mxu0
      %v2351 = vadd.f32 0.0, %v2350
      %v2352 = vpop.f32.mrb[0].mxu0
      %v2353 = vpop.f32.mrb[0].mxu0
      %v2354 = vadd.f32 0.0, %v2353
      %v2355 = vpop.f32.mrb[0].mxu0
      %2356 = vmatprep.mubr.bf16.mxu0 0
      %2357 = vmatmul.mubr.bf16.gmra.mrb[0].mxu0 %v2229
      %v2358 = vpop.f32.mrb[0].mxu0
      %v2359 = vadd.f32 0.0, %v2358
      %v2360 = vpop.f32.mrb[0].mxu0
      %v2361 = vpop.f32.mrb[0].mxu0
      %v2362 = vadd.f32 0.0, %v2361
      %v2363 = vpop.f32.mrb[0].mxu0
      %2364 = vmatprep.mubr.bf16.mxu0 0
      %2365 = vmatmul.mubr.bf16.gmra.mrb[0].mxu0 %v2232
      %v2366 = vpop.f32.mrb[0].mxu0
      %v2367 = vadd.f32 0.0, %v2366
      %v2368 = vpop.f32.mrb[0].mxu0
      %v2369 = vpop.f32.mrb[0].mxu0
      %v2370 = vadd.f32 0.0, %v2369
      %v2371 = vpop.f32.mrb[0].mxu0
      %2372 = vmatprep.mubr.bf16.mxu0 0
      %2373 = vmatmul.mubr.bf16.gmra.mrb[0].mxu0 %v2235
      %v2374 = vpop.f32.mrb[0].mxu0
      %v2375 = vadd.f32 0.0, %v2374
      %v2376 = vpop.f32.mrb[0].mxu0
      %v2377 = vpop.f32.mrb[0].mxu0
      %v2378 = vadd.f32 0.0, %v2377
      %v2379 = vpop.f32.mrb[0].mxu0
      %2380 = vmatprep.mubr.bf16.mxu0 0
      %2381 = vmatmul.mubr.bf16.gmra.mrb[0].mxu0 %v2238
      %v2382 = vpop.f32.mrb[0].mxu0
      %v2383 = vadd.f32 0.0, %v2382
      %v2384 = vpop.f32.mrb[0].mxu0
      %v2385 = vpop.f32.mrb[0].mxu0
      %v2386 = vadd.f32 0.0, %v2385
      %v2387 = vpop.f32.mrb[0].mxu0
      %2388 = vmatprep.mubr.bf16.mxu0 0
      %2389 = vmatmul.mubr.bf16.gmra.mrb[0].mxu0 %v2241
      %v2390 = vpop.f32.mrb[0].mxu0
      %v2391 = vadd.f32 0.0, %v2390
      %v2392 = vpop.f32.mrb[0].mxu0
      %v2393 = vpop.f32.mrb[0].mxu0
      %v2394 = vadd.f32 0.0, %v2393
      %v2395 = vpop.f32.mrb[0].mxu0
      %2396 = vmatprep.mubr.bf16.mxu0 0
      %2397 = vmatmul.mubr.bf16.gmra.mrb[0].mxu0 %v2244
      %v2398 = vpop.f32.mrb[0].mxu0
      %v2399 = vadd.f32 0.0, %v2398
      %v2400 = vpop.f32.mrb[0].mxu0
      %v2401 = vpop.f32.mrb[0].mxu0
      %v2402 = vadd.f32 0.0, %v2401
      %v2403 = vpop.f32.mrb[0].mxu0
      %2404 = vmatprep.mubr.bf16.mxu0 0
      %2405 = vmatmul.mubr.bf16.gmra.mrb[0].mxu0 %v2247
      %v2406 = vpop.f32.mrb[0].mxu0
      %v2407 = vadd.f32 0.0, %v2406
      %v2408 = vpop.f32.mrb[0].mxu0
      %v2409 = vpop.f32.mrb[0].mxu0
      %v2410 = vadd.f32 0.0, %v2409
      %v2411 = vpop.f32.mrb[0].mxu0
      %2412 = vdwg.mxu0
      %v2413 = vadd.f32 %v2167, %v2287
      %v2414 = vadd.f32 %v2168, %v2290
      %v2415 = vadd.f32 %v2169, %v2295
      %v2416 = vadd.f32 %v2170, %v2298
      %v2417 = vadd.f32 %v2171, %v2303
      %v2418 = vadd.f32 %v2172, %v2306
      %v2419 = vadd.f32 %v2173, %v2311
      %v2420 = vadd.f32 %v2174, %v2314
      %v2421 = vadd.f32 %v2175, %v2319
      %v2422 = vadd.f32 %v2176, %v2322
      %v2423 = vadd.f32 %v2177, %v2327
      %v2424 = vadd.f32 %v2178, %v2330
      %v2425 = vadd.f32 %v2179, %v2335
      %v2426 = vadd.f32 %v2180, %v2338
      %v2427 = vadd.f32 %v2181, %v2343
      %v2428 = vadd.f32 %v2182, %v2346
      %v2429 = vadd.f32 %v2183, %v2351
      %v2430 = vadd.f32 %v2184, %v2354
      %v2431 = vadd.f32 %v2185, %v2359
      %v2432 = vadd.f32 %v2186, %v2362
      %v2433 = vadd.f32 %v2187, %v2367
      %v2434 = vadd.f32 %v2188, %v2370
      %v2435 = vadd.f32 %v2189, %v2375
      %v2436 = vadd.f32 %v2190, %v2378
      %v2437 = vadd.f32 %v2191, %v2383
      %v2438 = vadd.f32 %v2192, %v2386
      %v2439 = vadd.f32 %v2193, %v2391
      %v2440 = vadd.f32 %v2194, %v2394
      %v2441 = vadd.f32 %v2195, %v2399
      %v2442 = vadd.f32 %v2196, %v2402
      %v2443 = vadd.f32 %v2197, %v2407
      %v2444 = vadd.f32 %v2198, %v2410
      %2445 = vst.msk [vmem:[#allocation3] sm:$0xff] %vm293, %v2413
      %2446 = vst.msk [vmem:[#allocation3 + $0x8] sm:$0xff] %vm293, %v2414
      %2447 = vst.msk [vmem:[#allocation3 + $0x10] sm:$0xff] %vm293, %v2415
      %2448 = vst.msk [vmem:[#allocation3 + $0x18] sm:$0xff] %vm293, %v2416
      %2449 = vst.msk [vmem:[#allocation3 + $0x20] sm:$0xff] %vm293, %v2417
      %2450 = vst.msk [vmem:[#allocation3 + $0x28] sm:$0xff] %vm293, %v2418
      %2451 = vst.msk [vmem:[#allocation3 + $0x30] sm:$0xff] %vm293, %v2419
      %2452 = vst.msk [vmem:[#allocation3 + $0x38] sm:$0xff] %vm293, %v2420
      %2453 = vst.msk [vmem:[#allocation3 + $0x40] sm:$0xff] %vm293, %v2421
      %2454 = vst.msk [vmem:[#allocation3 + $0x48] sm:$0xff] %vm293, %v2422
      %2455 = vst.msk [vmem:[#allocation3 + $0x50] sm:$0xff] %vm293, %v2423
      %2456 = vst.msk [vmem:[#allocation3 + $0x58] sm:$0xff] %vm293, %v2424
      %2457 = vst.msk [vmem:[#allocation3 + $0x60] sm:$0xff] %vm293, %v2425
      %2458 = vst.msk [vmem:[#allocation3 + $0x68] sm:$0xff] %vm293, %v2426
      %2459 = vst.msk [vmem:[#allocation3 + $0x70] sm:$0xff] %vm293, %v2427
      %2460 = vst.msk [vmem:[#allocation3 + $0x78] sm:$0xff] %vm293, %v2428
      %2461 = vst.msk [vmem:[#allocation3 + $0x80] sm:$0xff] %vm293, %v2429
      %2462 = vst.msk [vmem:[#allocation3 + $0x88] sm:$0xff] %vm293, %v2430
      %2463 = vst.msk [vmem:[#allocation3 + $0x90] sm:$0xff] %vm293, %v2431
      %2464 = vst.msk [vmem:[#allocation3 + $0x98] sm:$0xff] %vm293, %v2432
      %2465 = vst.msk [vmem:[#allocation3 + $0xa0] sm:$0xff] %vm293, %v2433
      %2466 = vst.msk [vmem:[#allocation3 + $0xa8] sm:$0xff] %vm293, %v2434
      %2467 = vst.msk [vmem:[#allocation3 + $0xb0] sm:$0xff] %vm293, %v2435
      %2468 = vst.msk [vmem:[#allocation3 + $0xb8] sm:$0xff] %vm293, %v2436
      %2469 = vst.msk [vmem:[#allocation3 + $0xc0] sm:$0xff] %vm293, %v2437
      %2470 = vst.msk [vmem:[#allocation3 + $0xc8] sm:$0xff] %vm293, %v2438
      %2471 = vst.msk [vmem:[#allocation3 + $0xd0] sm:$0xff] %vm293, %v2439
      %2472 = vst.msk [vmem:[#allocation3 + $0xd8] sm:$0xff] %vm293, %v2440
      %2473 = vst.msk [vmem:[#allocation3 + $0xe0] sm:$0xff] %vm293, %v2441
      %2474 = vst.msk [vmem:[#allocation3 + $0xe8] sm:$0xff] %vm293, %v2442
      %2475 = vst.msk [vmem:[#allocation3 + $0xf0] sm:$0xff] %vm293, %v2443
      %2476 = vst.msk [vmem:[#allocation3 + $0xf8] sm:$0xff] %vm293, %v2444
      %s2477 = scalar_lea.vmem [#allocation2], 48
      %v2478 = vld [vmem:[%s2477] sm:$0xff]
      %v2479 = vld [vmem:[%s2477 + $0x8] sm:$0xff]
      %v2480 = vld [vmem:[%s2477 + $0x18] sm:$0xff]
      %v2481 = vld [vmem:[%s2477 + $0x20] sm:$0xff]
      %v2482 = vld [vmem:[%s2477 + $0x30] sm:$0xff]
      %v2483 = vld [vmem:[%s2477 + $0x38] sm:$0xff]
      %v2484 = vld [vmem:[%s2477 + $0x48] sm:$0xff]
      %v2485 = vld [vmem:[%s2477 + $0x50] sm:$0xff]
      %v2486 = vld [vmem:[%s2477 + $0x60] sm:$0xff]
      %v2487 = vld [vmem:[%s2477 + $0x68] sm:$0xff]
      %v2488 = vld [vmem:[%s2477 + $0x78] sm:$0xff]
      %v2489 = vld [vmem:[%s2477 + $0x80] sm:$0xff]
      %v2490 = vld [vmem:[%s2477 + $0x90] sm:$0xff]
      %v2491 = vld [vmem:[%s2477 + $0x98] sm:$0xff]
      %v2492 = vld [vmem:[%s2477 + $0xa8] sm:$0xff]
      %v2493 = vld [vmem:[%s2477 + $0xb0] sm:$0xff]
      %v2494 = vld [vmem:[%s2477 + $0xc0] sm:$0xff]
      %v2495 = vld [vmem:[%s2477 + $0xc8] sm:$0xff]
      %v2496 = vld [vmem:[%s2477 + $0xd8] sm:$0xff]
      %v2497 = vld [vmem:[%s2477 + $0xe0] sm:$0xff]
      %v2498 = vld [vmem:[%s2477 + $0xf0] sm:$0xff]
      %v2499 = vld [vmem:[%s2477 + $0xf8] sm:$0xff]
      %v2500 = vld [vmem:[%s2477 + $0x108] sm:$0xff]
      %v2501 = vld [vmem:[%s2477 + $0x110] sm:$0xff]
      %v2502 = vld [vmem:[%s2477 + $0x120] sm:$0xff]
      %v2503 = vld [vmem:[%s2477 + $0x128] sm:$0xff]
      %v2504 = vld [vmem:[%s2477 + $0x138] sm:$0xff]
      %v2505 = vld [vmem:[%s2477 + $0x140] sm:$0xff]
      %v2506 = vld [vmem:[%s2477 + $0x150] sm:$0xff]
      %v2507 = vld [vmem:[%s2477 + $0x158] sm:$0xff]
      %v2508 = vld [vmem:[%s2477 + $0x168] sm:$0xff]
      %v2509 = vld [vmem:[%s2477 + $0x170] sm:$0xff]
      %v2510 = vpack.c.bf16 %v2479, %v2478
      %v2511 = vpack.c.bf16 %v2481, %v2480
      %v2512 = vpack.c.bf16 %v2483, %v2482
      %v2513 = vpack.c.bf16 %v2485, %v2484
      %v2514 = vpack.c.bf16 %v2487, %v2486
      %v2515 = vpack.c.bf16 %v2489, %v2488
      %v2516 = vpack.c.bf16 %v2491, %v2490
      %v2517 = vpack.c.bf16 %v2493, %v2492
      %v2518 = vpack.c.bf16 %v2495, %v2494
      %v2519 = vpack.c.bf16 %v2497, %v2496
      %v2520 = vpack.c.bf16 %v2499, %v2498
      %v2521 = vpack.c.bf16 %v2501, %v2500
      %v2522 = vpack.c.bf16 %v2503, %v2502
      %v2523 = vpack.c.bf16 %v2505, %v2504
      %v2524 = vpack.c.bf16 %v2507, %v2506
      %v2525 = vpack.c.bf16 %v2509, %v2508
      %v2526 = vld [vmem:[#allocation3] sm:$0xff]
      %v2527 = vld [vmem:[#allocation3 + $0x8] sm:$0xff]
      %v2528 = vld [vmem:[#allocation3 + $0x10] sm:$0xff]
      %v2529 = vld [vmem:[#allocation3 + $0x18] sm:$0xff]
      %v2530 = vld [vmem:[#allocation3 + $0x20] sm:$0xff]
      %v2531 = vld [vmem:[#allocation3 + $0x28] sm:$0xff]
      %v2532 = vld [vmem:[#allocation3 + $0x30] sm:$0xff]
      %v2533 = vld [vmem:[#allocation3 + $0x38] sm:$0xff]
      %v2534 = vld [vmem:[#allocation3 + $0x40] sm:$0xff]
      %v2535 = vld [vmem:[#allocation3 + $0x48] sm:$0xff]
      %v2536 = vld [vmem:[#allocation3 + $0x50] sm:$0xff]
      %v2537 = vld [vmem:[#allocation3 + $0x58] sm:$0xff]
      %v2538 = vld [vmem:[#allocation3 + $0x60] sm:$0xff]
      %v2539 = vld [vmem:[#allocation3 + $0x68] sm:$0xff]
      %v2540 = vld [vmem:[#allocation3 + $0x70] sm:$0xff]
      %v2541 = vld [vmem:[#allocation3 + $0x78] sm:$0xff]
      %v2542 = vld [vmem:[#allocation3 + $0x80] sm:$0xff]
      %v2543 = vld [vmem:[#allocation3 + $0x88] sm:$0xff]
      %v2544 = vld [vmem:[#allocation3 + $0x90] sm:$0xff]
      %v2545 = vld [vmem:[#allocation3 + $0x98] sm:$0xff]
      %v2546 = vld [vmem:[#allocation3 + $0xa0] sm:$0xff]
      %v2547 = vld [vmem:[#allocation3 + $0xa8] sm:$0xff]
      %v2548 = vld [vmem:[#allocation3 + $0xb0] sm:$0xff]
      %v2549 = vld [vmem:[#allocation3 + $0xb8] sm:$0xff]
      %v2550 = vld [vmem:[#allocation3 + $0xc0] sm:$0xff]
      %v2551 = vld [vmem:[#allocation3 + $0xc8] sm:$0xff]
      %v2552 = vld [vmem:[#allocation3 + $0xd0] sm:$0xff]
      %v2553 = vld [vmem:[#allocation3 + $0xd8] sm:$0xff]
      %v2554 = vld [vmem:[#allocation3 + $0xe0] sm:$0xff]
      %v2555 = vld [vmem:[#allocation3 + $0xe8] sm:$0xff]
      %v2556 = vld [vmem:[#allocation3 + $0xf0] sm:$0xff]
      %v2557 = vld [vmem:[#allocation3 + $0xf8] sm:$0xff]
      %s2558 = scalar_lea.vmem %s1, 12
      %v2559 = vld [vmem:[%s2558] sm:$0x3]
      %v2561 = vsel %vm204, %v2510, 0
      %v2564 = vsel %vm204, %v2511, 0
      %v2567 = vsel %vm204, %v2512, 0
      %v2570 = vsel %vm204, %v2513, 0
      %v2573 = vsel %vm204, %v2514, 0
      %v2576 = vsel %vm204, %v2515, 0
      %v2579 = vsel %vm204, %v2516, 0
      %v2582 = vsel %vm204, %v2517, 0
      %v2585 = vsel %vm204, %v2518, 0
      %v2588 = vsel %vm204, %v2519, 0
      %v2591 = vsel %vm204, %v2520, 0
      %v2594 = vsel %vm204, %v2521, 0
      %v2597 = vsel %vm204, %v2522, 0
      %v2600 = vsel %vm204, %v2523, 0
      %v2603 = vsel %vm204, %v2524, 0
      %v2606 = vsel %vm204, %v2525, 0
      %v2609 = vand.u32 %v2559, %v458
      %2611 = vmatprep.subr.bf16.mxu0 0
      %2612 = vmatpush1.bf16.msra.mxu0 %v2609
      %2613 = vmatprep.subr.bf16.mxu0 0
      %2614 = vmatpush1.bf16.msra.mxu0 0
      %2615 = vmatprep.subr.bf16.mxu0 0
      %2616 = vmatpush1.bf16.msra.mxu0 0
      %2617 = vmatprep.subr.bf16.mxu0 0
      %2618 = vmatpush1.bf16.msra.mxu0 0
      %2619 = vmatprep.subr.bf16.mxu0 0
      %2620 = vmatpush1.bf16.msra.mxu0 0
      %2621 = vmatprep.subr.bf16.mxu0 0
      %2622 = vmatpush1.bf16.msra.mxu0 0
      %2623 = vmatprep.subr.bf16.mxu0 0
      %2624 = vmatpush1.bf16.msra.mxu0 0
      %2625 = vmatprep.subr.bf16.mxu0 0
      %2626 = vmatpush1.bf16.msra.mxu0 0
      %2627 = vmatprep.subr.bf16.mxu0 0
      %2628 = vmatpush1.bf16.msra.mxu0 0
      %2629 = vmatprep.subr.bf16.mxu0 0
      %2630 = vmatpush1.bf16.msra.mxu0 0
      %2631 = vmatprep.subr.bf16.mxu0 0
      %2632 = vmatpush1.bf16.msra.mxu0 0
      %2633 = vmatprep.subr.bf16.mxu0 0
      %2634 = vmatpush1.bf16.msra.mxu0 0
      %2635 = vmatprep.subr.bf16.mxu0 0
      %2636 = vmatpush1.bf16.msra.mxu0 0
      %2637 = vmatprep.subr.bf16.mxu0 0
      %2638 = vmatpush1.bf16.msra.mxu0 0
      %2639 = vmatprep.subr.bf16.mxu0 0
      %2640 = vmatpush1.bf16.msra.mxu0 0
      %2641 = vmatprep.subr.bf16.mxu0 0
      %2642 = vmatpush1.bf16.msra.mxu0 0
      %2643 = vmatprep.mubr.bf16.mxu0 0
      %2644 = vmatmul.mubr.bf16.gmra.mrb[0].mxu0 %v2561
      %v2645 = vpop.f32.mrb[0].mxu0
      %v2646 = vadd.f32 0.0, %v2645
      %v2647 = vpop.f32.mrb[0].mxu0
      %v2648 = vpop.f32.mrb[0].mxu0
      %v2649 = vadd.f32 0.0, %v2648
      %v2650 = vpop.f32.mrb[0].mxu0
      %2651 = vmatprep.mubr.bf16.mxu0 0
      %2652 = vmatmul.mubr.bf16.gmra.mrb[0].mxu0 %v2564
      %v2653 = vpop.f32.mrb[0].mxu0
      %v2654 = vadd.f32 0.0, %v2653
      %v2655 = vpop.f32.mrb[0].mxu0
      %v2656 = vpop.f32.mrb[0].mxu0
      %v2657 = vadd.f32 0.0, %v2656
      %v2658 = vpop.f32.mrb[0].mxu0
      %2659 = vmatprep.mubr.bf16.mxu0 0
      %2660 = vmatmul.mubr.bf16.gmra.mrb[0].mxu0 %v2567
      %v2661 = vpop.f32.mrb[0].mxu0
      %v2662 = vadd.f32 0.0, %v2661
      %v2663 = vpop.f32.mrb[0].mxu0
      %v2664 = vpop.f32.mrb[0].mxu0
      %v2665 = vadd.f32 0.0, %v2664
      %v2666 = vpop.f32.mrb[0].mxu0
      %2667 = vmatprep.mubr.bf16.mxu0 0
      %2668 = vmatmul.mubr.bf16.gmra.mrb[0].mxu0 %v2570
      %v2669 = vpop.f32.mrb[0].mxu0
      %v2670 = vadd.f32 0.0, %v2669
      %v2671 = vpop.f32.mrb[0].mxu0
      %v2672 = vpop.f32.mrb[0].mxu0
      %v2673 = vadd.f32 0.0, %v2672
      %v2674 = vpop.f32.mrb[0].mxu0
      %2675 = vmatprep.mubr.bf16.mxu0 0
      %2676 = vmatmul.mubr.bf16.gmra.mrb[0].mxu0 %v2573
      %v2677 = vpop.f32.mrb[0].mxu0
      %v2678 = vadd.f32 0.0, %v2677
      %v2679 = vpop.f32.mrb[0].mxu0
      %v2680 = vpop.f32.mrb[0].mxu0
      %v2681 = vadd.f32 0.0, %v2680
      %v2682 = vpop.f32.mrb[0].mxu0
      %2683 = vmatprep.mubr.bf16.mxu0 0
      %2684 = vmatmul.mubr.bf16.gmra.mrb[0].mxu0 %v2576
      %v2685 = vpop.f32.mrb[0].mxu0
      %v2686 = vadd.f32 0.0, %v2685
      %v2687 = vpop.f32.mrb[0].mxu0
      %v2688 = vpop.f32.mrb[0].mxu0
      %v2689 = vadd.f32 0.0, %v2688
      %v2690 = vpop.f32.mrb[0].mxu0
      %2691 = vmatprep.mubr.bf16.mxu0 0
      %2692 = vmatmul.mubr.bf16.gmra.mrb[0].mxu0 %v2579
      %v2693 = vpop.f32.mrb[0].mxu0
      %v2694 = vadd.f32 0.0, %v2693
      %v2695 = vpop.f32.mrb[0].mxu0
      %v2696 = vpop.f32.mrb[0].mxu0
      %v2697 = vadd.f32 0.0, %v2696
      %v2698 = vpop.f32.mrb[0].mxu0
      %2699 = vmatprep.mubr.bf16.mxu0 0
      %2700 = vmatmul.mubr.bf16.gmra.mrb[0].mxu0 %v2582
      %v2701 = vpop.f32.mrb[0].mxu0
      %v2702 = vadd.f32 0.0, %v2701
      %v2703 = vpop.f32.mrb[0].mxu0
      %v2704 = vpop.f32.mrb[0].mxu0
      %v2705 = vadd.f32 0.0, %v2704
      %v2706 = vpop.f32.mrb[0].mxu0
      %2707 = vmatprep.mubr.bf16.mxu0 0
      %2708 = vmatmul.mubr.bf16.gmra.mrb[0].mxu0 %v2585
      %v2709 = vpop.f32.mrb[0].mxu0
      %v2710 = vadd.f32 0.0, %v2709
      %v2711 = vpop.f32.mrb[0].mxu0
      %v2712 = vpop.f32.mrb[0].mxu0
      %v2713 = vadd.f32 0.0, %v2712
      %v2714 = vpop.f32.mrb[0].mxu0
      %2715 = vmatprep.mubr.bf16.mxu0 0
      %2716 = vmatmul.mubr.bf16.gmra.mrb[0].mxu0 %v2588
      %v2717 = vpop.f32.mrb[0].mxu0
      %v2718 = vadd.f32 0.0, %v2717
      %v2719 = vpop.f32.mrb[0].mxu0
      %v2720 = vpop.f32.mrb[0].mxu0
      %v2721 = vadd.f32 0.0, %v2720
      %v2722 = vpop.f32.mrb[0].mxu0
      %2723 = vmatprep.mubr.bf16.mxu0 0
      %2724 = vmatmul.mubr.bf16.gmra.mrb[0].mxu0 %v2591
      %v2725 = vpop.f32.mrb[0].mxu0
      %v2726 = vadd.f32 0.0, %v2725
      %v2727 = vpop.f32.mrb[0].mxu0
      %v2728 = vpop.f32.mrb[0].mxu0
      %v2729 = vadd.f32 0.0, %v2728
      %v2730 = vpop.f32.mrb[0].mxu0
      %2731 = vmatprep.mubr.bf16.mxu0 0
      %2732 = vmatmul.mubr.bf16.gmra.mrb[0].mxu0 %v2594
      %v2733 = vpop.f32.mrb[0].mxu0
      %v2734 = vadd.f32 0.0, %v2733
      %v2735 = vpop.f32.mrb[0].mxu0
      %v2736 = vpop.f32.mrb[0].mxu0
      %v2737 = vadd.f32 0.0, %v2736
      %v2738 = vpop.f32.mrb[0].mxu0
      %2739 = vmatprep.mubr.bf16.mxu0 0
      %2740 = vmatmul.mubr.bf16.gmra.mrb[0].mxu0 %v2597
      %v2741 = vpop.f32.mrb[0].mxu0
      %v2742 = vadd.f32 0.0, %v2741
      %v2743 = vpop.f32.mrb[0].mxu0
      %v2744 = vpop.f32.mrb[0].mxu0
      %v2745 = vadd.f32 0.0, %v2744
      %v2746 = vpop.f32.mrb[0].mxu0
      %2747 = vmatprep.mubr.bf16.mxu0 0
      %2748 = vmatmul.mubr.bf16.gmra.mrb[0].mxu0 %v2600
      %v2749 = vpop.f32.mrb[0].mxu0
      %v2750 = vadd.f32 0.0, %v2749
      %v2751 = vpop.f32.mrb[0].mxu0
      %v2752 = vpop.f32.mrb[0].mxu0
      %v2753 = vadd.f32 0.0, %v2752
      %v2754 = vpop.f32.mrb[0].mxu0
      %2755 = vmatprep.mubr.bf16.mxu0 0
      %2756 = vmatmul.mubr.bf16.gmra.mrb[0].mxu0 %v2603
      %v2757 = vpop.f32.mrb[0].mxu0
      %v2758 = vadd.f32 0.0, %v2757
      %v2759 = vpop.f32.mrb[0].mxu0
      %v2760 = vpop.f32.mrb[0].mxu0
      %v2761 = vadd.f32 0.0, %v2760
      %v2762 = vpop.f32.mrb[0].mxu0
      %2763 = vmatprep.mubr.bf16.mxu0 0
      %2764 = vmatmul.mubr.bf16.gmra.mrb[0].mxu0 %v2606
      %v2765 = vpop.f32.mrb[0].mxu0
      %v2766 = vadd.f32 0.0, %v2765
      %v2767 = vpop.f32.mrb[0].mxu0
      %v2768 = vpop.f32.mrb[0].mxu0
      %v2769 = vadd.f32 0.0, %v2768
      %v2770 = vpop.f32.mrb[0].mxu0
      %2771 = vdwg.mxu0
      %v2772 = vadd.f32 %v2526, %v2646
      %v2773 = vadd.f32 %v2527, %v2649
      %v2774 = vadd.f32 %v2528, %v2654
      %v2775 = vadd.f32 %v2529, %v2657
      %v2776 = vadd.f32 %v2530, %v2662
      %v2777 = vadd.f32 %v2531, %v2665
      %v2778 = vadd.f32 %v2532, %v2670
      %v2779 = vadd.f32 %v2533, %v2673
      %v2780 = vadd.f32 %v2534, %v2678
      %v2781 = vadd.f32 %v2535, %v2681
      %v2782 = vadd.f32 %v2536, %v2686
      %v2783 = vadd.f32 %v2537, %v2689
      %v2784 = vadd.f32 %v2538, %v2694
      %v2785 = vadd.f32 %v2539, %v2697
      %v2786 = vadd.f32 %v2540, %v2702
      %v2787 = vadd.f32 %v2541, %v2705
      %v2788 = vadd.f32 %v2542, %v2710
      %v2789 = vadd.f32 %v2543, %v2713
      %v2790 = vadd.f32 %v2544, %v2718
      %v2791 = vadd.f32 %v2545, %v2721
      %v2792 = vadd.f32 %v2546, %v2726
      %v2793 = vadd.f32 %v2547, %v2729
      %v2794 = vadd.f32 %v2548, %v2734
      %v2795 = vadd.f32 %v2549, %v2737
      %v2796 = vadd.f32 %v2550, %v2742
      %v2797 = vadd.f32 %v2551, %v2745
      %v2798 = vadd.f32 %v2552, %v2750
      %v2799 = vadd.f32 %v2553, %v2753
      %v2800 = vadd.f32 %v2554, %v2758
      %v2801 = vadd.f32 %v2555, %v2761
      %v2802 = vadd.f32 %v2556, %v2766
      %v2803 = vadd.f32 %v2557, %v2769
      %2804 = vst.msk [vmem:[#allocation3] sm:$0xff] %vm293, %v2772
      %2805 = vst.msk [vmem:[#allocation3 + $0x8] sm:$0xff] %vm293, %v2773
      %2806 = vst.msk [vmem:[#allocation3 + $0x10] sm:$0xff] %vm293, %v2774
      %2807 = vst.msk [vmem:[#allocation3 + $0x18] sm:$0xff] %vm293, %v2775
      %2808 = vst.msk [vmem:[#allocation3 + $0x20] sm:$0xff] %vm293, %v2776
      %2809 = vst.msk [vmem:[#allocation3 + $0x28] sm:$0xff] %vm293, %v2777
      %2810 = vst.msk [vmem:[#allocation3 + $0x30] sm:$0xff] %vm293, %v2778
      %2811 = vst.msk [vmem:[#allocation3 + $0x38] sm:$0xff] %vm293, %v2779
      %2812 = vst.msk [vmem:[#allocation3 + $0x40] sm:$0xff] %vm293, %v2780
      %2813 = vst.msk [vmem:[#allocation3 + $0x48] sm:$0xff] %vm293, %v2781
      %2814 = vst.msk [vmem:[#allocation3 + $0x50] sm:$0xff] %vm293, %v2782
      %2815 = vst.msk [vmem:[#allocation3 + $0x58] sm:$0xff] %vm293, %v2783
      %2816 = vst.msk [vmem:[#allocation3 + $0x60] sm:$0xff] %vm293, %v2784
      %2817 = vst.msk [vmem:[#allocation3 + $0x68] sm:$0xff] %vm293, %v2785
      %2818 = vst.msk [vmem:[#allocation3 + $0x70] sm:$0xff] %vm293, %v2786
      %2819 = vst.msk [vmem:[#allocation3 + $0x78] sm:$0xff] %vm293, %v2787
      %2820 = vst.msk [vmem:[#allocation3 + $0x80] sm:$0xff] %vm293, %v2788
      %2821 = vst.msk [vmem:[#allocation3 + $0x88] sm:$0xff] %vm293, %v2789
      %2822 = vst.msk [vmem:[#allocation3 + $0x90] sm:$0xff] %vm293, %v2790
      %2823 = vst.msk [vmem:[#allocation3 + $0x98] sm:$0xff] %vm293, %v2791
      %2824 = vst.msk [vmem:[#allocation3 + $0xa0] sm:$0xff] %vm293, %v2792
      %2825 = vst.msk [vmem:[#allocation3 + $0xa8] sm:$0xff] %vm293, %v2793
      %2826 = vst.msk [vmem:[#allocation3 + $0xb0] sm:$0xff] %vm293, %v2794
      %2827 = vst.msk [vmem:[#allocation3 + $0xb8] sm:$0xff] %vm293, %v2795
      %2828 = vst.msk [vmem:[#allocation3 + $0xc0] sm:$0xff] %vm293, %v2796
      %2829 = vst.msk [vmem:[#allocation3 + $0xc8] sm:$0xff] %vm293, %v2797
      %2830 = vst.msk [vmem:[#allocation3 + $0xd0] sm:$0xff] %vm293, %v2798
      %2831 = vst.msk [vmem:[#allocation3 + $0xd8] sm:$0xff] %vm293, %v2799
      %2832 = vst.msk [vmem:[#allocation3 + $0xe0] sm:$0xff] %vm293, %v2800
      %2833 = vst.msk [vmem:[#allocation3 + $0xe8] sm:$0xff] %vm293, %v2801
      %2834 = vst.msk [vmem:[#allocation3 + $0xf0] sm:$0xff] %vm293, %v2802
      %2835 = vst.msk [vmem:[#allocation3 + $0xf8] sm:$0xff] %vm293, %v2803
      %v2836 = vld [vmem:[%s2477 + $0x1] sm:$0xff]
      %v2837 = vld [vmem:[%s2477 + $0x9] sm:$0xff]
      %v2838 = vld [vmem:[%s2477 + $0x19] sm:$0xff]
      %v2839 = vld [vmem:[%s2477 + $0x21] sm:$0xff]
      %v2840 = vld [vmem:[%s2477 + $0x31] sm:$0xff]
      %v2841 = vld [vmem:[%s2477 + $0x39] sm:$0xff]
      %v2842 = vld [vmem:[%s2477 + $0x49] sm:$0xff]
      %v2843 = vld [vmem:[%s2477 + $0x51] sm:$0xff]
      %v2844 = vld [vmem:[%s2477 + $0x61] sm:$0xff]
      %v2845 = vld [vmem:[%s2477 + $0x69] sm:$0xff]
      %v2846 = vld [vmem:[%s2477 + $0x79] sm:$0xff]
      %v2847 = vld [vmem:[%s2477 + $0x81] sm:$0xff]
      %v2848 = vld [vmem:[%s2477 + $0x91] sm:$0xff]
      %v2849 = vld [vmem:[%s2477 + $0x99] sm:$0xff]
      %v2850 = vld [vmem:[%s2477 + $0xa9] sm:$0xff]
      %v2851 = vld [vmem:[%s2477 + $0xb1] sm:$0xff]
      %v2852 = vld [vmem:[%s2477 + $0xc1] sm:$0xff]
      %v2853 = vld [vmem:[%s2477 + $0xc9] sm:$0xff]
      %v2854 = vld [vmem:[%s2477 + $0xd9] sm:$0xff]
      %v2855 = vld [vmem:[%s2477 + $0xe1] sm:$0xff]
      %v2856 = vld [vmem:[%s2477 + $0xf1] sm:$0xff]
      %v2857 = vld [vmem:[%s2477 + $0xf9] sm:$0xff]
      %v2858 = vld [vmem:[%s2477 + $0x109] sm:$0xff]
      %v2859 = vld [vmem:[%s2477 + $0x111] sm:$0xff]
      %v2860 = vld [vmem:[%s2477 + $0x121] sm:$0xff]
      %v2861 = vld [vmem:[%s2477 + $0x129] sm:$0xff]
      %v2862 = vld [vmem:[%s2477 + $0x139] sm:$0xff]
      %v2863 = vld [vmem:[%s2477 + $0x141] sm:$0xff]
      %v2864 = vld [vmem:[%s2477 + $0x151] sm:$0xff]
      %v2865 = vld [vmem:[%s2477 + $0x159] sm:$0xff]
      %v2866 = vld [vmem:[%s2477 + $0x169] sm:$0xff]
      %v2867 = vld [vmem:[%s2477 + $0x171] sm:$0xff]
      %v2868 = vpack.c.bf16 %v2837, %v2836
      %v2869 = vpack.c.bf16 %v2839, %v2838
      %v2870 = vpack.c.bf16 %v2841, %v2840
      %v2871 = vpack.c.bf16 %v2843, %v2842
      %v2872 = vpack.c.bf16 %v2845, %v2844
      %v2873 = vpack.c.bf16 %v2847, %v2846
      %v2874 = vpack.c.bf16 %v2849, %v2848
      %v2875 = vpack.c.bf16 %v2851, %v2850
      %v2876 = vpack.c.bf16 %v2853, %v2852
      %v2877 = vpack.c.bf16 %v2855, %v2854
      %v2878 = vpack.c.bf16 %v2857, %v2856
      %v2879 = vpack.c.bf16 %v2859, %v2858
      %v2880 = vpack.c.bf16 %v2861, %v2860
      %v2881 = vpack.c.bf16 %v2863, %v2862
      %v2882 = vpack.c.bf16 %v2865, %v2864
      %v2883 = vpack.c.bf16 %v2867, %v2866
      %v2884 = vld [vmem:[#allocation3] sm:$0xff]
      %v2885 = vld [vmem:[#allocation3 + $0x8] sm:$0xff]
      %v2886 = vld [vmem:[#allocation3 + $0x10] sm:$0xff]
      %v2887 = vld [vmem:[#allocation3 + $0x18] sm:$0xff]
      %v2888 = vld [vmem:[#allocation3 + $0x20] sm:$0xff]
      %v2889 = vld [vmem:[#allocation3 + $0x28] sm:$0xff]
      %v2890 = vld [vmem:[#allocation3 + $0x30] sm:$0xff]
      %v2891 = vld [vmem:[#allocation3 + $0x38] sm:$0xff]
      %v2892 = vld [vmem:[#allocation3 + $0x40] sm:$0xff]
      %v2893 = vld [vmem:[#allocation3 + $0x48] sm:$0xff]
      %v2894 = vld [vmem:[#allocation3 + $0x50] sm:$0xff]
      %v2895 = vld [vmem:[#allocation3 + $0x58] sm:$0xff]
      %v2896 = vld [vmem:[#allocation3 + $0x60] sm:$0xff]
      %v2897 = vld [vmem:[#allocation3 + $0x68] sm:$0xff]
      %v2898 = vld [vmem:[#allocation3 + $0x70] sm:$0xff]
      %v2899 = vld [vmem:[#allocation3 + $0x78] sm:$0xff]
      %v2900 = vld [vmem:[#allocation3 + $0x80] sm:$0xff]
      %v2901 = vld [vmem:[#allocation3 + $0x88] sm:$0xff]
      %v2902 = vld [vmem:[#allocation3 + $0x90] sm:$0xff]
      %v2903 = vld [vmem:[#allocation3 + $0x98] sm:$0xff]
      %v2904 = vld [vmem:[#allocation3 + $0xa0] sm:$0xff]
      %v2905 = vld [vmem:[#allocation3 + $0xa8] sm:$0xff]
      %v2906 = vld [vmem:[#allocation3 + $0xb0] sm:$0xff]
      %v2907 = vld [vmem:[#allocation3 + $0xb8] sm:$0xff]
      %v2908 = vld [vmem:[#allocation3 + $0xc0] sm:$0xff]
      %v2909 = vld [vmem:[#allocation3 + $0xc8] sm:$0xff]
      %v2910 = vld [vmem:[#allocation3 + $0xd0] sm:$0xff]
      %v2911 = vld [vmem:[#allocation3 + $0xd8] sm:$0xff]
      %v2912 = vld [vmem:[#allocation3 + $0xe0] sm:$0xff]
      %v2913 = vld [vmem:[#allocation3 + $0xe8] sm:$0xff]
      %v2914 = vld [vmem:[#allocation3 + $0xf0] sm:$0xff]
      %v2915 = vld [vmem:[#allocation3 + $0xf8] sm:$0xff]
      %s2916 = scalar_lea.vmem %s1, 14
      %v2917 = vld [vmem:[%s2916] sm:$0x3]
      %v2919 = vsel %vm204, %v2868, 0
      %v2922 = vsel %vm204, %v2869, 0
      %v2925 = vsel %vm204, %v2870, 0
      %v2928 = vsel %vm204, %v2871, 0
      %v2931 = vsel %vm204, %v2872, 0
      %v2934 = vsel %vm204, %v2873, 0
      %v2937 = vsel %vm204, %v2874, 0
      %v2940 = vsel %vm204, %v2875, 0
      %v2943 = vsel %vm204, %v2876, 0
      %v2946 = vsel %vm204, %v2877, 0
      %v2949 = vsel %vm204, %v2878, 0
      %v2952 = vsel %vm204, %v2879, 0
      %v2955 = vsel %vm204, %v2880, 0
      %v2958 = vsel %vm204, %v2881, 0
      %v2961 = vsel %vm204, %v2882, 0
      %v2964 = vsel %vm204, %v2883, 0
      %v2967 = vand.u32 %v2917, %v458
      %2969 = vmatprep.subr.bf16.mxu0 0
      %2970 = vmatpush1.bf16.msra.mxu0 %v2967
      %2971 = vmatprep.subr.bf16.mxu0 0
      %2972 = vmatpush1.bf16.msra.mxu0 0
      %2973 = vmatprep.subr.bf16.mxu0 0
      %2974 = vmatpush1.bf16.msra.mxu0 0
      %2975 = vmatprep.subr.bf16.mxu0 0
      %2976 = vmatpush1.bf16.msra.mxu0 0
      %2977 = vmatprep.subr.bf16.mxu0 0
      %2978 = vmatpush1.bf16.msra.mxu0 0
      %2979 = vmatprep.subr.bf16.mxu0 0
      %2980 = vmatpush1.bf16.msra.mxu0 0
      %2981 = vmatprep.subr.bf16.mxu0 0
      %2982 = vmatpush1.bf16.msra.mxu0 0
      %2983 = vmatprep.subr.bf16.mxu0 0
      %2984 = vmatpush1.bf16.msra.mxu0 0
      %2985 = vmatprep.subr.bf16.mxu0 0
      %2986 = vmatpush1.bf16.msra.mxu0 0
      %2987 = vmatprep.subr.bf16.mxu0 0
      %2988 = vmatpush1.bf16.msra.mxu0 0
      %2989 = vmatprep.subr.bf16.mxu0 0
      %2990 = vmatpush1.bf16.msra.mxu0 0
      %2991 = vmatprep.subr.bf16.mxu0 0
      %2992 = vmatpush1.bf16.msra.mxu0 0
      %2993 = vmatprep.subr.bf16.mxu0 0
      %2994 = vmatpush1.bf16.msra.mxu0 0
      %2995 = vmatprep.subr.bf16.mxu0 0
      %2996 = vmatpush1.bf16.msra.mxu0 0
      %2997 = vmatprep.subr.bf16.mxu0 0
      %2998 = vmatpush1.bf16.msra.mxu0 0
      %2999 = vmatprep.subr.bf16.mxu0 0
      %3000 = vmatpush1.bf16.msra.mxu0 0
      %3001 = vmatprep.mubr.bf16.mxu0 0
      %3002 = vmatmul.mubr.bf16.gmra.mrb[0].mxu0 %v2919
      %v3003 = vpop.f32.mrb[0].mxu0
      %v3004 = vadd.f32 0.0, %v3003
      %v3005 = vpop.f32.mrb[0].mxu0
      %v3006 = vpop.f32.mrb[0].mxu0
      %v3007 = vadd.f32 0.0, %v3006
      %v3008 = vpop.f32.mrb[0].mxu0
      %3009 = vmatprep.mubr.bf16.mxu0 0
      %3010 = vmatmul.mubr.bf16.gmra.mrb[0].mxu0 %v2922
      %v3011 = vpop.f32.mrb[0].mxu0
      %v3012 = vadd.f32 0.0, %v3011
      %v3013 = vpop.f32.mrb[0].mxu0
      %v3014 = vpop.f32.mrb[0].mxu0
      %v3015 = vadd.f32 0.0, %v3014
      %v3016 = vpop.f32.mrb[0].mxu0
      %3017 = vmatprep.mubr.bf16.mxu0 0
      %3018 = vmatmul.mubr.bf16.gmra.mrb[0].mxu0 %v2925
      %v3019 = vpop.f32.mrb[0].mxu0
      %v3020 = vadd.f32 0.0, %v3019
      %v3021 = vpop.f32.mrb[0].mxu0
      %v3022 = vpop.f32.mrb[0].mxu0
      %v3023 = vadd.f32 0.0, %v3022
      %v3024 = vpop.f32.mrb[0].mxu0
      %3025 = vmatprep.mubr.bf16.mxu0 0
      %3026 = vmatmul.mubr.bf16.gmra.mrb[0].mxu0 %v2928
      %v3027 = vpop.f32.mrb[0].mxu0
      %v3028 = vadd.f32 0.0, %v3027
      %v3029 = vpop.f32.mrb[0].mxu0
      %v3030 = vpop.f32.mrb[0].mxu0
      %v3031 = vadd.f32 0.0, %v3030
      %v3032 = vpop.f32.mrb[0].mxu0
      %3033 = vmatprep.mubr.bf16.mxu0 0
      %3034 = vmatmul.mubr.bf16.gmra.mrb[0].mxu0 %v2931
      %v3035 = vpop.f32.mrb[0].mxu0
      %v3036 = vadd.f32 0.0, %v3035
      %v3037 = vpop.f32.mrb[0].mxu0
      %v3038 = vpop.f32.mrb[0].mxu0
      %v3039 = vadd.f32 0.0, %v3038
      %v3040 = vpop.f32.mrb[0].mxu0
      %3041 = vmatprep.mubr.bf16.mxu0 0
      %3042 = vmatmul.mubr.bf16.gmra.mrb[0].mxu0 %v2934
      %v3043 = vpop.f32.mrb[0].mxu0
      %v3044 = vadd.f32 0.0, %v3043
      %v3045 = vpop.f32.mrb[0].mxu0
      %v3046 = vpop.f32.mrb[0].mxu0
      %v3047 = vadd.f32 0.0, %v3046
      %v3048 = vpop.f32.mrb[0].mxu0
      %3049 = vmatprep.mubr.bf16.mxu0 0
      %3050 = vmatmul.mubr.bf16.gmra.mrb[0].mxu0 %v2937
      %v3051 = vpop.f32.mrb[0].mxu0
      %v3052 = vadd.f32 0.0, %v3051
      %v3053 = vpop.f32.mrb[0].mxu0
      %v3054 = vpop.f32.mrb[0].mxu0
      %v3055 = vadd.f32 0.0, %v3054
      %v3056 = vpop.f32.mrb[0].mxu0
      %3057 = vmatprep.mubr.bf16.mxu0 0
      %3058 = vmatmul.mubr.bf16.gmra.mrb[0].mxu0 %v2940
      %v3059 = vpop.f32.mrb[0].mxu0
      %v3060 = vadd.f32 0.0, %v3059
      %v3061 = vpop.f32.mrb[0].mxu0
      %v3062 = vpop.f32.mrb[0].mxu0
      %v3063 = vadd.f32 0.0, %v3062
      %v3064 = vpop.f32.mrb[0].mxu0
      %3065 = vmatprep.mubr.bf16.mxu0 0
      %3066 = vmatmul.mubr.bf16.gmra.mrb[0].mxu0 %v2943
      %v3067 = vpop.f32.mrb[0].mxu0
      %v3068 = vadd.f32 0.0, %v3067
      %v3069 = vpop.f32.mrb[0].mxu0
      %v3070 = vpop.f32.mrb[0].mxu0
      %v3071 = vadd.f32 0.0, %v3070
      %v3072 = vpop.f32.mrb[0].mxu0
      %3073 = vmatprep.mubr.bf16.mxu0 0
      %3074 = vmatmul.mubr.bf16.gmra.mrb[0].mxu0 %v2946
      %v3075 = vpop.f32.mrb[0].mxu0
      %v3076 = vadd.f32 0.0, %v3075
      %v3077 = vpop.f32.mrb[0].mxu0
      %v3078 = vpop.f32.mrb[0].mxu0
      %v3079 = vadd.f32 0.0, %v3078
      %v3080 = vpop.f32.mrb[0].mxu0
      %3081 = vmatprep.mubr.bf16.mxu0 0
      %3082 = vmatmul.mubr.bf16.gmra.mrb[0].mxu0 %v2949
      %v3083 = vpop.f32.mrb[0].mxu0
      %v3084 = vadd.f32 0.0, %v3083
      %v3085 = vpop.f32.mrb[0].mxu0
      %v3086 = vpop.f32.mrb[0].mxu0
      %v3087 = vadd.f32 0.0, %v3086
      %v3088 = vpop.f32.mrb[0].mxu0
      %3089 = vmatprep.mubr.bf16.mxu0 0
      %3090 = vmatmul.mubr.bf16.gmra.mrb[0].mxu0 %v2952
      %v3091 = vpop.f32.mrb[0].mxu0
      %v3092 = vadd.f32 0.0, %v3091
      %v3093 = vpop.f32.mrb[0].mxu0
      %v3094 = vpop.f32.mrb[0].mxu0
      %v3095 = vadd.f32 0.0, %v3094
      %v3096 = vpop.f32.mrb[0].mxu0
      %3097 = vmatprep.mubr.bf16.mxu0 0
      %3098 = vmatmul.mubr.bf16.gmra.mrb[0].mxu0 %v2955
      %v3099 = vpop.f32.mrb[0].mxu0
      %v3100 = vadd.f32 0.0, %v3099
      %v3101 = vpop.f32.mrb[0].mxu0
      %v3102 = vpop.f32.mrb[0].mxu0
      %v3103 = vadd.f32 0.0, %v3102
      %v3104 = vpop.f32.mrb[0].mxu0
      %3105 = vmatprep.mubr.bf16.mxu0 0
      %3106 = vmatmul.mubr.bf16.gmra.mrb[0].mxu0 %v2958
      %v3107 = vpop.f32.mrb[0].mxu0
      %v3108 = vadd.f32 0.0, %v3107
      %v3109 = vpop.f32.mrb[0].mxu0
      %v3110 = vpop.f32.mrb[0].mxu0
      %v3111 = vadd.f32 0.0, %v3110
      %v3112 = vpop.f32.mrb[0].mxu0
      %3113 = vmatprep.mubr.bf16.mxu0 0
      %3114 = vmatmul.mubr.bf16.gmra.mrb[0].mxu0 %v2961
      %v3115 = vpop.f32.mrb[0].mxu0
      %v3116 = vadd.f32 0.0, %v3115
      %v3117 = vpop.f32.mrb[0].mxu0
      %v3118 = vpop.f32.mrb[0].mxu0
      %v3119 = vadd.f32 0.0, %v3118
      %v3120 = vpop.f32.mrb[0].mxu0
      %3121 = vmatprep.mubr.bf16.mxu0 0
      %3122 = vmatmul.mubr.bf16.gmra.mrb[0].mxu0 %v2964
      %v3123 = vpop.f32.mrb[0].mxu0
      %v3124 = vadd.f32 0.0, %v3123
      %v3125 = vpop.f32.mrb[0].mxu0
      %v3126 = vpop.f32.mrb[0].mxu0
      %v3127 = vadd.f32 0.0, %v3126
      %v3128 = vpop.f32.mrb[0].mxu0
      %3129 = vdwg.mxu0
      %v3130 = vadd.f32 %v2884, %v3004
      %v3131 = vadd.f32 %v2885, %v3007
      %v3132 = vadd.f32 %v2886, %v3012
      %v3133 = vadd.f32 %v2887, %v3015
      %v3134 = vadd.f32 %v2888, %v3020
      %v3135 = vadd.f32 %v2889, %v3023
      %v3136 = vadd.f32 %v2890, %v3028
      %v3137 = vadd.f32 %v2891, %v3031
      %v3138 = vadd.f32 %v2892, %v3036
      %v3139 = vadd.f32 %v2893, %v3039
      %v3140 = vadd.f32 %v2894, %v3044
      %v3141 = vadd.f32 %v2895, %v3047
      %v3142 = vadd.f32 %v2896, %v3052
      %v3143 = vadd.f32 %v2897, %v3055
      %v3144 = vadd.f32 %v2898, %v3060
      %v3145 = vadd.f32 %v2899, %v3063
      %v3146 = vadd.f32 %v2900, %v3068
      %v3147 = vadd.f32 %v2901, %v3071
      %v3148 = vadd.f32 %v2902, %v3076
      %v3149 = vadd.f32 %v2903, %v3079
      %v3150 = vadd.f32 %v2904, %v3084
      %v3151 = vadd.f32 %v2905, %v3087
      %v3152 = vadd.f32 %v2906, %v3092
      %v3153 = vadd.f32 %v2907, %v3095
      %v3154 = vadd.f32 %v2908, %v3100
      %v3155 = vadd.f32 %v2909, %v3103
      %v3156 = vadd.f32 %v2910, %v3108
      %v3157 = vadd.f32 %v2911, %v3111
      %v3158 = vadd.f32 %v2912, %v3116
      %v3159 = vadd.f32 %v2913, %v3119
      %v3160 = vadd.f32 %v2914, %v3124
      %v3161 = vadd.f32 %v2915, %v3127
      %3162 = vst.msk [vmem:[#allocation3] sm:$0xff] %vm293, %v3130
      %3163 = vst.msk [vmem:[#allocation3 + $0x8] sm:$0xff] %vm293, %v3131
      %3164 = vst.msk [vmem:[#allocation3 + $0x10] sm:$0xff] %vm293, %v3132
      %3165 = vst.msk [vmem:[#allocation3 + $0x18] sm:$0xff] %vm293, %v3133
      %3166 = vst.msk [vmem:[#allocation3 + $0x20] sm:$0xff] %vm293, %v3134
      %3167 = vst.msk [vmem:[#allocation3 + $0x28] sm:$0xff] %vm293, %v3135
      %3168 = vst.msk [vmem:[#allocation3 + $0x30] sm:$0xff] %vm293, %v3136
      %3169 = vst.msk [vmem:[#allocation3 + $0x38] sm:$0xff] %vm293, %v3137
      %3170 = vst.msk [vmem:[#allocation3 + $0x40] sm:$0xff] %vm293, %v3138
      %3171 = vst.msk [vmem:[#allocation3 + $0x48] sm:$0xff] %vm293, %v3139
      %3172 = vst.msk [vmem:[#allocation3 + $0x50] sm:$0xff] %vm293, %v3140
      %3173 = vst.msk [vmem:[#allocation3 + $0x58] sm:$0xff] %vm293, %v3141
      %3174 = vst.msk [vmem:[#allocation3 + $0x60] sm:$0xff] %vm293, %v3142
      %3175 = vst.msk [vmem:[#allocation3 + $0x68] sm:$0xff] %vm293, %v3143
      %3176 = vst.msk [vmem:[#allocation3 + $0x70] sm:$0xff] %vm293, %v3144
      %3177 = vst.msk [vmem:[#allocation3 + $0x78] sm:$0xff] %vm293, %v3145
      %3178 = vst.msk [vmem:[#allocation3 + $0x80] sm:$0xff] %vm293, %v3146
      %3179 = vst.msk [vmem:[#allocation3 + $0x88] sm:$0xff] %vm293, %v3147
      %3180 = vst.msk [vmem:[#allocation3 + $0x90] sm:$0xff] %vm293, %v3148
      %3181 = vst.msk [vmem:[#allocation3 + $0x98] sm:$0xff] %vm293, %v3149
      %3182 = vst.msk [vmem:[#allocation3 + $0xa0] sm:$0xff] %vm293, %v3150
      %3183 = vst.msk [vmem:[#allocation3 + $0xa8] sm:$0xff] %vm293, %v3151
      %3184 = vst.msk [vmem:[#allocation3 + $0xb0] sm:$0xff] %vm293, %v3152
      %3185 = vst.msk [vmem:[#allocation3 + $0xb8] sm:$0xff] %vm293, %v3153
      %3186 = vst.msk [vmem:[#allocation3 + $0xc0] sm:$0xff] %vm293, %v3154
      %3187 = vst.msk [vmem:[#allocation3 + $0xc8] sm:$0xff] %vm293, %v3155
      %3188 = vst.msk [vmem:[#allocation3 + $0xd0] sm:$0xff] %vm293, %v3156
      %3189 = vst.msk [vmem:[#allocation3 + $0xd8] sm:$0xff] %vm293, %v3157
      %3190 = vst.msk [vmem:[#allocation3 + $0xe0] sm:$0xff] %vm293, %v3158
      %3191 = vst.msk [vmem:[#allocation3 + $0xe8] sm:$0xff] %vm293, %v3159
      %3192 = vst.msk [vmem:[#allocation3 + $0xf0] sm:$0xff] %vm293, %v3160
      %3193 = vst.msk [vmem:[#allocation3 + $0xf8] sm:$0xff] %vm293, %v3161
      %v3194 = vld [vmem:[%s2477 + $0x2] sm:$0xff]
      %v3195 = vld [vmem:[%s2477 + $0xa] sm:$0xff]
      %v3196 = vld [vmem:[%s2477 + $0x1a] sm:$0xff]
      %v3197 = vld [vmem:[%s2477 + $0x22] sm:$0xff]
      %v3198 = vld [vmem:[%s2477 + $0x32] sm:$0xff]
      %v3199 = vld [vmem:[%s2477 + $0x3a] sm:$0xff]
      %v3200 = vld [vmem:[%s2477 + $0x4a] sm:$0xff]
      %v3201 = vld [vmem:[%s2477 + $0x52] sm:$0xff]
      %v3202 = vld [vmem:[%s2477 + $0x62] sm:$0xff]
      %v3203 = vld [vmem:[%s2477 + $0x6a] sm:$0xff]
      %v3204 = vld [vmem:[%s2477 + $0x7a] sm:$0xff]
      %v3205 = vld [vmem:[%s2477 + $0x82] sm:$0xff]
      %v3206 = vld [vmem:[%s2477 + $0x92] sm:$0xff]
      %v3207 = vld [vmem:[%s2477 + $0x9a] sm:$0xff]
      %v3208 = vld [vmem:[%s2477 + $0xaa] sm:$0xff]
      %v3209 = vld [vmem:[%s2477 + $0xb2] sm:$0xff]
      %v3210 = vld [vmem:[%s2477 + $0xc2] sm:$0xff]
      %v3211 = vld [vmem:[%s2477 + $0xca] sm:$0xff]
      %v3212 = vld [vmem:[%s2477 + $0xda] sm:$0xff]
      %v3213 = vld [vmem:[%s2477 + $0xe2] sm:$0xff]
      %v3214 = vld [vmem:[%s2477 + $0xf2] sm:$0xff]
      %v3215 = vld [vmem:[%s2477 + $0xfa] sm:$0xff]
      %v3216 = vld [vmem:[%s2477 + $0x10a] sm:$0xff]
      %v3217 = vld [vmem:[%s2477 + $0x112] sm:$0xff]
      %v3218 = vld [vmem:[%s2477 + $0x122] sm:$0xff]
      %v3219 = vld [vmem:[%s2477 + $0x12a] sm:$0xff]
      %v3220 = vld [vmem:[%s2477 + $0x13a] sm:$0xff]
      %v3221 = vld [vmem:[%s2477 + $0x142] sm:$0xff]
      %v3222 = vld [vmem:[%s2477 + $0x152] sm:$0xff]
      %v3223 = vld [vmem:[%s2477 + $0x15a] sm:$0xff]
      %v3224 = vld [vmem:[%s2477 + $0x16a] sm:$0xff]
      %v3225 = vld [vmem:[%s2477 + $0x172] sm:$0xff]
      %v3226 = vpack.c.bf16 %v3195, %v3194
      %v3227 = vpack.c.bf16 %v3197, %v3196
      %v3228 = vpack.c.bf16 %v3199, %v3198
      %v3229 = vpack.c.bf16 %v3201, %v3200
      %v3230 = vpack.c.bf16 %v3203, %v3202
      %v3231 = vpack.c.bf16 %v3205, %v3204
      %v3232 = vpack.c.bf16 %v3207, %v3206
      %v3233 = vpack.c.bf16 %v3209, %v3208
      %v3234 = vpack.c.bf16 %v3211, %v3210
      %v3235 = vpack.c.bf16 %v3213, %v3212
      %v3236 = vpack.c.bf16 %v3215, %v3214
      %v3237 = vpack.c.bf16 %v3217, %v3216
      %v3238 = vpack.c.bf16 %v3219, %v3218
      %v3239 = vpack.c.bf16 %v3221, %v3220
      %v3240 = vpack.c.bf16 %v3223, %v3222
      %v3241 = vpack.c.bf16 %v3225, %v3224
      %v3242 = vld [vmem:[#allocation3] sm:$0xff]
      %v3243 = vld [vmem:[#allocation3 + $0x8] sm:$0xff]
      %v3244 = vld [vmem:[#allocation3 + $0x10] sm:$0xff]
      %v3245 = vld [vmem:[#allocation3 + $0x18] sm:$0xff]
      %v3246 = vld [vmem:[#allocation3 + $0x20] sm:$0xff]
      %v3247 = vld [vmem:[#allocation3 + $0x28] sm:$0xff]
      %v3248 = vld [vmem:[#allocation3 + $0x30] sm:$0xff]
      %v3249 = vld [vmem:[#allocation3 + $0x38] sm:$0xff]
      %v3250 = vld [vmem:[#allocation3 + $0x40] sm:$0xff]
      %v3251 = vld [vmem:[#allocation3 + $0x48] sm:$0xff]
      %v3252 = vld [vmem:[#allocation3 + $0x50] sm:$0xff]
      %v3253 = vld [vmem:[#allocation3 + $0x58] sm:$0xff]
      %v3254 = vld [vmem:[#allocation3 + $0x60] sm:$0xff]
      %v3255 = vld [vmem:[#allocation3 + $0x68] sm:$0xff]
      %v3256 = vld [vmem:[#allocation3 + $0x70] sm:$0xff]
      %v3257 = vld [vmem:[#allocation3 + $0x78] sm:$0xff]
      %v3258 = vld [vmem:[#allocation3 + $0x80] sm:$0xff]
      %v3259 = vld [vmem:[#allocation3 + $0x88] sm:$0xff]
      %v3260 = vld [vmem:[#allocation3 + $0x90] sm:$0xff]
      %v3261 = vld [vmem:[#allocation3 + $0x98] sm:$0xff]
      %v3262 = vld [vmem:[#allocation3 + $0xa0] sm:$0xff]
      %v3263 = vld [vmem:[#allocation3 + $0xa8] sm:$0xff]
      %v3264 = vld [vmem:[#allocation3 + $0xb0] sm:$0xff]
      %v3265 = vld [vmem:[#allocation3 + $0xb8] sm:$0xff]
      %v3266 = vld [vmem:[#allocation3 + $0xc0] sm:$0xff]
      %v3267 = vld [vmem:[#allocation3 + $0xc8] sm:$0xff]
      %v3268 = vld [vmem:[#allocation3 + $0xd0] sm:$0xff]
      %v3269 = vld [vmem:[#allocation3 + $0xd8] sm:$0xff]
      %v3270 = vld [vmem:[#allocation3 + $0xe0] sm:$0xff]
      %v3271 = vld [vmem:[#allocation3 + $0xe8] sm:$0xff]
      %v3272 = vld [vmem:[#allocation3 + $0xf0] sm:$0xff]
      %v3273 = vld [vmem:[#allocation3 + $0xf8] sm:$0xff]
      %s3274 = scalar_lea.vmem %s1, 16
      %v3275 = vld [vmem:[%s3274] sm:$0x3]
      %v3277 = vsel %vm204, %v3226, 0
      %v3280 = vsel %vm204, %v3227, 0
      %v3283 = vsel %vm204, %v3228, 0
      %v3286 = vsel %vm204, %v3229, 0
      %v3289 = vsel %vm204, %v3230, 0
      %v3292 = vsel %vm204, %v3231, 0
      %v3295 = vsel %vm204, %v3232, 0
      %v3298 = vsel %vm204, %v3233, 0
      %v3301 = vsel %vm204, %v3234, 0
      %v3304 = vsel %vm204, %v3235, 0
      %v3307 = vsel %vm204, %v3236, 0
      %v3310 = vsel %vm204, %v3237, 0
      %v3313 = vsel %vm204, %v3238, 0
      %v3316 = vsel %vm204, %v3239, 0
      %v3319 = vsel %vm204, %v3240, 0
      %v3322 = vsel %vm204, %v3241, 0
      %v3325 = vand.u32 %v3275, %v458
      %3327 = vmatprep.subr.bf16.mxu0 0
      %3328 = vmatpush1.bf16.msra.mxu0 %v3325
      %3329 = vmatprep.subr.bf16.mxu0 0
      %3330 = vmatpush1.bf16.msra.mxu0 0
      %3331 = vmatprep.subr.bf16.mxu0 0
      %3332 = vmatpush1.bf16.msra.mxu0 0
      %3333 = vmatprep.subr.bf16.mxu0 0
      %3334 = vmatpush1.bf16.msra.mxu0 0
      %3335 = vmatprep.subr.bf16.mxu0 0
      %3336 = vmatpush1.bf16.msra.mxu0 0
      %3337 = vmatprep.subr.bf16.mxu0 0
      %3338 = vmatpush1.bf16.msra.mxu0 0
      %3339 = vmatprep.subr.bf16.mxu0 0
      %3340 = vmatpush1.bf16.msra.mxu0 0
      %3341 = vmatprep.subr.bf16.mxu0 0
      %3342 = vmatpush1.bf16.msra.mxu0 0
      %3343 = vmatprep.subr.bf16.mxu0 0
      %3344 = vmatpush1.bf16.msra.mxu0 0
      %3345 = vmatprep.subr.bf16.mxu0 0
      %3346 = vmatpush1.bf16.msra.mxu0 0
      %3347 = vmatprep.subr.bf16.mxu0 0
      %3348 = vmatpush1.bf16.msra.mxu0 0
      %3349 = vmatprep.subr.bf16.mxu0 0
      %3350 = vmatpush1.bf16.msra.mxu0 0
      %3351 = vmatprep.subr.bf16.mxu0 0
      %3352 = vmatpush1.bf16.msra.mxu0 0
      %3353 = vmatprep.subr.bf16.mxu0 0
      %3354 = vmatpush1.bf16.msra.mxu0 0
      %3355 = vmatprep.subr.bf16.mxu0 0
      %3356 = vmatpush1.bf16.msra.mxu0 0
      %3357 = vmatprep.subr.bf16.mxu0 0
      %3358 = vmatpush1.bf16.msra.mxu0 0
      %3359 = vmatprep.mubr.bf16.mxu0 0
      %3360 = vmatmul.mubr.bf16.gmra.mrb[0].mxu0 %v3277
      %v3361 = vpop.f32.mrb[0].mxu0
      %v3362 = vadd.f32 0.0, %v3361
      %v3363 = vpop.f32.mrb[0].mxu0
      %v3364 = vpop.f32.mrb[0].mxu0
      %v3365 = vadd.f32 0.0, %v3364
      %v3366 = vpop.f32.mrb[0].mxu0
      %3367 = vmatprep.mubr.bf16.mxu0 0
      %3368 = vmatmul.mubr.bf16.gmra.mrb[0].mxu0 %v3280
      %v3369 = vpop.f32.mrb[0].mxu0
      %v3370 = vadd.f32 0.0, %v3369
      %v3371 = vpop.f32.mrb[0].mxu0
      %v3372 = vpop.f32.mrb[0].mxu0
      %v3373 = vadd.f32 0.0, %v3372
      %v3374 = vpop.f32.mrb[0].mxu0
      %3375 = vmatprep.mubr.bf16.mxu0 0
      %3376 = vmatmul.mubr.bf16.gmra.mrb[0].mxu0 %v3283
      %v3377 = vpop.f32.mrb[0].mxu0
      %v3378 = vadd.f32 0.0, %v3377
      %v3379 = vpop.f32.mrb[0].mxu0
      %v3380 = vpop.f32.mrb[0].mxu0
      %v3381 = vadd.f32 0.0, %v3380
      %v3382 = vpop.f32.mrb[0].mxu0
      %3383 = vmatprep.mubr.bf16.mxu0 0
      %3384 = vmatmul.mubr.bf16.gmra.mrb[0].mxu0 %v3286
      %v3385 = vpop.f32.mrb[0].mxu0
      %v3386 = vadd.f32 0.0, %v3385
      %v3387 = vpop.f32.mrb[0].mxu0
      %v3388 = vpop.f32.mrb[0].mxu0
      %v3389 = vadd.f32 0.0, %v3388
      %v3390 = vpop.f32.mrb[0].mxu0
      %3391 = vmatprep.mubr.bf16.mxu0 0
      %3392 = vmatmul.mubr.bf16.gmra.mrb[0].mxu0 %v3289
      %v3393 = vpop.f32.mrb[0].mxu0
      %v3394 = vadd.f32 0.0, %v3393
      %v3395 = vpop.f32.mrb[0].mxu0
      %v3396 = vpop.f32.mrb[0].mxu0
      %v3397 = vadd.f32 0.0, %v3396
      %v3398 = vpop.f32.mrb[0].mxu0
      %3399 = vmatprep.mubr.bf16.mxu0 0
      %3400 = vmatmul.mubr.bf16.gmra.mrb[0].mxu0 %v3292
      %v3401 = vpop.f32.mrb[0].mxu0
      %v3402 = vadd.f32 0.0, %v3401
      %v3403 = vpop.f32.mrb[0].mxu0
      %v3404 = vpop.f32.mrb[0].mxu0
      %v3405 = vadd.f32 0.0, %v3404
      %v3406 = vpop.f32.mrb[0].mxu0
      %3407 = vmatprep.mubr.bf16.mxu0 0
      %3408 = vmatmul.mubr.bf16.gmra.mrb[0].mxu0 %v3295
      %v3409 = vpop.f32.mrb[0].mxu0
      %v3410 = vadd.f32 0.0, %v3409
      %v3411 = vpop.f32.mrb[0].mxu0
      %v3412 = vpop.f32.mrb[0].mxu0
      %v3413 = vadd.f32 0.0, %v3412
      %v3414 = vpop.f32.mrb[0].mxu0
      %3415 = vmatprep.mubr.bf16.mxu0 0
      %3416 = vmatmul.mubr.bf16.gmra.mrb[0].mxu0 %v3298
      %v3417 = vpop.f32.mrb[0].mxu0
      %v3418 = vadd.f32 0.0, %v3417
      %v3419 = vpop.f32.mrb[0].mxu0
      %v3420 = vpop.f32.mrb[0].mxu0
      %v3421 = vadd.f32 0.0, %v3420
      %v3422 = vpop.f32.mrb[0].mxu0
      %3423 = vmatprep.mubr.bf16.mxu0 0
      %3424 = vmatmul.mubr.bf16.gmra.mrb[0].mxu0 %v3301
      %v3425 = vpop.f32.mrb[0].mxu0
      %v3426 = vadd.f32 0.0, %v3425
      %v3427 = vpop.f32.mrb[0].mxu0
      %v3428 = vpop.f32.mrb[0].mxu0
      %v3429 = vadd.f32 0.0, %v3428
      %v3430 = vpop.f32.mrb[0].mxu0
      %3431 = vmatprep.mubr.bf16.mxu0 0
      %3432 = vmatmul.mubr.bf16.gmra.mrb[0].mxu0 %v3304
      %v3433 = vpop.f32.mrb[0].mxu0
      %v3434 = vadd.f32 0.0, %v3433
      %v3435 = vpop.f32.mrb[0].mxu0
      %v3436 = vpop.f32.mrb[0].mxu0
      %v3437 = vadd.f32 0.0, %v3436
      %v3438 = vpop.f32.mrb[0].mxu0
      %3439 = vmatprep.mubr.bf16.mxu0 0
      %3440 = vmatmul.mubr.bf16.gmra.mrb[0].mxu0 %v3307
      %v3441 = vpop.f32.mrb[0].mxu0
      %v3442 = vadd.f32 0.0, %v3441
      %v3443 = vpop.f32.mrb[0].mxu0
      %v3444 = vpop.f32.mrb[0].mxu0
      %v3445 = vadd.f32 0.0, %v3444
      %v3446 = vpop.f32.mrb[0].mxu0
      %3447 = vmatprep.mubr.bf16.mxu0 0
      %3448 = vmatmul.mubr.bf16.gmra.mrb[0].mxu0 %v3310
      %v3449 = vpop.f32.mrb[0].mxu0
      %v3450 = vadd.f32 0.0, %v3449
      %v3451 = vpop.f32.mrb[0].mxu0
      %v3452 = vpop.f32.mrb[0].mxu0
      %v3453 = vadd.f32 0.0, %v3452
      %v3454 = vpop.f32.mrb[0].mxu0
      %3455 = vmatprep.mubr.bf16.mxu0 0
      %3456 = vmatmul.mubr.bf16.gmra.mrb[0].mxu0 %v3313
      %v3457 = vpop.f32.mrb[0].mxu0
      %v3458 = vadd.f32 0.0, %v3457
      %v3459 = vpop.f32.mrb[0].mxu0
      %v3460 = vpop.f32.mrb[0].mxu0
      %v3461 = vadd.f32 0.0, %v3460
      %v3462 = vpop.f32.mrb[0].mxu0
      %3463 = vmatprep.mubr.bf16.mxu0 0
      %3464 = vmatmul.mubr.bf16.gmra.mrb[0].mxu0 %v3316
      %v3465 = vpop.f32.mrb[0].mxu0
      %v3466 = vadd.f32 0.0, %v3465
      %v3467 = vpop.f32.mrb[0].mxu0
      %v3468 = vpop.f32.mrb[0].mxu0
      %v3469 = vadd.f32 0.0, %v3468
      %v3470 = vpop.f32.mrb[0].mxu0
      %3471 = vmatprep.mubr.bf16.mxu0 0
      %3472 = vmatmul.mubr.bf16.gmra.mrb[0].mxu0 %v3319
      %v3473 = vpop.f32.mrb[0].mxu0
      %v3474 = vadd.f32 0.0, %v3473
      %v3475 = vpop.f32.mrb[0].mxu0
      %v3476 = vpop.f32.mrb[0].mxu0
      %v3477 = vadd.f32 0.0, %v3476
      %v3478 = vpop.f32.mrb[0].mxu0
      %3479 = vmatprep.mubr.bf16.mxu0 0
      %3480 = vmatmul.mubr.bf16.gmra.mrb[0].mxu0 %v3322
      %v3481 = vpop.f32.mrb[0].mxu0
      %v3482 = vadd.f32 0.0, %v3481
      %v3483 = vpop.f32.mrb[0].mxu0
      %v3484 = vpop.f32.mrb[0].mxu0
      %v3485 = vadd.f32 0.0, %v3484
      %v3486 = vpop.f32.mrb[0].mxu0
      %3487 = vdwg.mxu0
      %v3488 = vadd.f32 %v3242, %v3362
      %v3489 = vadd.f32 %v3243, %v3365
      %v3490 = vadd.f32 %v3244, %v3370
      %v3491 = vadd.f32 %v3245, %v3373
      %v3492 = vadd.f32 %v3246, %v3378
      %v3493 = vadd.f32 %v3247, %v3381
      %v3494 = vadd.f32 %v3248, %v3386
      %v3495 = vadd.f32 %v3249, %v3389
      %v3496 = vadd.f32 %v3250, %v3394
      %v3497 = vadd.f32 %v3251, %v3397
      %v3498 = vadd.f32 %v3252, %v3402
      %v3499 = vadd.f32 %v3253, %v3405
      %v3500 = vadd.f32 %v3254, %v3410
      %v3501 = vadd.f32 %v3255, %v3413
      %v3502 = vadd.f32 %v3256, %v3418
      %v3503 = vadd.f32 %v3257, %v3421
      %v3504 = vadd.f32 %v3258, %v3426
      %v3505 = vadd.f32 %v3259, %v3429
      %v3506 = vadd.f32 %v3260, %v3434
      %v3507 = vadd.f32 %v3261, %v3437
      %v3508 = vadd.f32 %v3262, %v3442
      %v3509 = vadd.f32 %v3263, %v3445
      %v3510 = vadd.f32 %v3264, %v3450
      %v3511 = vadd.f32 %v3265, %v3453
      %v3512 = vadd.f32 %v3266, %v3458
      %v3513 = vadd.f32 %v3267, %v3461
      %v3514 = vadd.f32 %v3268, %v3466
      %v3515 = vadd.f32 %v3269, %v3469
      %v3516 = vadd.f32 %v3270, %v3474
      %v3517 = vadd.f32 %v3271, %v3477
      %v3518 = vadd.f32 %v3272, %v3482
      %v3519 = vadd.f32 %v3273, %v3485
      %3520 = vst.msk [vmem:[#allocation3] sm:$0xff] %vm293, %v3488
      %3521 = vst.msk [vmem:[#allocation3 + $0x8] sm:$0xff] %vm293, %v3489
      %3522 = vst.msk [vmem:[#allocation3 + $0x10] sm:$0xff] %vm293, %v3490
      %3523 = vst.msk [vmem:[#allocation3 + $0x18] sm:$0xff] %vm293, %v3491
      %3524 = vst.msk [vmem:[#allocation3 + $0x20] sm:$0xff] %vm293, %v3492
      %3525 = vst.msk [vmem:[#allocation3 + $0x28] sm:$0xff] %vm293, %v3493
      %3526 = vst.msk [vmem:[#allocation3 + $0x30] sm:$0xff] %vm293, %v3494
      %3527 = vst.msk [vmem:[#allocation3 + $0x38] sm:$0xff] %vm293, %v3495
      %3528 = vst.msk [vmem:[#allocation3 + $0x40] sm:$0xff] %vm293, %v3496
      %3529 = vst.msk [vmem:[#allocation3 + $0x48] sm:$0xff] %vm293, %v3497
      %3530 = vst.msk [vmem:[#allocation3 + $0x50] sm:$0xff] %vm293, %v3498
      %3531 = vst.msk [vmem:[#allocation3 + $0x58] sm:$0xff] %vm293, %v3499
      %3532 = vst.msk [vmem:[#allocation3 + $0x60] sm:$0xff] %vm293, %v3500
      %3533 = vst.msk [vmem:[#allocation3 + $0x68] sm:$0xff] %vm293, %v3501
      %3534 = vst.msk [vmem:[#allocation3 + $0x70] sm:$0xff] %vm293, %v3502
      %3535 = vst.msk [vmem:[#allocation3 + $0x78] sm:$0xff] %vm293, %v3503
      %3536 = vst.msk [vmem:[#allocation3 + $0x80] sm:$0xff] %vm293, %v3504
      %3537 = vst.msk [vmem:[#allocation3 + $0x88] sm:$0xff] %vm293, %v3505
      %3538 = vst.msk [vmem:[#allocation3 + $0x90] sm:$0xff] %vm293, %v3506
      %3539 = vst.msk [vmem:[#allocation3 + $0x98] sm:$0xff] %vm293, %v3507
      %3540 = vst.msk [vmem:[#allocation3 + $0xa0] sm:$0xff] %vm293, %v3508
      %3541 = vst.msk [vmem:[#allocation3 + $0xa8] sm:$0xff] %vm293, %v3509
      %3542 = vst.msk [vmem:[#allocation3 + $0xb0] sm:$0xff] %vm293, %v3510
      %3543 = vst.msk [vmem:[#allocation3 + $0xb8] sm:$0xff] %vm293, %v3511
      %3544 = vst.msk [vmem:[#allocation3 + $0xc0] sm:$0xff] %vm293, %v3512
      %3545 = vst.msk [vmem:[#allocation3 + $0xc8] sm:$0xff] %vm293, %v3513
      %3546 = vst.msk [vmem:[#allocation3 + $0xd0] sm:$0xff] %vm293, %v3514
      %3547 = vst.msk [vmem:[#allocation3 + $0xd8] sm:$0xff] %vm293, %v3515
      %3548 = vst.msk [vmem:[#allocation3 + $0xe0] sm:$0xff] %vm293, %v3516
      %3549 = vst.msk [vmem:[#allocation3 + $0xe8] sm:$0xff] %vm293, %v3517
      %3550 = vst.msk [vmem:[#allocation3 + $0xf0] sm:$0xff] %vm293, %v3518
      %3551 = vst.msk [vmem:[#allocation3 + $0xf8] sm:$0xff] %vm293, %v3519
      %v3552 = vld [vmem:[#allocation3] sm:$0xff]
      %v3553 = vld [vmem:[#allocation3 + $0x8] sm:$0xff]
      %v3554 = vld [vmem:[#allocation3 + $0x10] sm:$0xff]
      %v3555 = vld [vmem:[#allocation3 + $0x18] sm:$0xff]
      %v3556 = vld [vmem:[#allocation3 + $0x20] sm:$0xff]
      %v3557 = vld [vmem:[#allocation3 + $0x28] sm:$0xff]
      %v3558 = vld [vmem:[#allocation3 + $0x30] sm:$0xff]
      %v3559 = vld [vmem:[#allocation3 + $0x38] sm:$0xff]
      %v3560 = vld [vmem:[#allocation3 + $0x40] sm:$0xff]
      %v3561 = vld [vmem:[#allocation3 + $0x48] sm:$0xff]
      %v3562 = vld [vmem:[#allocation3 + $0x50] sm:$0xff]
      %v3563 = vld [vmem:[#allocation3 + $0x58] sm:$0xff]
      %v3564 = vld [vmem:[#allocation3 + $0x60] sm:$0xff]
      %v3565 = vld [vmem:[#allocation3 + $0x68] sm:$0xff]
      %v3566 = vld [vmem:[#allocation3 + $0x70] sm:$0xff]
      %v3567 = vld [vmem:[#allocation3 + $0x78] sm:$0xff]
      %v3568 = vld [vmem:[#allocation3 + $0x80] sm:$0xff]
      %v3569 = vld [vmem:[#allocation3 + $0x88] sm:$0xff]
      %v3570 = vld [vmem:[#allocation3 + $0x90] sm:$0xff]
      %v3571 = vld [vmem:[#allocation3 + $0x98] sm:$0xff]
      %v3572 = vld [vmem:[#allocation3 + $0xa0] sm:$0xff]
      %v3573 = vld [vmem:[#allocation3 + $0xa8] sm:$0xff]
      %v3574 = vld [vmem:[#allocation3 + $0xb0] sm:$0xff]
      %v3575 = vld [vmem:[#allocation3 + $0xb8] sm:$0xff]
      %v3576 = vld [vmem:[#allocation3 + $0xc0] sm:$0xff]
      %v3577 = vld [vmem:[#allocation3 + $0xc8] sm:$0xff]
      %v3578 = vld [vmem:[#allocation3 + $0xd0] sm:$0xff]
      %v3579 = vld [vmem:[#allocation3 + $0xd8] sm:$0xff]
      %v3580 = vld [vmem:[#allocation3 + $0xe0] sm:$0xff]
      %v3581 = vld [vmem:[#allocation3 + $0xe8] sm:$0xff]
      %v3582 = vld [vmem:[#allocation3 + $0xf0] sm:$0xff]
      %v3583 = vld [vmem:[#allocation3 + $0xf8] sm:$0xff]
      %v3584 = vld [vmem:[%s2] sm:$0x1]
      %v3586 = vlaneseq
      %v3587 = vshrl.u32 %v3586, 7
      %v3588 = vsub.s32 0, %v3587
      %v3589 = vrot.slane %v3584, %v3588
      %v3591 = vadd.f32 %v3552, %v3589
      %v3592 = vadd.f32 %v3553, %v3589
      %v3593 = vadd.f32 %v3554, %v3589
      %v3594 = vadd.f32 %v3555, %v3589
      %v3595 = vadd.f32 %v3556, %v3589
      %v3596 = vadd.f32 %v3557, %v3589
      %v3597 = vadd.f32 %v3558, %v3589
      %v3598 = vadd.f32 %v3559, %v3589
      %v3599 = vadd.f32 %v3560, %v3589
      %v3600 = vadd.f32 %v3561, %v3589
      %v3601 = vadd.f32 %v3562, %v3589
      %v3602 = vadd.f32 %v3563, %v3589
      %v3603 = vadd.f32 %v3564, %v3589
      %v3604 = vadd.f32 %v3565, %v3589
      %v3605 = vadd.f32 %v3566, %v3589
      %v3606 = vadd.f32 %v3567, %v3589
      %v3607 = vadd.f32 %v3568, %v3589
      %v3608 = vadd.f32 %v3569, %v3589
      %v3609 = vadd.f32 %v3570, %v3589
      %v3610 = vadd.f32 %v3571, %v3589
      %v3611 = vadd.f32 %v3572, %v3589
      %v3612 = vadd.f32 %v3573, %v3589
      %v3613 = vadd.f32 %v3574, %v3589
      %v3614 = vadd.f32 %v3575, %v3589
      %v3615 = vadd.f32 %v3576, %v3589
      %v3616 = vadd.f32 %v3577, %v3589
      %v3617 = vadd.f32 %v3578, %v3589
      %v3618 = vadd.f32 %v3579, %v3589
      %v3619 = vadd.f32 %v3580, %v3589
      %v3620 = vadd.f32 %v3581, %v3589
      %v3621 = vadd.f32 %v3582, %v3589
      %v3622 = vadd.f32 %v3583, %v3589
      %v3623 = vmax.f32 %v3591, 0.0
      %v3624 = vmax.f32 %v3592, 0.0
      %v3625 = vmax.f32 %v3593, 0.0
      %v3626 = vmax.f32 %v3594, 0.0
      %v3627 = vmax.f32 %v3595, 0.0
      %v3628 = vmax.f32 %v3596, 0.0
      %v3629 = vmax.f32 %v3597, 0.0
      %v3630 = vmax.f32 %v3598, 0.0
      %v3631 = vmax.f32 %v3599, 0.0
      %v3632 = vmax.f32 %v3600, 0.0
      %v3633 = vmax.f32 %v3601, 0.0
      %v3634 = vmax.f32 %v3602, 0.0
      %v3635 = vmax.f32 %v3603, 0.0
      %v3636 = vmax.f32 %v3604, 0.0
      %v3637 = vmax.f32 %v3605, 0.0
      %v3638 = vmax.f32 %v3606, 0.0
      %v3639 = vmax.f32 %v3607, 0.0
      %v3640 = vmax.f32 %v3608, 0.0
      %v3641 = vmax.f32 %v3609, 0.0
      %v3642 = vmax.f32 %v3610, 0.0
      %v3643 = vmax.f32 %v3611, 0.0
      %v3644 = vmax.f32 %v3612, 0.0
      %v3645 = vmax.f32 %v3613, 0.0
      %v3646 = vmax.f32 %v3614, 0.0
      %v3647 = vmax.f32 %v3615, 0.0
      %v3648 = vmax.f32 %v3616, 0.0
      %v3649 = vmax.f32 %v3617, 0.0
      %v3650 = vmax.f32 %v3618, 0.0
      %v3651 = vmax.f32 %v3619, 0.0
      %v3652 = vmax.f32 %v3620, 0.0
      %v3653 = vmax.f32 %v3621, 0.0
      %v3654 = vmax.f32 %v3622, 0.0
      %3655 = vst.msk [vmem:[%s170] sm:$0xff] %vm293, %v3623
      %3656 = vst.msk [vmem:[%s170 + $0x8] sm:$0xff] %vm293, %v3624
      %3657 = vst.msk [vmem:[%s170 + $0x10] sm:$0xff] %vm293, %v3625
      %3658 = vst.msk [vmem:[%s170 + $0x18] sm:$0xff] %vm293, %v3626
      %3659 = vst.msk [vmem:[%s170 + $0x20] sm:$0xff] %vm293, %v3627
      %3660 = vst.msk [vmem:[%s170 + $0x28] sm:$0xff] %vm293, %v3628
      %3661 = vst.msk [vmem:[%s170 + $0x30] sm:$0xff] %vm293, %v3629
      %3662 = vst.msk [vmem:[%s170 + $0x38] sm:$0xff] %vm293, %v3630
      %3663 = vst.msk [vmem:[%s170 + $0x40] sm:$0xff] %vm293, %v3631
      %3664 = vst.msk [vmem:[%s170 + $0x48] sm:$0xff] %vm293, %v3632
      %3665 = vst.msk [vmem:[%s170 + $0x50] sm:$0xff] %vm293, %v3633
      %3666 = vst.msk [vmem:[%s170 + $0x58] sm:$0xff] %vm293, %v3634
      %3667 = vst.msk [vmem:[%s170 + $0x60] sm:$0xff] %vm293, %v3635
      %3668 = vst.msk [vmem:[%s170 + $0x68] sm:$0xff] %vm293, %v3636
      %3669 = vst.msk [vmem:[%s170 + $0x70] sm:$0xff] %vm293, %v3637
      %3670 = vst.msk [vmem:[%s170 + $0x78] sm:$0xff] %vm293, %v3638
      %3671 = vst.msk [vmem:[%s170 + $0x80] sm:$0xff] %vm293, %v3639
      %3672 = vst.msk [vmem:[%s170 + $0x88] sm:$0xff] %vm293, %v3640
      %3673 = vst.msk [vmem:[%s170 + $0x90] sm:$0xff] %vm293, %v3641
      %3674 = vst.msk [vmem:[%s170 + $0x98] sm:$0xff] %vm293, %v3642
      %3675 = vst.msk [vmem:[%s170 + $0xa0] sm:$0xff] %vm293, %v3643
      %3676 = vst.msk [vmem:[%s170 + $0xa8] sm:$0xff] %vm293, %v3644
      %3677 = vst.msk [vmem:[%s170 + $0xb0] sm:$0xff] %vm293, %v3645
      %3678 = vst.msk [vmem:[%s170 + $0xb8] sm:$0xff] %vm293, %v3646
      %3679 = vst.msk [vmem:[%s170 + $0xc0] sm:$0xff] %vm293, %v3647
      %3680 = vst.msk [vmem:[%s170 + $0xc8] sm:$0xff] %vm293, %v3648
      %3681 = vst.msk [vmem:[%s170 + $0xd0] sm:$0xff] %vm293, %v3649
      %3682 = vst.msk [vmem:[%s170 + $0xd8] sm:$0xff] %vm293, %v3650
      %3683 = vst.msk [vmem:[%s170 + $0xe0] sm:$0xff] %vm293, %v3651
      %3684 = vst.msk [vmem:[%s170 + $0xe8] sm:$0xff] %vm293, %v3652
      %3685 = vst.msk [vmem:[%s170 + $0xf0] sm:$0xff] %vm293, %v3653
      %3686 = vst.msk [vmem:[%s170 + $0xf8] sm:$0xff] %vm293, %v3654
      %p3687 = scmp.lt.s32.totalorder %s14, 5
      %s3688 = scalar_select %p3687, %s14, 5
      %s3689 = smul.addr %s3688, 32
      %s3690 = smul.addr %s3689, 8
      %s3691 = scalar_lea.vmem %s3, %s3690
      // Predicated region
      $region33: #{tpu_custom_call.1} parent=31 // pred_check
        %p3692 = pneg %p100
      $region34: #{tpu_custom_call.1} parent=31 // pred_check_branch
        %3694 = sbr.rel (%p3692) target = $region36
      $region35: #{tpu_custom_call.1} parent=31 // pred_region
        _
      $region36: #{tpu_custom_call.1} parent=31 // pred_fallthru
        _
    $region32: #{tpu_custom_call.1} parent=5 // pred_fallthru
      _
    %p3695 = scmp.le.s32.totalorder 2, %s9
    // Predicated region
    $region37: #{tpu_custom_call.1} parent=5 // pred_check
      %p3696 = pneg %p3695
    $region38: #{tpu_custom_call.1} parent=5 // pred_check_branch
      %3698 = sbr.rel (%p3696) target = $region40
    $region39: #{tpu_custom_call.1} parent=5 // pred_region
      %s3699 = ssub.s32 %s9, 2
      // Predicated region
      $region41: #{tpu_custom_call.1} parent=39 // pred_check
        %p3700 = pneg %p106
      $region42: #{tpu_custom_call.1} parent=39 // pred_check_branch
        %3702 = sbr.rel (%p3700) target = $region44
      $region43: #{tpu_custom_call.1} parent=39 // pred_region
        %p3703 = scmp.lt.s32.totalorder %s15, 5
        %s3704 = scalar_select %p3703, %s15, 5
        %s3705 = smul.addr %s3704, 32
        %s3706 = smul.addr %s3705, 8
        %s3707 = scalar_lea.vmem %s3, %s3706
      $region44: #{tpu_custom_call.1} parent=39 // pred_fallthru
        _
    $region40: #{tpu_custom_call.1} parent=5 // pred_fallthru
      _
  $region6: #{tpu_custom_call.1} parent=0 // loop_footer
    %s13 = sadd.s32 1, %s9
  $region7: #{tpu_custom_call.1} parent=0 // loop_footer_branch
    %8 = sbr.rel target = $region3
  $region8: #{tpu_custom_call.1} parent=0 // loop_exit
    _

</llo_original>
